<compile_context>
chip_gen: v6e
topology: v6e:2x2x1
jax: 0.10.0
libtpu: 0.0.40
codegen_flags: <defaults>
</compile_context>

<pallas_src>
import functools
import math

import jax
import jax.numpy as jnp
from jax import lax
from jax.experimental import pallas as pl
from jax.experimental.pallas import tpu as pltpu

C_STEM = 32
C_MID = 128
C_SE = 8


def _swish(x):
    return x * jax.nn.sigmoid(x)


# ----------------------------- fused Pallas kernel -----------------------------

def fused_feature_kernel(
    a_stem_ref, w_stem_ref, b_stem_ref,
    w_exp_ref, b_exp_ref,
    w_dw_ref, b_dw_ref,
    w_se1_ref, b_se1_ref, w_se2_ref, b_se2_ref,
    w_proj_ref, b_proj_ref,
    w_head_ref, b_head_ref,
    pool_ref, bcast_ref,
    out_ref,
    *, n, h, w, c_mid):
    f32 = jnp.float32
    bf16 = jnp.bfloat16
    P = n * h * w

    # ---- conv_stem (im2col'd at host, K padded to 32) + folded BN + swish ----
    h_stem = jnp.dot(a_stem_ref[...], w_stem_ref[...], preferred_element_type=f32)
    h_stem = _swish(h_stem + b_stem_ref[...])                     # [P, 32] f32

    # ---- MBConv expand 1x1 + BN + swish ----
    h_exp = jnp.dot(h_stem.astype(bf16), w_exp_ref[...], preferred_element_type=f32)
    h_exp = _swish(h_exp + b_exp_ref[...])                        # [P, c_mid] f32

    # ---- depthwise 3x3 (stride 1, pad 1): 9 rolled+masked taps, unrolled f32 MAC ----
    # row r = n_img*h*w + i*w + j ; h, w are powers of two here so use bit ops.
    w_dw = w_dw_ref[...]                                          # [9, c_mid] (BN folded)
    row = lax.broadcasted_iota(jnp.int32, (P, 1), 0)
    lw = int(math.log2(w))
    jj = jnp.bitwise_and(row, w - 1)
    ii = jnp.bitwise_and(jnp.right_shift(row, lw), h - 1)
    acc = jnp.zeros((P, c_mid), f32)
    for kh in range(3):
        for kw in range(3):
            dy, dx = kh - 1, kw - 1
            s = dy * w + dx
            tap = h_exp if s == 0 else pltpu.roll(h_exp, shift=(-s) % P, axis=0)
            valid = ((ii + dy >= 0) & (ii + dy < h) &
                     (jj + dx >= 0) & (jj + dx < w))
            maskf = valid.astype(f32)                             # [P, 1]
            acc = acc + tap * maskf * w_dw[kh * 3 + kw]
    h_dw = _swish(acc + b_dw_ref[...])                            # [P, c_mid] f32

    # ---- squeeze-and-excite (tiny, all in VMEM) ----
    se = jnp.dot(pool_ref[...], h_dw, preferred_element_type=f32)           # [n, c_mid]
    se = _swish(jnp.dot(se, w_se1_ref[...], preferred_element_type=f32) + b_se1_ref[...])
    se = jax.nn.sigmoid(jnp.dot(se, w_se2_ref[...], preferred_element_type=f32)
                        + b_se2_ref[...])                                    # [n, c_mid]
    se_rows = jnp.dot(bcast_ref[...], se, preferred_element_type=f32)        # [P, c_mid]
    gated = h_dw * se_rows

    # ---- project 1x1 + BN (no activation) + residual ----
    h_proj = jnp.dot(gated.astype(bf16), w_proj_ref[...], preferred_element_type=f32)
    h_proj = h_proj + b_proj_ref[...] + h_stem                    # [P, 32]

    # ---- conv_head 1x1 + BN + swish ----
    h_head = jnp.dot(h_proj.astype(bf16), w_head_ref[...], preferred_element_type=f32)
    h_head = _swish(h_head + b_head_ref[...])                     # [P, c_mid]

    # ---- adaptive avg pool (dropout = identity in eval) ----
    pooled = jnp.dot(pool_ref[...], h_head, preferred_element_type=f32)      # [n, c_mid]
    out_ref[...] = pooled.astype(out_ref.dtype)


# --------------------------------- JAX glue ---------------------------------

def im2col(x_nhwc, ksize, stride, pad):
    """x: [N,H,W,C] -> patches [N,Ho,Wo,k*k,C] (tap order = (kh, kw) row-major)."""
    x = jnp.pad(x_nhwc, ((0, 0), (pad, pad), (pad, pad), (0, 0)))
    N, H, W, C = x.shape
    Ho = (H - ksize) // stride + 1
    Wo = (W - ksize) // stride + 1
    taps = []
    for i in range(ksize):
        for j in range(ksize):
            taps.append(x[:, i:i + Ho * stride:stride, j:j + Wo * stride:stride, :])
    return jnp.stack(taps, axis=3), Ho, Wo


def bn_fold(gamma, beta, mean, var, eps=1e-3):
    s = gamma / jnp.sqrt(var + eps)
    return s, beta - mean * s


def feature_extractor(x_nchw, params):
    N = x_nchw.shape[0]
    x = jnp.transpose(x_nchw, (0, 2, 3, 1))                       # NCHW -> NHWC
    Cin = x.shape[-1]

    # host-side im2col only for the strided stem conv; pad K = 9*Cin -> 32.
    p, H, W = im2col(x, 3, 2, 1)
    assert (H & (H - 1)) == 0 and (W & (W - 1)) == 0, "kernel assumes power-of-2 H,W"
    P = N * H * W
    S = H * W
    K = 9 * Cin
    Kp = max(32, -(-K // 8) * 8)
    a_stem = jnp.pad(p.reshape(P, K), ((0, 0), (0, Kp - K))).astype(jnp.bfloat16)

    # fold BN scale into conv weights (inference), keep biases in f32
    def fold(wm, bn, dtype=jnp.bfloat16):
        s, b = bn_fold(*bn)
        return (wm * s[None, :]).astype(dtype), b.reshape(1, -1).astype(jnp.float32)

    w_stem, b_stem = fold(jnp.pad(params["stem_w"], ((0, Kp - K), (0, 0))), params["bn0"])
    w_exp, b_exp = fold(params["w_exp"], params["bn_exp"])
    w_dw, b_dw = fold(params["w_dw"], params["bn_dw"], dtype=jnp.float32)  # VPU path: f32
    w_proj, b_proj = fold(params["w_proj"], params["bn_proj"])
    w_head, b_head = fold(params["w_head"], params["bn1"])
    w_se1 = params["w_se1"].astype(jnp.float32)
    b_se1 = params["b_se1"].reshape(1, -1).astype(jnp.float32)
    w_se2 = params["w_se2"].astype(jnp.float32)
    b_se2 = params["b_se2"].reshape(1, -1).astype(jnp.float32)

    # constant pooling / broadcast matrices: pool_m[n, r] = 1/S if row r in image n,
    # bcast_m = S * pool_m.T  (row -> image one-hot).
    eye_rep = jnp.repeat(jnp.eye(N, dtype=jnp.float32), S, axis=1)          # [N, P]
    pool_m = eye_rep / S
    bcast_m = eye_rep.T                                                     # [P, N]

    args = (a_stem, w_stem, b_stem, w_exp, b_exp, w_dw, b_dw,
            w_se1, b_se1, w_se2, b_se2, w_proj, b_proj, w_head, b_head,
            pool_m, bcast_m)

    def fs(arr):
        nd = arr.ndim
        return pl.BlockSpec(arr.shape, lambda i, nd=nd: (0,) * nd)

    pooled = pl.pallas_call(
        functools.partial(fused_feature_kernel, n=N, h=H, w=W, c_mid=C_MID),
        out_shape=jax.ShapeDtypeStruct((N, C_MID), jnp.float32),
        grid=(1,),
        in_specs=[fs(a) for a in args],
        out_specs=pl.BlockSpec((N, C_MID), lambda i: (0, 0)),
        compiler_params=pltpu.CompilerParams(dimension_semantics=("arbitrary",)),
    )(*args)

    return pooled.reshape(N, C_MID, 1, 1)                         # NCHW, [N, C, 1, 1]


# --------------------------- deterministic params ---------------------------

def init_params(key):
    ks = jax.random.split(key, 16)

    def w(k, shape, scale=0.1):
        return scale * jax.random.normal(k, shape, jnp.float32)

    def bn(k, c):
        k1, k2, k3, k4 = jax.random.split(k, 4)
        gamma = 1.0 + 0.1 * jax.random.normal(k1, (c,), jnp.float32)
        beta = 0.1 * jax.random.normal(k2, (c,), jnp.float32)
        mean = 0.1 * jax.random.normal(k3, (c,), jnp.float32)
        var = jnp.abs(jax.random.normal(k4, (c,), jnp.float32)) + 0.5
        return gamma, beta, mean, var

    return {
        "stem_w": w(ks[0], (27, C_STEM)),     # [kh*kw*Cin, Cout]
        "bn0": bn(ks[1], C_STEM),
        "w_exp": w(ks[2], (C_STEM, C_MID)),   # 1x1 expand
        "bn_exp": bn(ks[3], C_MID),
        "w_dw": w(ks[4], (9, C_MID)),         # depthwise taps [kh*kw, C]
        "bn_dw": bn(ks[5], C_MID),
        "w_se1": w(ks[6], (C_MID, C_SE)),
        "b_se1": w(ks[7], (C_SE,)),
        "w_se2": w(ks[8], (C_SE, C_MID)),
        "b_se2": w(ks[9], (C_MID,)),
        "w_proj": w(ks[10], (C_MID, C_STEM)),
        "bn_proj": bn(ks[11], C_STEM),
        "w_head": w(ks[12], (C_STEM, C_MID)),  # 1x1 conv_head
        "bn1": bn(ks[13], C_MID),
    }


if __name__ == "__main__":
    key = jax.random.PRNGKey(0)
    kp, kx = jax.random.split(key)
    params = init_params(kp)
    x = jax.random.normal(kx, (2, 3, 16, 16), jnp.float32)  # NCHW, like PyTorch input

    fn = jax.jit(lambda xx: feature_extractor(xx, params))
    out = fn(x)
    jax.block_until_ready(out)
    assert out.shape == (2, C_MID, 1, 1), out.shape
    assert bool(jnp.all(jnp.isfinite(out)))
    print("KERNEL_OK")
</pallas_src>

<mosaic_0001>
module attributes {stable_mosaic.version = 11 : i64} {
  func.func @fused_feature_kernel(%arg0: i32, %arg1: memref<128x32xbf16, #tpu.memory_space<vmem>>, %arg2: memref<32x32xbf16, #tpu.memory_space<vmem>>, %arg3: memref<1x32xf32, #tpu.memory_space<vmem>>, %arg4: memref<32x128xbf16, #tpu.memory_space<vmem>>, %arg5: memref<1x128xf32, #tpu.memory_space<vmem>>, %arg6: memref<9x128xf32, #tpu.memory_space<vmem>>, %arg7: memref<1x128xf32, #tpu.memory_space<vmem>>, %arg8: memref<128x8xf32, #tpu.memory_space<vmem>>, %arg9: memref<1x8xf32, #tpu.memory_space<vmem>>, %arg10: memref<8x128xf32, #tpu.memory_space<vmem>>, %arg11: memref<1x128xf32, #tpu.memory_space<vmem>>, %arg12: memref<128x32xbf16, #tpu.memory_space<vmem>>, %arg13: memref<1x32xf32, #tpu.memory_space<vmem>>, %arg14: memref<32x128xbf16, #tpu.memory_space<vmem>>, %arg15: memref<1x128xf32, #tpu.memory_space<vmem>>, %arg16: memref<2x128xf32, #tpu.memory_space<vmem>>, %arg17: memref<128x2xf32, #tpu.memory_space<vmem>>, %arg18: memref<2x128xf32, #tpu.memory_space<vmem>>) attributes {dimension_semantics = [#tpu.dimension_semantics<arbitrary>], iteration_bounds = array<i64: 1>, scalar_prefetch = 0 : i64, scratch_operands = 0 : i64, tpu.core_type = #tpu.core_type<tc>, window_params = [{pipeline_mode = #tpu.pipeline_mode<synchronous>, transform_indices = @transform_0, window_bounds = array<i64: 128, 32>}, {pipeline_mode = #tpu.pipeline_mode<synchronous>, transform_indices = @transform_1, window_bounds = array<i64: 32, 32>}, {pipeline_mode = #tpu.pipeline_mode<synchronous>, transform_indices = @transform_2, window_bounds = array<i64: 1, 32>}, {pipeline_mode = #tpu.pipeline_mode<synchronous>, transform_indices = @transform_3, window_bounds = array<i64: 32, 128>}, {pipeline_mode = #tpu.pipeline_mode<synchronous>, transform_indices = @transform_4, window_bounds = array<i64: 1, 128>}, {pipeline_mode = #tpu.pipeline_mode<synchronous>, transform_indices = @transform_5, window_bounds = array<i64: 9, 128>}, {pipeline_mode = #tpu.pipeline_mode<synchronous>, transform_indices = @transform_6, window_bounds = array<i64: 1, 128>}, {pipeline_mode = #tpu.pipeline_mode<synchronous>, transform_indices = @transform_7, window_bounds = array<i64: 128, 8>}, {pipeline_mode = #tpu.pipeline_mode<synchronous>, transform_indices = @transform_8, window_bounds = array<i64: 1, 8>}, {pipeline_mode = #tpu.pipeline_mode<synchronous>, transform_indices = @transform_9, window_bounds = array<i64: 8, 128>}, {pipeline_mode = #tpu.pipeline_mode<synchronous>, transform_indices = @transform_10, window_bounds = array<i64: 1, 128>}, {pipeline_mode = #tpu.pipeline_mode<synchronous>, transform_indices = @transform_11, window_bounds = array<i64: 128, 32>}, {pipeline_mode = #tpu.pipeline_mode<synchronous>, transform_indices = @transform_12, window_bounds = array<i64: 1, 32>}, {pipeline_mode = #tpu.pipeline_mode<synchronous>, transform_indices = @transform_13, window_bounds = array<i64: 32, 128>}, {pipeline_mode = #tpu.pipeline_mode<synchronous>, transform_indices = @transform_14, window_bounds = array<i64: 1, 128>}, {pipeline_mode = #tpu.pipeline_mode<synchronous>, transform_indices = @transform_15, window_bounds = array<i64: 2, 128>}, {pipeline_mode = #tpu.pipeline_mode<synchronous>, transform_indices = @transform_16, window_bounds = array<i64: 128, 2>}, {pipeline_mode = #tpu.pipeline_mode<synchronous>, transform_indices = @transform_17, window_bounds = array<i64: 2, 128>}]} {
    %c0 = arith.constant 0 : index
    %c0_0 = arith.constant 0 : index
    %0 = vector.load %arg1[%c0, %c0_0] : memref<128x32xbf16, #tpu.memory_space<vmem>>, vector<128x32xbf16>
    %c0_1 = arith.constant 0 : index
    %c0_2 = arith.constant 0 : index
    %1 = vector.load %arg2[%c0_1, %c0_2] : memref<32x32xbf16, #tpu.memory_space<vmem>>, vector<32x32xbf16>
    %cst = arith.constant dense<0.000000e+00> : vector<128x32xf32>
    %2 = tpu.matmul %0, %1, %cst {dimension_numbers = #tpu.dot_dimension_numbers<[1], [0], [0], [1], [0, 0, 1, 1], [], []>} : vector<128x32xbf16>, vector<32x32xbf16>, vector<128x32xf32> -> vector<128x32xf32>
    %c0_3 = arith.constant 0 : index
    %c0_4 = arith.constant 0 : index
    %3 = vector.load %arg3[%c0_3, %c0_4] : memref<1x32xf32, #tpu.memory_space<vmem>>, vector<1x32xf32>
    %4 = vector.broadcast %3 : vector<1x32xf32> to vector<128x32xf32>
    %5 = arith.addf %2, %4 : vector<128x32xf32>
    %6 = arith.negf %5 : vector<128x32xf32>
    %7 = math.exp %6 : vector<128x32xf32>
    %cst_5 = arith.constant 1.000000e+00 : f32
    %8 = vector.broadcast %cst_5 : f32 to vector<128x32xf32>
    %9 = arith.addf %8, %7 : vector<128x32xf32>
    %10 = arith.divf %8, %9 : vector<128x32xf32>
    %11 = arith.mulf %5, %10 : vector<128x32xf32>
    %12 = arith.truncf %11 : vector<128x32xf32> to vector<128x32xbf16>
    %c0_6 = arith.constant 0 : index
    %c0_7 = arith.constant 0 : index
    %13 = vector.load %arg4[%c0_6, %c0_7] : memref<32x128xbf16, #tpu.memory_space<vmem>>, vector<32x128xbf16>
    %cst_8 = arith.constant dense<0.000000e+00> : vector<128x128xf32>
    %14 = tpu.matmul %12, %13, %cst_8 {dimension_numbers = #tpu.dot_dimension_numbers<[1], [0], [0], [1], [0, 0, 1, 1], [], []>} : vector<128x32xbf16>, vector<32x128xbf16>, vector<128x128xf32> -> vector<128x128xf32>
    %c0_9 = arith.constant 0 : index
    %c0_10 = arith.constant 0 : index
    %15 = vector.load %arg5[%c0_9, %c0_10] : memref<1x128xf32, #tpu.memory_space<vmem>>, vector<1x128xf32>
    %16 = vector.broadcast %15 : vector<1x128xf32> to vector<128x128xf32>
    %17 = arith.addf %14, %16 : vector<128x128xf32>
    %18 = arith.negf %17 : vector<128x128xf32>
    %19 = math.exp %18 : vector<128x128xf32>
    %cst_11 = arith.constant 1.000000e+00 : f32
    %20 = vector.broadcast %cst_11 : f32 to vector<128x128xf32>
    %21 = arith.addf %20, %19 : vector<128x128xf32>
    %22 = arith.divf %20, %21 : vector<128x128xf32>
    %23 = arith.mulf %17, %22 : vector<128x128xf32>
    %c0_12 = arith.constant 0 : index
    %c0_13 = arith.constant 0 : index
    %24 = vector.load %arg6[%c0_12, %c0_13] : memref<9x128xf32, #tpu.memory_space<vmem>>, vector<9x128xf32>
    %25 = tpu.iota {dimensions = array<i32: 0>} : vector<128x1xi32>
    %c7_i32 = arith.constant 7 : i32
    %26 = vector.broadcast %c7_i32 : i32 to vector<128x1xi32>
    %27 = arith.andi %25, %26 : vector<128x1xi32>
    %c3_i32 = arith.constant 3 : i32
    %28 = vector.broadcast %c3_i32 : i32 to vector<128x1xi32>
    %29 = arith.shrsi %25, %28 : vector<128x1xi32>
    %c7_i32_14 = arith.constant 7 : i32
    %30 = vector.broadcast %c7_i32_14 : i32 to vector<128x1xi32>
    %31 = arith.andi %29, %30 : vector<128x1xi32>
    %cst_15 = arith.constant 0.000000e+00 : f32
    %32 = vector.broadcast %cst_15 : f32 to vector<128x128xf32>
    %c9_i32 = arith.constant 9 : i32
    %33 = tpu.dynamic_rotate %23 by %c9_i32 dim 0 : vector<128x128xf32>, i32 -> vector<128x128xf32>
    %c-1_i32 = arith.constant -1 : i32
    %34 = vector.broadcast %c-1_i32 : i32 to vector<128x1xi32>
    %35 = arith.addi %31, %34 : vector<128x1xi32>
    %c0_i32 = arith.constant 0 : i32
    %36 = vector.broadcast %c0_i32 : i32 to vector<128x1xi32>
    %37 = arith.cmpi sge, %35, %36 : vector<128x1xi32>
    %c-1_i32_16 = arith.constant -1 : i32
    %38 = vector.broadcast %c-1_i32_16 : i32 to vector<128x1xi32>
    %39 = arith.addi %31, %38 : vector<128x1xi32>
    %c8_i32 = arith.constant 8 : i32
    %40 = vector.broadcast %c8_i32 : i32 to vector<128x1xi32>
    %41 = arith.cmpi slt, %39, %40 : vector<128x1xi32>
    %42 = arith.andi %37, %41 : vector<128x1xi1>
    %c-1_i32_17 = arith.constant -1 : i32
    %43 = vector.broadcast %c-1_i32_17 : i32 to vector<128x1xi32>
    %44 = arith.addi %27, %43 : vector<128x1xi32>
    %c0_i32_18 = arith.constant 0 : i32
    %45 = vector.broadcast %c0_i32_18 : i32 to vector<128x1xi32>
    %46 = arith.cmpi sge, %44, %45 : vector<128x1xi32>
    %47 = arith.andi %42, %46 : vector<128x1xi1>
    %c-1_i32_19 = arith.constant -1 : i32
    %48 = vector.broadcast %c-1_i32_19 : i32 to vector<128x1xi32>
    %49 = arith.addi %27, %48 : vector<128x1xi32>
    %c8_i32_20 = arith.constant 8 : i32
    %50 = vector.broadcast %c8_i32_20 : i32 to vector<128x1xi32>
    %51 = arith.cmpi slt, %49, %50 : vector<128x1xi32>
    %52 = arith.andi %47, %51 : vector<128x1xi1>
    %53 = arith.extui %52 : vector<128x1xi1> to vector<128x1xi32>
    %54 = arith.sitofp %53 : vector<128x1xi32> to vector<128x1xf32>
    %55 = vector.broadcast %54 : vector<128x1xf32> to vector<128x128xf32>
    %56 = arith.mulf %33, %55 : vector<128x128xf32>
    %57 = vector.extract_strided_slice %24 {offsets = [0, 0], sizes = [1, 128], strides = [1, 1]} : vector<9x128xf32> to vector<1x128xf32>
    %58 = vector.shape_cast %57 : vector<1x128xf32> to vector<128xf32>
    %59 = vector.shape_cast %58 : vector<128xf32> to vector<1x128xf32>
    %60 = vector.broadcast %59 : vector<1x128xf32> to vector<128x128xf32>
    %61 = arith.mulf %56, %60 : vector<128x128xf32>
    %62 = arith.addf %32, %61 : vector<128x128xf32>
    %c8_i32_21 = arith.constant 8 : i32
    %63 = tpu.dynamic_rotate %23 by %c8_i32_21 dim 0 : vector<128x128xf32>, i32 -> vector<128x128xf32>
    %c-1_i32_22 = arith.constant -1 : i32
    %64 = vector.broadcast %c-1_i32_22 : i32 to vector<128x1xi32>
    %65 = arith.addi %31, %64 : vector<128x1xi32>
    %c0_i32_23 = arith.constant 0 : i32
    %66 = vector.broadcast %c0_i32_23 : i32 to vector<128x1xi32>
    %67 = arith.cmpi sge, %65, %66 : vector<128x1xi32>
    %c-1_i32_24 = arith.constant -1 : i32
    %68 = vector.broadcast %c-1_i32_24 : i32 to vector<128x1xi32>
    %69 = arith.addi %31, %68 : vector<128x1xi32>
    %c8_i32_25 = arith.constant 8 : i32
    %70 = vector.broadcast %c8_i32_25 : i32 to vector<128x1xi32>
    %71 = arith.cmpi slt, %69, %70 : vector<128x1xi32>
    %72 = arith.andi %67, %71 : vector<128x1xi1>
    %c0_i32_26 = arith.constant 0 : i32
    %73 = vector.broadcast %c0_i32_26 : i32 to vector<128x1xi32>
    %74 = arith.addi %27, %73 : vector<128x1xi32>
    %c0_i32_27 = arith.constant 0 : i32
    %75 = vector.broadcast %c0_i32_27 : i32 to vector<128x1xi32>
    %76 = arith.cmpi sge, %74, %75 : vector<128x1xi32>
    %77 = arith.andi %72, %76 : vector<128x1xi1>
    %c0_i32_28 = arith.constant 0 : i32
    %78 = vector.broadcast %c0_i32_28 : i32 to vector<128x1xi32>
    %79 = arith.addi %27, %78 : vector<128x1xi32>
    %c8_i32_29 = arith.constant 8 : i32
    %80 = vector.broadcast %c8_i32_29 : i32 to vector<128x1xi32>
    %81 = arith.cmpi slt, %79, %80 : vector<128x1xi32>
    %82 = arith.andi %77, %81 : vector<128x1xi1>
    %83 = arith.extui %82 : vector<128x1xi1> to vector<128x1xi32>
    %84 = arith.sitofp %83 : vector<128x1xi32> to vector<128x1xf32>
    %85 = vector.broadcast %84 : vector<128x1xf32> to vector<128x128xf32>
    %86 = arith.mulf %63, %85 : vector<128x128xf32>
    %87 = vector.extract_strided_slice %24 {offsets = [1, 0], sizes = [1, 128], strides = [1, 1]} : vector<9x128xf32> to vector<1x128xf32>
    %88 = vector.shape_cast %87 : vector<1x128xf32> to vector<128xf32>
    %89 = vector.shape_cast %88 : vector<128xf32> to vector<1x128xf32>
    %90 = vector.broadcast %89 : vector<1x128xf32> to vector<128x128xf32>
    %91 = arith.mulf %86, %90 : vector<128x128xf32>
    %92 = arith.addf %62, %91 : vector<128x128xf32>
    %c7_i32_30 = arith.constant 7 : i32
    %93 = tpu.dynamic_rotate %23 by %c7_i32_30 dim 0 : vector<128x128xf32>, i32 -> vector<128x128xf32>
    %c-1_i32_31 = arith.constant -1 : i32
    %94 = vector.broadcast %c-1_i32_31 : i32 to vector<128x1xi32>
    %95 = arith.addi %31, %94 : vector<128x1xi32>
    %c0_i32_32 = arith.constant 0 : i32
    %96 = vector.broadcast %c0_i32_32 : i32 to vector<128x1xi32>
    %97 = arith.cmpi sge, %95, %96 : vector<128x1xi32>
    %c-1_i32_33 = arith.constant -1 : i32
    %98 = vector.broadcast %c-1_i32_33 : i32 to vector<128x1xi32>
    %99 = arith.addi %31, %98 : vector<128x1xi32>
    %c8_i32_34 = arith.constant 8 : i32
    %100 = vector.broadcast %c8_i32_34 : i32 to vector<128x1xi32>
    %101 = arith.cmpi slt, %99, %100 : vector<128x1xi32>
    %102 = arith.andi %97, %101 : vector<128x1xi1>
    %c1_i32 = arith.constant 1 : i32
    %103 = vector.broadcast %c1_i32 : i32 to vector<128x1xi32>
    %104 = arith.addi %27, %103 : vector<128x1xi32>
    %c0_i32_35 = arith.constant 0 : i32
    %105 = vector.broadcast %c0_i32_35 : i32 to vector<128x1xi32>
    %106 = arith.cmpi sge, %104, %105 : vector<128x1xi32>
    %107 = arith.andi %102, %106 : vector<128x1xi1>
    %c1_i32_36 = arith.constant 1 : i32
    %108 = vector.broadcast %c1_i32_36 : i32 to vector<128x1xi32>
    %109 = arith.addi %27, %108 : vector<128x1xi32>
    %c8_i32_37 = arith.constant 8 : i32
    %110 = vector.broadcast %c8_i32_37 : i32 to vector<128x1xi32>
    %111 = arith.cmpi slt, %109, %110 : vector<128x1xi32>
    %112 = arith.andi %107, %111 : vector<128x1xi1>
    %113 = arith.extui %112 : vector<128x1xi1> to vector<128x1xi32>
    %114 = arith.sitofp %113 : vector<128x1xi32> to vector<128x1xf32>
    %115 = vector.broadcast %114 : vector<128x1xf32> to vector<128x128xf32>
    %116 = arith.mulf %93, %115 : vector<128x128xf32>
    %117 = vector.extract_strided_slice %24 {offsets = [2, 0], sizes = [1, 128], strides = [1, 1]} : vector<9x128xf32> to vector<1x128xf32>
    %118 = vector.shape_cast %117 : vector<1x128xf32> to vector<128xf32>
    %119 = vector.shape_cast %118 : vector<128xf32> to vector<1x128xf32>
    %120 = vector.broadcast %119 : vector<1x128xf32> to vector<128x128xf32>
    %121 = arith.mulf %116, %120 : vector<128x128xf32>
    %122 = arith.addf %92, %121 : vector<128x128xf32>
    %c1_i32_38 = arith.constant 1 : i32
    %123 = tpu.dynamic_rotate %23 by %c1_i32_38 dim 0 : vector<128x128xf32>, i32 -> vector<128x128xf32>
    %c0_i32_39 = arith.constant 0 : i32
    %124 = vector.broadcast %c0_i32_39 : i32 to vector<128x1xi32>
    %125 = arith.addi %31, %124 : vector<128x1xi32>
    %c0_i32_40 = arith.constant 0 : i32
    %126 = vector.broadcast %c0_i32_40 : i32 to vector<128x1xi32>
    %127 = arith.cmpi sge, %125, %126 : vector<128x1xi32>
    %c0_i32_41 = arith.constant 0 : i32
    %128 = vector.broadcast %c0_i32_41 : i32 to vector<128x1xi32>
    %129 = arith.addi %31, %128 : vector<128x1xi32>
    %c8_i32_42 = arith.constant 8 : i32
    %130 = vector.broadcast %c8_i32_42 : i32 to vector<128x1xi32>
    %131 = arith.cmpi slt, %129, %130 : vector<128x1xi32>
    %132 = arith.andi %127, %131 : vector<128x1xi1>
    %c-1_i32_43 = arith.constant -1 : i32
    %133 = vector.broadcast %c-1_i32_43 : i32 to vector<128x1xi32>
    %134 = arith.addi %27, %133 : vector<128x1xi32>
    %c0_i32_44 = arith.constant 0 : i32
    %135 = vector.broadcast %c0_i32_44 : i32 to vector<128x1xi32>
    %136 = arith.cmpi sge, %134, %135 : vector<128x1xi32>
    %137 = arith.andi %132, %136 : vector<128x1xi1>
    %c-1_i32_45 = arith.constant -1 : i32
    %138 = vector.broadcast %c-1_i32_45 : i32 to vector<128x1xi32>
    %139 = arith.addi %27, %138 : vector<128x1xi32>
    %c8_i32_46 = arith.constant 8 : i32
    %140 = vector.broadcast %c8_i32_46 : i32 to vector<128x1xi32>
    %141 = arith.cmpi slt, %139, %140 : vector<128x1xi32>
    %142 = arith.andi %137, %141 : vector<128x1xi1>
    %143 = arith.extui %142 : vector<128x1xi1> to vector<128x1xi32>
    %144 = arith.sitofp %143 : vector<128x1xi32> to vector<128x1xf32>
    %145 = vector.broadcast %144 : vector<128x1xf32> to vector<128x128xf32>
    %146 = arith.mulf %123, %145 : vector<128x128xf32>
    %147 = vector.extract_strided_slice %24 {offsets = [3, 0], sizes = [1, 128], strides = [1, 1]} : vector<9x128xf32> to vector<1x128xf32>
    %148 = vector.shape_cast %147 : vector<1x128xf32> to vector<128xf32>
    %149 = vector.shape_cast %148 : vector<128xf32> to vector<1x128xf32>
    %150 = vector.broadcast %149 : vector<1x128xf32> to vector<128x128xf32>
    %151 = arith.mulf %146, %150 : vector<128x128xf32>
    %152 = arith.addf %122, %151 : vector<128x128xf32>
    %c0_i32_47 = arith.constant 0 : i32
    %153 = vector.broadcast %c0_i32_47 : i32 to vector<128x1xi32>
    %154 = arith.addi %31, %153 : vector<128x1xi32>
    %c0_i32_48 = arith.constant 0 : i32
    %155 = vector.broadcast %c0_i32_48 : i32 to vector<128x1xi32>
    %156 = arith.cmpi sge, %154, %155 : vector<128x1xi32>
    %c0_i32_49 = arith.constant 0 : i32
    %157 = vector.broadcast %c0_i32_49 : i32 to vector<128x1xi32>
    %158 = arith.addi %31, %157 : vector<128x1xi32>
    %c8_i32_50 = arith.constant 8 : i32
    %159 = vector.broadcast %c8_i32_50 : i32 to vector<128x1xi32>
    %160 = arith.cmpi slt, %158, %159 : vector<128x1xi32>
    %161 = arith.andi %156, %160 : vector<128x1xi1>
    %c0_i32_51 = arith.constant 0 : i32
    %162 = vector.broadcast %c0_i32_51 : i32 to vector<128x1xi32>
    %163 = arith.addi %27, %162 : vector<128x1xi32>
    %c0_i32_52 = arith.constant 0 : i32
    %164 = vector.broadcast %c0_i32_52 : i32 to vector<128x1xi32>
    %165 = arith.cmpi sge, %163, %164 : vector<128x1xi32>
    %166 = arith.andi %161, %165 : vector<128x1xi1>
    %c0_i32_53 = arith.constant 0 : i32
    %167 = vector.broadcast %c0_i32_53 : i32 to vector<128x1xi32>
    %168 = arith.addi %27, %167 : vector<128x1xi32>
    %c8_i32_54 = arith.constant 8 : i32
    %169 = vector.broadcast %c8_i32_54 : i32 to vector<128x1xi32>
    %170 = arith.cmpi slt, %168, %169 : vector<128x1xi32>
    %171 = arith.andi %166, %170 : vector<128x1xi1>
    %172 = arith.extui %171 : vector<128x1xi1> to vector<128x1xi32>
    %173 = arith.sitofp %172 : vector<128x1xi32> to vector<128x1xf32>
    %174 = vector.broadcast %173 : vector<128x1xf32> to vector<128x128xf32>
    %175 = arith.mulf %23, %174 : vector<128x128xf32>
    %176 = vector.extract_strided_slice %24 {offsets = [4, 0], sizes = [1, 128], strides = [1, 1]} : vector<9x128xf32> to vector<1x128xf32>
    %177 = vector.shape_cast %176 : vector<1x128xf32> to vector<128xf32>
    %178 = vector.shape_cast %177 : vector<128xf32> to vector<1x128xf32>
    %179 = vector.broadcast %178 : vector<1x128xf32> to vector<128x128xf32>
    %180 = arith.mulf %175, %179 : vector<128x128xf32>
    %181 = arith.addf %152, %180 : vector<128x128xf32>
    %c127_i32 = arith.constant 127 : i32
    %182 = tpu.dynamic_rotate %23 by %c127_i32 dim 0 : vector<128x128xf32>, i32 -> vector<128x128xf32>
    %c0_i32_55 = arith.constant 0 : i32
    %183 = vector.broadcast %c0_i32_55 : i32 to vector<128x1xi32>
    %184 = arith.addi %31, %183 : vector<128x1xi32>
    %c0_i32_56 = arith.constant 0 : i32
    %185 = vector.broadcast %c0_i32_56 : i32 to vector<128x1xi32>
    %186 = arith.cmpi sge, %184, %185 : vector<128x1xi32>
    %c0_i32_57 = arith.constant 0 : i32
    %187 = vector.broadcast %c0_i32_57 : i32 to vector<128x1xi32>
    %188 = arith.addi %31, %187 : vector<128x1xi32>
    %c8_i32_58 = arith.constant 8 : i32
    %189 = vector.broadcast %c8_i32_58 : i32 to vector<128x1xi32>
    %190 = arith.cmpi slt, %188, %189 : vector<128x1xi32>
    %191 = arith.andi %186, %190 : vector<128x1xi1>
    %c1_i32_59 = arith.constant 1 : i32
    %192 = vector.broadcast %c1_i32_59 : i32 to vector<128x1xi32>
    %193 = arith.addi %27, %192 : vector<128x1xi32>
    %c0_i32_60 = arith.constant 0 : i32
    %194 = vector.broadcast %c0_i32_60 : i32 to vector<128x1xi32>
    %195 = arith.cmpi sge, %193, %194 : vector<128x1xi32>
    %196 = arith.andi %191, %195 : vector<128x1xi1>
    %c1_i32_61 = arith.constant 1 : i32
    %197 = vector.broadcast %c1_i32_61 : i32 to vector<128x1xi32>
    %198 = arith.addi %27, %197 : vector<128x1xi32>
    %c8_i32_62 = arith.constant 8 : i32
    %199 = vector.broadcast %c8_i32_62 : i32 to vector<128x1xi32>
    %200 = arith.cmpi slt, %198, %199 : vector<128x1xi32>
    %201 = arith.andi %196, %200 : vector<128x1xi1>
    %202 = arith.extui %201 : vector<128x1xi1> to vector<128x1xi32>
    %203 = arith.sitofp %202 : vector<128x1xi32> to vector<128x1xf32>
    %204 = vector.broadcast %203 : vector<128x1xf32> to vector<128x128xf32>
    %205 = arith.mulf %182, %204 : vector<128x128xf32>
    %206 = vector.extract_strided_slice %24 {offsets = [5, 0], sizes = [1, 128], strides = [1, 1]} : vector<9x128xf32> to vector<1x128xf32>
    %207 = vector.shape_cast %206 : vector<1x128xf32> to vector<128xf32>
    %208 = vector.shape_cast %207 : vector<128xf32> to vector<1x128xf32>
    %209 = vector.broadcast %208 : vector<1x128xf32> to vector<128x128xf32>
    %210 = arith.mulf %205, %209 : vector<128x128xf32>
    %211 = arith.addf %181, %210 : vector<128x128xf32>
    %c121_i32 = arith.constant 121 : i32
    %212 = tpu.dynamic_rotate %23 by %c121_i32 dim 0 : vector<128x128xf32>, i32 -> vector<128x128xf32>
    %c1_i32_63 = arith.constant 1 : i32
    %213 = vector.broadcast %c1_i32_63 : i32 to vector<128x1xi32>
    %214 = arith.addi %31, %213 : vector<128x1xi32>
    %c0_i32_64 = arith.constant 0 : i32
    %215 = vector.broadcast %c0_i32_64 : i32 to vector<128x1xi32>
    %216 = arith.cmpi sge, %214, %215 : vector<128x1xi32>
    %c1_i32_65 = arith.constant 1 : i32
    %217 = vector.broadcast %c1_i32_65 : i32 to vector<128x1xi32>
    %218 = arith.addi %31, %217 : vector<128x1xi32>
    %c8_i32_66 = arith.constant 8 : i32
    %219 = vector.broadcast %c8_i32_66 : i32 to vector<128x1xi32>
    %220 = arith.cmpi slt, %218, %219 : vector<128x1xi32>
    %221 = arith.andi %216, %220 : vector<128x1xi1>
    %c-1_i32_67 = arith.constant -1 : i32
    %222 = vector.broadcast %c-1_i32_67 : i32 to vector<128x1xi32>
    %223 = arith.addi %27, %222 : vector<128x1xi32>
    %c0_i32_68 = arith.constant 0 : i32
    %224 = vector.broadcast %c0_i32_68 : i32 to vector<128x1xi32>
    %225 = arith.cmpi sge, %223, %224 : vector<128x1xi32>
    %226 = arith.andi %221, %225 : vector<128x1xi1>
    %c-1_i32_69 = arith.constant -1 : i32
    %227 = vector.broadcast %c-1_i32_69 : i32 to vector<128x1xi32>
    %228 = arith.addi %27, %227 : vector<128x1xi32>
    %c8_i32_70 = arith.constant 8 : i32
    %229 = vector.broadcast %c8_i32_70 : i32 to vector<128x1xi32>
    %230 = arith.cmpi slt, %228, %229 : vector<128x1xi32>
    %231 = arith.andi %226, %230 : vector<128x1xi1>
    %232 = arith.extui %231 : vector<128x1xi1> to vector<128x1xi32>
    %233 = arith.sitofp %232 : vector<128x1xi32> to vector<128x1xf32>
    %234 = vector.broadcast %233 : vector<128x1xf32> to vector<128x128xf32>
    %235 = arith.mulf %212, %234 : vector<128x128xf32>
    %236 = vector.extract_strided_slice %24 {offsets = [6, 0], sizes = [1, 128], strides = [1, 1]} : vector<9x128xf32> to vector<1x128xf32>
    %237 = vector.shape_cast %236 : vector<1x128xf32> to vector<128xf32>
    %238 = vector.shape_cast %237 : vector<128xf32> to vector<1x128xf32>
    %239 = vector.broadcast %238 : vector<1x128xf32> to vector<128x128xf32>
    %240 = arith.mulf %235, %239 : vector<128x128xf32>
    %241 = arith.addf %211, %240 : vector<128x128xf32>
    %c120_i32 = arith.constant 120 : i32
    %242 = tpu.dynamic_rotate %23 by %c120_i32 dim 0 : vector<128x128xf32>, i32 -> vector<128x128xf32>
    %c1_i32_71 = arith.constant 1 : i32
    %243 = vector.broadcast %c1_i32_71 : i32 to vector<128x1xi32>
    %244 = arith.addi %31, %243 : vector<128x1xi32>
    %c0_i32_72 = arith.constant 0 : i32
    %245 = vector.broadcast %c0_i32_72 : i32 to vector<128x1xi32>
    %246 = arith.cmpi sge, %244, %245 : vector<128x1xi32>
    %c1_i32_73 = arith.constant 1 : i32
    %247 = vector.broadcast %c1_i32_73 : i32 to vector<128x1xi32>
    %248 = arith.addi %31, %247 : vector<128x1xi32>
    %c8_i32_74 = arith.constant 8 : i32
    %249 = vector.broadcast %c8_i32_74 : i32 to vector<128x1xi32>
    %250 = arith.cmpi slt, %248, %249 : vector<128x1xi32>
    %251 = arith.andi %246, %250 : vector<128x1xi1>
    %c0_i32_75 = arith.constant 0 : i32
    %252 = vector.broadcast %c0_i32_75 : i32 to vector<128x1xi32>
    %253 = arith.addi %27, %252 : vector<128x1xi32>
    %c0_i32_76 = arith.constant 0 : i32
    %254 = vector.broadcast %c0_i32_76 : i32 to vector<128x1xi32>
    %255 = arith.cmpi sge, %253, %254 : vector<128x1xi32>
    %256 = arith.andi %251, %255 : vector<128x1xi1>
    %c0_i32_77 = arith.constant 0 : i32
    %257 = vector.broadcast %c0_i32_77 : i32 to vector<128x1xi32>
    %258 = arith.addi %27, %257 : vector<128x1xi32>
    %c8_i32_78 = arith.constant 8 : i32
    %259 = vector.broadcast %c8_i32_78 : i32 to vector<128x1xi32>
    %260 = arith.cmpi slt, %258, %259 : vector<128x1xi32>
    %261 = arith.andi %256, %260 : vector<128x1xi1>
    %262 = arith.extui %261 : vector<128x1xi1> to vector<128x1xi32>
    %263 = arith.sitofp %262 : vector<128x1xi32> to vector<128x1xf32>
    %264 = vector.broadcast %263 : vector<128x1xf32> to vector<128x128xf32>
    %265 = arith.mulf %242, %264 : vector<128x128xf32>
    %266 = vector.extract_strided_slice %24 {offsets = [7, 0], sizes = [1, 128], strides = [1, 1]} : vector<9x128xf32> to vector<1x128xf32>
    %267 = vector.shape_cast %266 : vector<1x128xf32> to vector<128xf32>
    %268 = vector.shape_cast %267 : vector<128xf32> to vector<1x128xf32>
    %269 = vector.broadcast %268 : vector<1x128xf32> to vector<128x128xf32>
    %270 = arith.mulf %265, %269 : vector<128x128xf32>
    %271 = arith.addf %241, %270 : vector<128x128xf32>
    %c119_i32 = arith.constant 119 : i32
    %272 = tpu.dynamic_rotate %23 by %c119_i32 dim 0 : vector<128x128xf32>, i32 -> vector<128x128xf32>
    %c1_i32_79 = arith.constant 1 : i32
    %273 = vector.broadcast %c1_i32_79 : i32 to vector<128x1xi32>
    %274 = arith.addi %31, %273 : vector<128x1xi32>
    %c0_i32_80 = arith.constant 0 : i32
    %275 = vector.broadcast %c0_i32_80 : i32 to vector<128x1xi32>
    %276 = arith.cmpi sge, %274, %275 : vector<128x1xi32>
    %c1_i32_81 = arith.constant 1 : i32
    %277 = vector.broadcast %c1_i32_81 : i32 to vector<128x1xi32>
    %278 = arith.addi %31, %277 : vector<128x1xi32>
    %c8_i32_82 = arith.constant 8 : i32
    %279 = vector.broadcast %c8_i32_82 : i32 to vector<128x1xi32>
    %280 = arith.cmpi slt, %278, %279 : vector<128x1xi32>
    %281 = arith.andi %276, %280 : vector<128x1xi1>
    %c1_i32_83 = arith.constant 1 : i32
    %282 = vector.broadcast %c1_i32_83 : i32 to vector<128x1xi32>
    %283 = arith.addi %27, %282 : vector<128x1xi32>
    %c0_i32_84 = arith.constant 0 : i32
    %284 = vector.broadcast %c0_i32_84 : i32 to vector<128x1xi32>
    %285 = arith.cmpi sge, %283, %284 : vector<128x1xi32>
    %286 = arith.andi %281, %285 : vector<128x1xi1>
    %c1_i32_85 = arith.constant 1 : i32
    %287 = vector.broadcast %c1_i32_85 : i32 to vector<128x1xi32>
    %288 = arith.addi %27, %287 : vector<128x1xi32>
    %c8_i32_86 = arith.constant 8 : i32
    %289 = vector.broadcast %c8_i32_86 : i32 to vector<128x1xi32>
    %290 = arith.cmpi slt, %288, %289 : vector<128x1xi32>
    %291 = arith.andi %286, %290 : vector<128x1xi1>
    %292 = arith.extui %291 : vector<128x1xi1> to vector<128x1xi32>
    %293 = arith.sitofp %292 : vector<128x1xi32> to vector<128x1xf32>
    %294 = vector.broadcast %293 : vector<128x1xf32> to vector<128x128xf32>
    %295 = arith.mulf %272, %294 : vector<128x128xf32>
    %296 = vector.extract_strided_slice %24 {offsets = [8, 0], sizes = [1, 128], strides = [1, 1]} : vector<9x128xf32> to vector<1x128xf32>
    %297 = vector.shape_cast %296 : vector<1x128xf32> to vector<128xf32>
    %298 = vector.shape_cast %297 : vector<128xf32> to vector<1x128xf32>
    %299 = vector.broadcast %298 : vector<1x128xf32> to vector<128x128xf32>
    %300 = arith.mulf %295, %299 : vector<128x128xf32>
    %301 = arith.addf %271, %300 : vector<128x128xf32>
    %c0_87 = arith.constant 0 : index
    %c0_88 = arith.constant 0 : index
    %302 = vector.load %arg7[%c0_87, %c0_88] : memref<1x128xf32, #tpu.memory_space<vmem>>, vector<1x128xf32>
    %303 = vector.broadcast %302 : vector<1x128xf32> to vector<128x128xf32>
    %304 = arith.addf %301, %303 : vector<128x128xf32>
    %305 = arith.negf %304 : vector<128x128xf32>
    %306 = math.exp %305 : vector<128x128xf32>
    %cst_89 = arith.constant 1.000000e+00 : f32
    %307 = vector.broadcast %cst_89 : f32 to vector<128x128xf32>
    %308 = arith.addf %307, %306 : vector<128x128xf32>
    %309 = arith.divf %307, %308 : vector<128x128xf32>
    %310 = arith.mulf %304, %309 : vector<128x128xf32>
    %c0_90 = arith.constant 0 : index
    %c0_91 = arith.constant 0 : index
    %311 = vector.load %arg16[%c0_90, %c0_91] : memref<2x128xf32, #tpu.memory_space<vmem>>, vector<2x128xf32>
    %cst_92 = arith.constant dense<0.000000e+00> : vector<2x128xf32>
    %312 = tpu.matmul %311, %310, %cst_92 {dimension_numbers = #tpu.dot_dimension_numbers<[1], [0], [0], [1], [0, 0, 1, 1], [], []>} : vector<2x128xf32>, vector<128x128xf32>, vector<2x128xf32> -> vector<2x128xf32>
    %c0_93 = arith.constant 0 : index
    %c0_94 = arith.constant 0 : index
    %313 = vector.load %arg8[%c0_93, %c0_94] : memref<128x8xf32, #tpu.memory_space<vmem>>, vector<128x8xf32>
    %cst_95 = arith.constant dense<0.000000e+00> : vector<2x8xf32>
    %314 = tpu.matmul %312, %313, %cst_95 {dimension_numbers = #tpu.dot_dimension_numbers<[1], [0], [0], [1], [0, 0, 1, 1], [], []>} : vector<2x128xf32>, vector<128x8xf32>, vector<2x8xf32> -> vector<2x8xf32>
    %c0_96 = arith.constant 0 : index
    %c0_97 = arith.constant 0 : index
    %315 = vector.load %arg9[%c0_96, %c0_97] : memref<1x8xf32, #tpu.memory_space<vmem>>, vector<1x8xf32>
    %316 = vector.broadcast %315 : vector<1x8xf32> to vector<2x8xf32>
    %317 = arith.addf %314, %316 : vector<2x8xf32>
    %318 = arith.negf %317 : vector<2x8xf32>
    %319 = math.exp %318 : vector<2x8xf32>
    %cst_98 = arith.constant 1.000000e+00 : f32
    %320 = vector.broadcast %cst_98 : f32 to vector<2x8xf32>
    %321 = arith.addf %320, %319 : vector<2x8xf32>
    %322 = arith.divf %320, %321 : vector<2x8xf32>
    %323 = arith.mulf %317, %322 : vector<2x8xf32>
    %c0_99 = arith.constant 0 : index
    %c0_100 = arith.constant 0 : index
    %324 = vector.load %arg10[%c0_99, %c0_100] : memref<8x128xf32, #tpu.memory_space<vmem>>, vector<8x128xf32>
    %cst_101 = arith.constant dense<0.000000e+00> : vector<2x128xf32>
    %325 = tpu.matmul %323, %324, %cst_101 {dimension_numbers = #tpu.dot_dimension_numbers<[1], [0], [0], [1], [0, 0, 1, 1], [], []>} : vector<2x8xf32>, vector<8x128xf32>, vector<2x128xf32> -> vector<2x128xf32>
    %c0_102 = arith.constant 0 : index
    %c0_103 = arith.constant 0 : index
    %326 = vector.load %arg11[%c0_102, %c0_103] : memref<1x128xf32, #tpu.memory_space<vmem>>, vector<1x128xf32>
    %327 = vector.broadcast %326 : vector<1x128xf32> to vector<2x128xf32>
    %328 = arith.addf %325, %327 : vector<2x128xf32>
    %329 = arith.negf %328 : vector<2x128xf32>
    %330 = math.exp %329 : vector<2x128xf32>
    %cst_104 = arith.constant 1.000000e+00 : f32
    %331 = vector.broadcast %cst_104 : f32 to vector<2x128xf32>
    %332 = arith.addf %331, %330 : vector<2x128xf32>
    %333 = arith.divf %331, %332 : vector<2x128xf32>
    %c0_105 = arith.constant 0 : index
    %c0_106 = arith.constant 0 : index
    %334 = vector.load %arg17[%c0_105, %c0_106] : memref<128x2xf32, #tpu.memory_space<vmem>>, vector<128x2xf32>
    %cst_107 = arith.constant dense<0.000000e+00> : vector<128x128xf32>
    %335 = tpu.matmul %334, %333, %cst_107 {dimension_numbers = #tpu.dot_dimension_numbers<[1], [0], [0], [1], [0, 0, 1, 1], [], []>} : vector<128x2xf32>, vector<2x128xf32>, vector<128x128xf32> -> vector<128x128xf32>
    %336 = arith.mulf %310, %335 : vector<128x128xf32>
    %337 = arith.truncf %336 : vector<128x128xf32> to vector<128x128xbf16>
    %c0_108 = arith.constant 0 : index
    %c0_109 = arith.constant 0 : index
    %338 = vector.load %arg12[%c0_108, %c0_109] : memref<128x32xbf16, #tpu.memory_space<vmem>>, vector<128x32xbf16>
    %cst_110 = arith.constant dense<0.000000e+00> : vector<128x32xf32>
    %339 = tpu.matmul %337, %338, %cst_110 {dimension_numbers = #tpu.dot_dimension_numbers<[1], [0], [0], [1], [0, 0, 1, 1], [], []>} : vector<128x128xbf16>, vector<128x32xbf16>, vector<128x32xf32> -> vector<128x32xf32>
    %c0_111 = arith.constant 0 : index
    %c0_112 = arith.constant 0 : index
    %340 = vector.load %arg13[%c0_111, %c0_112] : memref<1x32xf32, #tpu.memory_space<vmem>>, vector<1x32xf32>
    %341 = vector.broadcast %340 : vector<1x32xf32> to vector<128x32xf32>
    %342 = arith.addf %339, %341 : vector<128x32xf32>
    %343 = arith.addf %342, %11 : vector<128x32xf32>
    %344 = arith.truncf %343 : vector<128x32xf32> to vector<128x32xbf16>
    %c0_113 = arith.constant 0 : index
    %c0_114 = arith.constant 0 : index
    %345 = vector.load %arg14[%c0_113, %c0_114] : memref<32x128xbf16, #tpu.memory_space<vmem>>, vector<32x128xbf16>
    %cst_115 = arith.constant dense<0.000000e+00> : vector<128x128xf32>
    %346 = tpu.matmul %344, %345, %cst_115 {dimension_numbers = #tpu.dot_dimension_numbers<[1], [0], [0], [1], [0, 0, 1, 1], [], []>} : vector<128x32xbf16>, vector<32x128xbf16>, vector<128x128xf32> -> vector<128x128xf32>
    %c0_116 = arith.constant 0 : index
    %c0_117 = arith.constant 0 : index
    %347 = vector.load %arg15[%c0_116, %c0_117] : memref<1x128xf32, #tpu.memory_space<vmem>>, vector<1x128xf32>
    %348 = vector.broadcast %347 : vector<1x128xf32> to vector<128x128xf32>
    %349 = arith.addf %346, %348 : vector<128x128xf32>
    %350 = arith.negf %349 : vector<128x128xf32>
    %351 = math.exp %350 : vector<128x128xf32>
    %cst_118 = arith.constant 1.000000e+00 : f32
    %352 = vector.broadcast %cst_118 : f32 to vector<128x128xf32>
    %353 = arith.addf %352, %351 : vector<128x128xf32>
    %354 = arith.divf %352, %353 : vector<128x128xf32>
    %355 = arith.mulf %349, %354 : vector<128x128xf32>
    %c0_119 = arith.constant 0 : index
    %c0_120 = arith.constant 0 : index
    %356 = vector.load %arg16[%c0_119, %c0_120] : memref<2x128xf32, #tpu.memory_space<vmem>>, vector<2x128xf32>
    %cst_121 = arith.constant dense<0.000000e+00> : vector<2x128xf32>
    %357 = tpu.matmul %356, %355, %cst_121 {dimension_numbers = #tpu.dot_dimension_numbers<[1], [0], [0], [1], [0, 0, 1, 1], [], []>} : vector<2x128xf32>, vector<128x128xf32>, vector<2x128xf32> -> vector<2x128xf32>
    %c0_122 = arith.constant 0 : index
    %c0_123 = arith.constant 0 : index
    %358 = vector.load %arg18[%c0_122, %c0_123] : memref<2x128xf32, #tpu.memory_space<vmem>>, vector<2x128xf32>
    tpu.vector_store %arg18[%c0_122, %c0_123], %357 {strides = array<i32>} : memref<2x128xf32, #tpu.memory_space<vmem>>, vector<2x128xf32>,
    return
  }
  func.func @transform_0(%arg0: i32) -> (i32, i32) {
    %c0_i32 = arith.constant 0 : i32
    %c0_i32_0 = arith.constant 0 : i32
    %c0_i32_1 = arith.constant 0 : i32
    return %c0_i32, %c0_i32_0 : i32, i32
  }
  func.func @transform_1(%arg0: i32) -> (i32, i32) {
    %c0_i32 = arith.constant 0 : i32
    %c0_i32_0 = arith.constant 0 : i32
    %c0_i32_1 = arith.constant 0 : i32
    return %c0_i32, %c0_i32_0 : i32, i32
  }
  func.func @transform_2(%arg0: i32) -> (i32, i32) {
    %c0_i32 = arith.constant 0 : i32
    %c0_i32_0 = arith.constant 0 : i32
    %c0_i32_1 = arith.constant 0 : i32
    return %c0_i32, %c0_i32_0 : i32, i32
  }
  func.func @transform_3(%arg0: i32) -> (i32, i32) {
    %c0_i32 = arith.constant 0 : i32
    %c0_i32_0 = arith.constant 0 : i32
    %c0_i32_1 = arith.constant 0 : i32
    return %c0_i32, %c0_i32_0 : i32, i32
  }
  func.func @transform_4(%arg0: i32) -> (i32, i32) {
    %c0_i32 = arith.constant 0 : i32
    %c0_i32_0 = arith.constant 0 : i32
    %c0_i32_1 = arith.constant 0 : i32
    return %c0_i32, %c0_i32_0 : i32, i32
  }
  func.func @transform_5(%arg0: i32) -> (i32, i32) {
    %c0_i32 = arith.constant 0 : i32
    %c0_i32_0 = arith.constant 0 : i32
    %c0_i32_1 = arith.constant 0 : i32
    return %c0_i32, %c0_i32_0 : i32, i32
  }
  func.func @transform_6(%arg0: i32) -> (i32, i32) {
    %c0_i32 = arith.constant 0 : i32
    %c0_i32_0 = arith.constant 0 : i32
    %c0_i32_1 = arith.constant 0 : i32
    return %c0_i32, %c0_i32_0 : i32, i32
  }
  func.func @transform_7(%arg0: i32) -> (i32, i32) {
    %c0_i32 = arith.constant 0 : i32
    %c0_i32_0 = arith.constant 0 : i32
    %c0_i32_1 = arith.constant 0 : i32
    return %c0_i32, %c0_i32_0 : i32, i32
  }
  func.func @transform_8(%arg0: i32) -> (i32, i32) {
    %c0_i32 = arith.constant 0 : i32
    %c0_i32_0 = arith.constant 0 : i32
    %c0_i32_1 = arith.constant 0 : i32
    return %c0_i32, %c0_i32_0 : i32, i32
  }
  func.func @transform_9(%arg0: i32) -> (i32, i32) {
    %c0_i32 = arith.constant 0 : i32
    %c0_i32_0 = arith.constant 0 : i32
    %c0_i32_1 = arith.constant 0 : i32
    return %c0_i32, %c0_i32_0 : i32, i32
  }
  func.func @transform_10(%arg0: i32) -> (i32, i32) {
    %c0_i32 = arith.constant 0 : i32
    %c0_i32_0 = arith.constant 0 : i32
    %c0_i32_1 = arith.constant 0 : i32
    return %c0_i32, %c0_i32_0 : i32, i32
  }
  func.func @transform_11(%arg0: i32) -> (i32, i32) {
    %c0_i32 = arith.constant 0 : i32
    %c0_i32_0 = arith.constant 0 : i32
    %c0_i32_1 = arith.constant 0 : i32
    return %c0_i32, %c0_i32_0 : i32, i32
  }
  func.func @transform_12(%arg0: i32) -> (i32, i32) {
    %c0_i32 = arith.constant 0 : i32
    %c0_i32_0 = arith.constant 0 : i32
    %c0_i32_1 = arith.constant 0 : i32
    return %c0_i32, %c0_i32_0 : i32, i32
  }
  func.func @transform_13(%arg0: i32) -> (i32, i32) {
    %c0_i32 = arith.constant 0 : i32
    %c0_i32_0 = arith.constant 0 : i32
    %c0_i32_1 = arith.constant 0 : i32
    return %c0_i32, %c0_i32_0 : i32, i32
  }
  func.func @transform_14(%arg0: i32) -> (i32, i32) {
    %c0_i32 = arith.constant 0 : i32
    %c0_i32_0 = arith.constant 0 : i32
    %c0_i32_1 = arith.constant 0 : i32
    return %c0_i32, %c0_i32_0 : i32, i32
  }
  func.func @transform_15(%arg0: i32) -> (i32, i32) {
    %c0_i32 = arith.constant 0 : i32
    %c0_i32_0 = arith.constant 0 : i32
    %c0_i32_1 = arith.constant 0 : i32
    return %c0_i32, %c0_i32_0 : i32, i32
  }
  func.func @transform_16(%arg0: i32) -> (i32, i32) {
    %c0_i32 = arith.constant 0 : i32
    %c0_i32_0 = arith.constant 0 : i32
    %c0_i32_1 = arith.constant 0 : i32
    return %c0_i32, %c0_i32_0 : i32, i32
  }
  func.func @transform_17(%arg0: i32) -> (i32, i32) {
    %c0_i32 = arith.constant 0 : i32
    %c0_i32_0 = arith.constant 0 : i32
    %c0_i32_1 = arith.constant 0 : i32
    return %c0_i32, %c0_i32_0 : i32, i32
  }
}

</mosaic_0001>

<llo_original>
// kernel: _lambda_.1
$region0: #{_lambda_.1}
  #allocation0 [shape = 'u32[]', space=smem, size = 0x4, offset = 0x4, fixed_abs, tag = 'smem constant byte address 0x4 - core index']
  #allocation1 [shape = 'u32[144,128]{1,0:T(1,128)}', space=vmem, size = 0x12000, scoped, tag = 'internal scratch']
  %s0 = inlined_call_operand.vmem [shape: bf16[128,32], index: 0, kind: input, shape index: {}]
  %s1 = inlined_call_operand.vmem [shape: bf16[32,32], index: 1, kind: input, shape index: {}]
  %s2 = inlined_call_operand.vmem [shape: f32[1,32], index: 2, kind: input, shape index: {}]
  %s3 = inlined_call_operand.vmem [shape: bf16[32,128], index: 3, kind: input, shape index: {}]
  %s4 = inlined_call_operand.vmem [shape: f32[1,128], index: 4, kind: input, shape index: {}]
  %s5 = inlined_call_operand.vmem [shape: f32[9,128], index: 5, kind: input, shape index: {}]
  %s6 = inlined_call_operand.vmem [shape: f32[1,128], index: 6, kind: input, shape index: {}]
  %s7 = inlined_call_operand.vmem [shape: f32[128,8], index: 7, kind: input, shape index: {}]
  %s8 = inlined_call_operand.vmem [shape: f32[1,8], index: 8, kind: input, shape index: {}]
  %s9 = inlined_call_operand.vmem [shape: f32[8,128], index: 9, kind: input, shape index: {}]
  %s10 = inlined_call_operand.vmem [shape: f32[1,128], index: 10, kind: input, shape index: {}]
  %s11 = inlined_call_operand.vmem [shape: bf16[128,32], index: 11, kind: input, shape index: {}]
  %s12 = inlined_call_operand.vmem [shape: f32[1,32], index: 12, kind: input, shape index: {}]
  %s13 = inlined_call_operand.vmem [shape: bf16[32,128], index: 13, kind: input, shape index: {}]
  %s14 = inlined_call_operand.vmem [shape: f32[1,128], index: 14, kind: input, shape index: {}]
  %s15 = inlined_call_operand.vmem [shape: f32[2,128], index: 15, kind: input, shape index: {}]
  %s16 = inlined_call_operand.vmem [shape: f32[128,2], index: 16, kind: input, shape index: {}]
  %s17 = inlined_call_operand.hbm [shape: f32[2,128], index: 17, kind: output, shape index: {}]
  %s18 = sld [smem:[#allocation0]]
  $region78: #{_lambda_.1} parent=0
    _
  %s20 = ssub.s32 1, %s18
  %s21 = scalar_select 0, %s20, %s18
  $region1: #{_lambda_.1} parent=0
    #allocation2 [shape = 'u8[1024]{0}', space=vmem, size = 0x400, scoped, tag = 'output window, operand 0, single buffered']
    #allocation3 [shape = 's32[1]{0}', space=sflag, size = 0x4, scoped, tag = 'scoped memory for _lambda_.1']
    %22 = vsyncpa [#allocation3], 0
    // Predicated region
    $region2: #{_lambda_.1} parent=1 // pred_check
      _
    $region3: #{_lambda_.1} parent=1 // pred_check_branch
      %24 = sbr.rel (0) target = $region5
    $region4: #{_lambda_.1} parent=1 // pred_region
      _
    $region5: #{_lambda_.1} parent=1 // pred_fallthru
      _
    // Predicated region
    $region6: #{_lambda_.1} parent=1 // pred_check
      _
    $region7: #{_lambda_.1} parent=1 // pred_check_branch
      %26 = sbr.rel (0) target = $region9
    $region8: #{_lambda_.1} parent=1 // pred_region
      _
    $region9: #{_lambda_.1} parent=1 // pred_fallthru
      _
    // Predicated region
    $region10: #{_lambda_.1} parent=1 // pred_check
      _
    $region11: #{_lambda_.1} parent=1 // pred_check_branch
      %28 = sbr.rel (0) target = $region13
    $region12: #{_lambda_.1} parent=1 // pred_region
      _
    $region13: #{_lambda_.1} parent=1 // pred_fallthru
      _
    // Predicated region
    $region14: #{_lambda_.1} parent=1 // pred_check
      _
    $region15: #{_lambda_.1} parent=1 // pred_check_branch
      %30 = sbr.rel (0) target = $region17
    $region16: #{_lambda_.1} parent=1 // pred_region
      _
    $region17: #{_lambda_.1} parent=1 // pred_fallthru
      _
    // Predicated region
    $region18: #{_lambda_.1} parent=1 // pred_check
      _
    $region19: #{_lambda_.1} parent=1 // pred_check_branch
      %32 = sbr.rel (0) target = $region21
    $region20: #{_lambda_.1} parent=1 // pred_region
      _
    $region21: #{_lambda_.1} parent=1 // pred_fallthru
      _
    // Predicated region
    $region22: #{_lambda_.1} parent=1 // pred_check
      _
    $region23: #{_lambda_.1} parent=1 // pred_check_branch
      %34 = sbr.rel (0) target = $region25
    $region24: #{_lambda_.1} parent=1 // pred_region
      _
    $region25: #{_lambda_.1} parent=1 // pred_fallthru
      _
    // Predicated region
    $region26: #{_lambda_.1} parent=1 // pred_check
      _
    $region27: #{_lambda_.1} parent=1 // pred_check_branch
      %36 = sbr.rel (0) target = $region29
    $region28: #{_lambda_.1} parent=1 // pred_region
      _
    $region29: #{_lambda_.1} parent=1 // pred_fallthru
      _
    // Predicated region
    $region30: #{_lambda_.1} parent=1 // pred_check
      _
    $region31: #{_lambda_.1} parent=1 // pred_check_branch
      %38 = sbr.rel (0) target = $region33
    $region32: #{_lambda_.1} parent=1 // pred_region
      _
    $region33: #{_lambda_.1} parent=1 // pred_fallthru
      _
    // Predicated region
    $region34: #{_lambda_.1} parent=1 // pred_check
      _
    $region35: #{_lambda_.1} parent=1 // pred_check_branch
      %40 = sbr.rel (0) target = $region37
    $region36: #{_lambda_.1} parent=1 // pred_region
      _
    $region37: #{_lambda_.1} parent=1 // pred_fallthru
      _
    // Predicated region
    $region38: #{_lambda_.1} parent=1 // pred_check
      _
    $region39: #{_lambda_.1} parent=1 // pred_check_branch
      %42 = sbr.rel (0) target = $region41
    $region40: #{_lambda_.1} parent=1 // pred_region
      _
    $region41: #{_lambda_.1} parent=1 // pred_fallthru
      _
    // Predicated region
    $region42: #{_lambda_.1} parent=1 // pred_check
      _
    $region43: #{_lambda_.1} parent=1 // pred_check_branch
      %44 = sbr.rel (0) target = $region45
    $region44: #{_lambda_.1} parent=1 // pred_region
      _
    $region45: #{_lambda_.1} parent=1 // pred_fallthru
      _
    // Predicated region
    $region46: #{_lambda_.1} parent=1 // pred_check
      _
    $region47: #{_lambda_.1} parent=1 // pred_check_branch
      %46 = sbr.rel (0) target = $region49
    $region48: #{_lambda_.1} parent=1 // pred_region
      _
    $region49: #{_lambda_.1} parent=1 // pred_fallthru
      _
    // Predicated region
    $region50: #{_lambda_.1} parent=1 // pred_check
      _
    $region51: #{_lambda_.1} parent=1 // pred_check_branch
      %48 = sbr.rel (0) target = $region53
    $region52: #{_lambda_.1} parent=1 // pred_region
      _
    $region53: #{_lambda_.1} parent=1 // pred_fallthru
      _
    // Predicated region
    $region54: #{_lambda_.1} parent=1 // pred_check
      _
    $region55: #{_lambda_.1} parent=1 // pred_check_branch
      %50 = sbr.rel (0) target = $region57
    $region56: #{_lambda_.1} parent=1 // pred_region
      _
    $region57: #{_lambda_.1} parent=1 // pred_fallthru
      _
    // Predicated region
    $region58: #{_lambda_.1} parent=1 // pred_check
      _
    $region59: #{_lambda_.1} parent=1 // pred_check_branch
      %52 = sbr.rel (0) target = $region61
    $region60: #{_lambda_.1} parent=1 // pred_region
      _
    $region61: #{_lambda_.1} parent=1 // pred_fallthru
      _
    // Predicated region
    $region62: #{_lambda_.1} parent=1 // pred_check
      _
    $region63: #{_lambda_.1} parent=1 // pred_check_branch
      %54 = sbr.rel (0) target = $region65
    $region64: #{_lambda_.1} parent=1 // pred_region
      _
    $region65: #{_lambda_.1} parent=1 // pred_fallthru
      _
    // Predicated region
    $region66: #{_lambda_.1} parent=1 // pred_check
      _
    $region67: #{_lambda_.1} parent=1 // pred_check_branch
      %56 = sbr.rel (0) target = $region69
    $region68: #{_lambda_.1} parent=1 // pred_region
      _
    $region69: #{_lambda_.1} parent=1 // pred_fallthru
      _
    %v58 = vld [vmem:[%s0] sm:$0xf]
    %v59 = vld [vmem:[%s0 + $0x4] sm:$0xf]
    %v60 = vld [vmem:[%s0 + $0x8] sm:$0xf]
    %v61 = vld [vmem:[%s0 + $0xc] sm:$0xf]
    %v62 = vld [vmem:[%s0 + $0x10] sm:$0xf]
    %v63 = vld [vmem:[%s0 + $0x14] sm:$0xf]
    %v64 = vld [vmem:[%s0 + $0x18] sm:$0xf]
    %v65 = vld [vmem:[%s0 + $0x1c] sm:$0xf]
    %v66 = vld [vmem:[%s0 + $0x20] sm:$0xf]
    %v67 = vld [vmem:[%s0 + $0x24] sm:$0xf]
    %v68 = vld [vmem:[%s0 + $0x28] sm:$0xf]
    %v69 = vld [vmem:[%s0 + $0x2c] sm:$0xf]
    %v70 = vld [vmem:[%s0 + $0x30] sm:$0xf]
    %v71 = vld [vmem:[%s0 + $0x34] sm:$0xf]
    %v72 = vld [vmem:[%s0 + $0x38] sm:$0xf]
    %v73 = vld [vmem:[%s0 + $0x3c] sm:$0xf]
    %v74 = vld [vmem:[%s1] sm:$0xf]
    %v75 = vld [vmem:[%s1 + $0x4] sm:$0xf]
    %v76 = vld [vmem:[%s1 + $0x8] sm:$0xf]
    %v77 = vld [vmem:[%s1 + $0xc] sm:$0xf]
    %v78 = vld [vmem:[%s2] sm:$0x1]
    %v80 = vlaneseq
    %v81 = vshrl.u32 %v80, 7
    %v82 = vsub.s32 0, %v81
    %v83 = vrot.slane %v78, %v82
    %v101 = vunpack.c.l.b16 %v58
    %v102 = vunpack.c.l.b16 %v59
    %v103 = vunpack.c.l.b16 %v60
    %v104 = vunpack.c.l.b16 %v61
    %v105 = vunpack.c.l.b16 %v62
    %v106 = vunpack.c.l.b16 %v63
    %v107 = vunpack.c.l.b16 %v64
    %v108 = vunpack.c.l.b16 %v65
    %v109 = vunpack.c.l.b16 %v66
    %v110 = vunpack.c.l.b16 %v67
    %v111 = vunpack.c.l.b16 %v68
    %v112 = vunpack.c.l.b16 %v69
    %v113 = vunpack.c.l.b16 %v70
    %v114 = vunpack.c.l.b16 %v71
    %v115 = vunpack.c.l.b16 %v72
    %v116 = vunpack.c.l.b16 %v73
    %v117 = vpack.c.b16 %v102, %v101
    %v118 = vpack.c.b16 %v104, %v103
    %v119 = vpack.c.b16 %v106, %v105
    %v120 = vpack.c.b16 %v108, %v107
    %v121 = vpack.c.b16 %v110, %v109
    %v122 = vpack.c.b16 %v112, %v111
    %v123 = vpack.c.b16 %v114, %v113
    %v124 = vpack.c.b16 %v116, %v115
    %v129 = vunpack.c.l.b16 %v74
    %v130 = vunpack.c.l.b16 %v75
    %v131 = vunpack.c.l.b16 %v76
    %v132 = vunpack.c.l.b16 %v77
    %v133 = vpack.c.b16 %v130, %v129
    %v134 = vpack.c.b16 %v132, %v131
    %vm137 = vcmask 261120
    %v139 = vsel %vm137, %v117, 0
    %v142 = vsel %vm137, %v118, 0
    %v145 = vsel %vm137, %v119, 0
    %v148 = vsel %vm137, %v120, 0
    %v151 = vsel %vm137, %v121, 0
    %v154 = vsel %vm137, %v122, 0
    %v157 = vsel %vm137, %v123, 0
    %v160 = vsel %vm137, %v124, 0
    %162 = vmatprep.subr.bf16.mxu0 0
    %163 = vmatpush1.bf16.msra.mxu0 0
    %164 = vmatprep.subr.bf16.mxu0 0
    %165 = vmatpush1.bf16.msra.mxu0 0
    %166 = vmatprep.subr.bf16.mxu0 0
    %167 = vmatpush1.bf16.msra.mxu0 0
    %168 = vmatprep.subr.bf16.mxu0 0
    %169 = vmatpush1.bf16.msra.mxu0 0
    %170 = vmatprep.subr.bf16.mxu0 0
    %171 = vmatpush1.bf16.msra.mxu0 0
    %172 = vmatprep.subr.bf16.mxu0 0
    %173 = vmatpush1.bf16.msra.mxu0 0
    %174 = vmatprep.subr.bf16.mxu0 0
    %175 = vmatpush1.bf16.msra.mxu0 %v134
    %176 = vmatprep.subr.bf16.mxu0 0
    %177 = vmatpush1.bf16.msra.mxu0 %v133
    %178 = vmatprep.subr.bf16.mxu0 0
    %179 = vmatpush2.bf16.msra.mxu0 0
    %180 = vmatprep.subr.bf16.mxu0 0
    %181 = vmatpush2.bf16.msra.mxu0 0
    %182 = vmatprep.subr.bf16.mxu0 0
    %183 = vmatpush2.bf16.msra.mxu0 0
    %184 = vmatprep.subr.bf16.mxu0 0
    %185 = vmatpush2.bf16.msra.mxu0 0
    %186 = vmatprep.subr.bf16.mxu0 0
    %187 = vmatpush2.bf16.msra.mxu0 0
    %188 = vmatprep.subr.bf16.mxu0 0
    %189 = vmatpush2.bf16.msra.mxu0 0
    %190 = vmatprep.subr.bf16.mxu0 0
    %191 = vmatpush2.bf16.msra.mxu0 0
    %192 = vmatprep.subr.bf16.mxu0 0
    %193 = vmatpush2.bf16.msra.mxu0 0
    %194 = vmatprep.mubr.bf16.mxu0 0
    %195 = vmatmul.mubr.bf16.gmra.mxu0 %v139
    %v196 = vpop.f32.mrf.mxu0
    %v197 = vadd.f32 %v83, %v196
    %v198 = vpop.f32.mrf.mxu0
    %v199 = vpop.f32.mrf.mxu0
    %v200 = vadd.f32 %v83, %v199
    %v201 = vpop.f32.mrf.mxu0
    %202 = vmatprep.mubr.bf16.mxu0 0
    %203 = vmatmul.mubr.bf16.gmra.mxu0 %v142
    %v204 = vpop.f32.mrf.mxu0
    %v205 = vadd.f32 %v83, %v204
    %v206 = vpop.f32.mrf.mxu0
    %v207 = vpop.f32.mrf.mxu0
    %v208 = vadd.f32 %v83, %v207
    %v209 = vpop.f32.mrf.mxu0
    %210 = vmatprep.mubr.bf16.mxu0 0
    %211 = vmatmul.mubr.bf16.gmra.mxu0 %v145
    %v212 = vpop.f32.mrf.mxu0
    %v213 = vadd.f32 %v83, %v212
    %v214 = vpop.f32.mrf.mxu0
    %v215 = vpop.f32.mrf.mxu0
    %v216 = vadd.f32 %v83, %v215
    %v217 = vpop.f32.mrf.mxu0
    %218 = vmatprep.mubr.bf16.mxu0 0
    %219 = vmatmul.mubr.bf16.gmra.mxu0 %v148
    %v220 = vpop.f32.mrf.mxu0
    %v221 = vadd.f32 %v83, %v220
    %v222 = vpop.f32.mrf.mxu0
    %v223 = vpop.f32.mrf.mxu0
    %v224 = vadd.f32 %v83, %v223
    %v225 = vpop.f32.mrf.mxu0
    %226 = vmatprep.mubr.bf16.mxu0 0
    %227 = vmatmul.mubr.bf16.gmra.mxu0 %v151
    %v228 = vpop.f32.mrf.mxu0
    %v229 = vadd.f32 %v83, %v228
    %v230 = vpop.f32.mrf.mxu0
    %v231 = vpop.f32.mrf.mxu0
    %v232 = vadd.f32 %v83, %v231
    %v233 = vpop.f32.mrf.mxu0
    %234 = vmatprep.mubr.bf16.mxu0 0
    %235 = vmatmul.mubr.bf16.gmra.mxu0 %v154
    %v236 = vpop.f32.mrf.mxu0
    %v237 = vadd.f32 %v83, %v236
    %v238 = vpop.f32.mrf.mxu0
    %v239 = vpop.f32.mrf.mxu0
    %v240 = vadd.f32 %v83, %v239
    %v241 = vpop.f32.mrf.mxu0
    %242 = vmatprep.mubr.bf16.mxu0 0
    %243 = vmatmul.mubr.bf16.gmra.mxu0 %v157
    %v244 = vpop.f32.mrf.mxu0
    %v245 = vadd.f32 %v83, %v244
    %v246 = vpop.f32.mrf.mxu0
    %v247 = vpop.f32.mrf.mxu0
    %v248 = vadd.f32 %v83, %v247
    %v249 = vpop.f32.mrf.mxu0
    %250 = vmatprep.mubr.bf16.mxu0 0
    %251 = vmatmul.mubr.bf16.gmra.mxu0 %v160
    %v252 = vpop.f32.mrf.mxu0
    %v253 = vadd.f32 %v83, %v252
    %v254 = vpop.f32.mrf.mxu0
    %v255 = vpop.f32.mrf.mxu0
    %v256 = vadd.f32 %v83, %v255
    %v257 = vpop.f32.mrf.mxu0
    %258 = vdwg.mxu0
    %v259 = vxor.u32 %v197, 2147483648
    %v260 = vxor.u32 %v200, 2147483648
    %v261 = vxor.u32 %v205, 2147483648
    %v262 = vxor.u32 %v208, 2147483648
    %v263 = vxor.u32 %v213, 2147483648
    %v264 = vxor.u32 %v216, 2147483648
    %v265 = vxor.u32 %v221, 2147483648
    %v266 = vxor.u32 %v224, 2147483648
    %v267 = vxor.u32 %v229, 2147483648
    %v268 = vxor.u32 %v232, 2147483648
    %v269 = vxor.u32 %v237, 2147483648
    %v270 = vxor.u32 %v240, 2147483648
    %v271 = vxor.u32 %v245, 2147483648
    %v272 = vxor.u32 %v248, 2147483648
    %v273 = vxor.u32 %v253, 2147483648
    %v274 = vxor.u32 %v256, 2147483648
    %v275 = vmul.f32 %v259, 1.442695
    %v276 = vpow.pop %v275
    %v277 = vmul.f32 %v260, 1.442695
    %v278 = vpow.pop %v277
    %v279 = vmul.f32 %v261, 1.442695
    %v280 = vpow.pop %v279
    %v281 = vmul.f32 %v262, 1.442695
    %v282 = vpow.pop %v281
    %v283 = vmul.f32 %v263, 1.442695
    %v284 = vpow.pop %v283
    %v285 = vmul.f32 %v264, 1.442695
    %v286 = vpow.pop %v285
    %v287 = vmul.f32 %v265, 1.442695
    %v288 = vpow.pop %v287
    %v289 = vmul.f32 %v266, 1.442695
    %v290 = vpow.pop %v289
    %v291 = vmul.f32 %v267, 1.442695
    %v292 = vpow.pop %v291
    %v293 = vmul.f32 %v268, 1.442695
    %v294 = vpow.pop %v293
    %v295 = vmul.f32 %v269, 1.442695
    %v296 = vpow.pop %v295
    %v297 = vmul.f32 %v270, 1.442695
    %v298 = vpow.pop %v297
    %v299 = vmul.f32 %v271, 1.442695
    %v300 = vpow.pop %v299
    %v301 = vmul.f32 %v272, 1.442695
    %v302 = vpow.pop %v301
    %v303 = vmul.f32 %v273, 1.442695
    %v304 = vpow.pop %v303
    %v305 = vmul.f32 %v274, 1.442695
    %v306 = vpow.pop %v305
    %v307 = vadd.f32 %v276, 1.0
    %v308 = vadd.f32 %v278, 1.0
    %v309 = vadd.f32 %v280, 1.0
    %v310 = vadd.f32 %v282, 1.0
    %v311 = vadd.f32 %v284, 1.0
    %v312 = vadd.f32 %v286, 1.0
    %v313 = vadd.f32 %v288, 1.0
    %v314 = vadd.f32 %v290, 1.0
    %v315 = vadd.f32 %v292, 1.0
    %v316 = vadd.f32 %v294, 1.0
    %v317 = vadd.f32 %v296, 1.0
    %v318 = vadd.f32 %v298, 1.0
    %v319 = vadd.f32 %v300, 1.0
    %v320 = vadd.f32 %v302, 1.0
    %v321 = vadd.f32 %v304, 1.0
    %v322 = vadd.f32 %v306, 1.0
    %v323 = vrcp.pop %v307
    %v324 = vmul.f32 1.0, %v323
    %v325 = vrcp.pop %v308
    %v326 = vmul.f32 1.0, %v325
    %v327 = vrcp.pop %v309
    %v328 = vmul.f32 1.0, %v327
    %v329 = vrcp.pop %v310
    %v330 = vmul.f32 1.0, %v329
    %v331 = vrcp.pop %v311
    %v332 = vmul.f32 1.0, %v331
    %v333 = vrcp.pop %v312
    %v334 = vmul.f32 1.0, %v333
    %v335 = vrcp.pop %v313
    %v336 = vmul.f32 1.0, %v335
    %v337 = vrcp.pop %v314
    %v338 = vmul.f32 1.0, %v337
    %v339 = vrcp.pop %v315
    %v340 = vmul.f32 1.0, %v339
    %v341 = vrcp.pop %v316
    %v342 = vmul.f32 1.0, %v341
    %v343 = vrcp.pop %v317
    %v344 = vmul.f32 1.0, %v343
    %v345 = vrcp.pop %v318
    %v346 = vmul.f32 1.0, %v345
    %v347 = vrcp.pop %v319
    %v348 = vmul.f32 1.0, %v347
    %v349 = vrcp.pop %v320
    %v350 = vmul.f32 1.0, %v349
    %v351 = vrcp.pop %v321
    %v352 = vmul.f32 1.0, %v351
    %v353 = vrcp.pop %v322
    %v354 = vmul.f32 1.0, %v353
    %v355 = vmul.f32 %v197, %v324
    %v356 = vmul.f32 %v200, %v326
    %v357 = vmul.f32 %v205, %v328
    %v358 = vmul.f32 %v208, %v330
    %v359 = vmul.f32 %v213, %v332
    %v360 = vmul.f32 %v216, %v334
    %v361 = vmul.f32 %v221, %v336
    %v362 = vmul.f32 %v224, %v338
    %v363 = vmul.f32 %v229, %v340
    %v364 = vmul.f32 %v232, %v342
    %v365 = vmul.f32 %v237, %v344
    %v366 = vmul.f32 %v240, %v346
    %v367 = vmul.f32 %v245, %v348
    %v368 = vmul.f32 %v248, %v350
    %v369 = vmul.f32 %v253, %v352
    %v370 = vmul.f32 %v256, %v354
    %v371 = vpack.c.bf16 %v356, %v355
    %v372 = vpack.c.bf16 %v358, %v357
    %v373 = vpack.c.bf16 %v360, %v359
    %v374 = vpack.c.bf16 %v362, %v361
    %v375 = vpack.c.bf16 %v364, %v363
    %v376 = vpack.c.bf16 %v366, %v365
    %v377 = vpack.c.bf16 %v368, %v367
    %v378 = vpack.c.bf16 %v370, %v369
    %v379 = vld [vmem:[%s3] sm:$0xf]
    %v380 = vld [vmem:[%s3 + $0x4] sm:$0xf]
    %v381 = vld [vmem:[%s3 + $0x8] sm:$0xf]
    %v382 = vld [vmem:[%s3 + $0xc] sm:$0xf]
    %v383 = vld [vmem:[%s4] sm:$0x1]
    %v385 = vlaneseq
    %v386 = vshrl.u32 %v385, 7
    %v387 = vsub.s32 0, %v386
    %v388 = vrot.slane %v383, %v387
    %v394 = vunpack.c.l.b16 %v379
    %v395 = vunpack.c.l.b16 %v380
    %v396 = vunpack.c.l.b16 %v381
    %v397 = vunpack.c.l.b16 %v382
    %v398 = vpack.c.b16 %v395, %v394
    %v399 = vpack.c.b16 %v397, %v396
    %v403 = vsel %vm137, %v371, 0
    %v406 = vsel %vm137, %v372, 0
    %v409 = vsel %vm137, %v373, 0
    %v412 = vsel %vm137, %v374, 0
    %v415 = vsel %vm137, %v375, 0
    %v418 = vsel %vm137, %v376, 0
    %v421 = vsel %vm137, %v377, 0
    %v424 = vsel %vm137, %v378, 0
    %426 = vmatprep.subr.bf16.mxu0 0
    %427 = vmatpush1.bf16.msra.mxu0 0
    %428 = vmatprep.subr.bf16.mxu0 0
    %429 = vmatpush1.bf16.msra.mxu0 0
    %430 = vmatprep.subr.bf16.mxu0 0
    %431 = vmatpush1.bf16.msra.mxu0 0
    %432 = vmatprep.subr.bf16.mxu0 0
    %433 = vmatpush1.bf16.msra.mxu0 0
    %434 = vmatprep.subr.bf16.mxu0 0
    %435 = vmatpush1.bf16.msra.mxu0 0
    %436 = vmatprep.subr.bf16.mxu0 0
    %437 = vmatpush1.bf16.msra.mxu0 0
    %438 = vmatprep.subr.bf16.mxu0 0
    %439 = vmatpush1.bf16.msra.mxu0 %v399
    %440 = vmatprep.subr.bf16.mxu0 0
    %441 = vmatpush1.bf16.msra.mxu0 %v398
    %442 = vmatprep.subr.bf16.mxu0 0
    %443 = vmatpush2.bf16.msra.mxu0 0
    %444 = vmatprep.subr.bf16.mxu0 0
    %445 = vmatpush2.bf16.msra.mxu0 0
    %446 = vmatprep.subr.bf16.mxu0 0
    %447 = vmatpush2.bf16.msra.mxu0 0
    %448 = vmatprep.subr.bf16.mxu0 0
    %449 = vmatpush2.bf16.msra.mxu0 0
    %450 = vmatprep.subr.bf16.mxu0 0
    %451 = vmatpush2.bf16.msra.mxu0 0
    %452 = vmatprep.subr.bf16.mxu0 0
    %453 = vmatpush2.bf16.msra.mxu0 0
    %454 = vmatprep.subr.bf16.mxu0 0
    %455 = vmatpush2.bf16.msra.mxu0 0
    %456 = vmatprep.subr.bf16.mxu0 0
    %457 = vmatpush2.bf16.msra.mxu0 0
    %458 = vmatprep.mubr.bf16.mxu0 0
    %459 = vmatmul.mubr.bf16.gmra.mxu0 %v403
    %v460 = vpop.f32.mrf.mxu0
    %v461 = vadd.f32 %v388, %v460
    %v462 = vpop.f32.mrf.mxu0
    %v463 = vpop.f32.mrf.mxu0
    %v464 = vadd.f32 %v388, %v463
    %v465 = vpop.f32.mrf.mxu0
    %466 = vmatprep.mubr.bf16.mxu0 0
    %467 = vmatmul.mubr.bf16.gmra.mxu0 %v406
    %v468 = vpop.f32.mrf.mxu0
    %v469 = vadd.f32 %v388, %v468
    %v470 = vpop.f32.mrf.mxu0
    %v471 = vpop.f32.mrf.mxu0
    %v472 = vadd.f32 %v388, %v471
    %v473 = vpop.f32.mrf.mxu0
    %474 = vmatprep.mubr.bf16.mxu0 0
    %475 = vmatmul.mubr.bf16.gmra.mxu0 %v409
    %v476 = vpop.f32.mrf.mxu0
    %v477 = vadd.f32 %v388, %v476
    %v478 = vpop.f32.mrf.mxu0
    %v479 = vpop.f32.mrf.mxu0
    %v480 = vadd.f32 %v388, %v479
    %v481 = vpop.f32.mrf.mxu0
    %482 = vmatprep.mubr.bf16.mxu0 0
    %483 = vmatmul.mubr.bf16.gmra.mxu0 %v412
    %v484 = vpop.f32.mrf.mxu0
    %v485 = vadd.f32 %v388, %v484
    %v486 = vpop.f32.mrf.mxu0
    %v487 = vpop.f32.mrf.mxu0
    %v488 = vadd.f32 %v388, %v487
    %v489 = vpop.f32.mrf.mxu0
    %490 = vmatprep.mubr.bf16.mxu0 0
    %491 = vmatmul.mubr.bf16.gmra.mxu0 %v415
    %v492 = vpop.f32.mrf.mxu0
    %v493 = vadd.f32 %v388, %v492
    %v494 = vpop.f32.mrf.mxu0
    %v495 = vpop.f32.mrf.mxu0
    %v496 = vadd.f32 %v388, %v495
    %v497 = vpop.f32.mrf.mxu0
    %498 = vmatprep.mubr.bf16.mxu0 0
    %499 = vmatmul.mubr.bf16.gmra.mxu0 %v418
    %v500 = vpop.f32.mrf.mxu0
    %v501 = vadd.f32 %v388, %v500
    %v502 = vpop.f32.mrf.mxu0
    %v503 = vpop.f32.mrf.mxu0
    %v504 = vadd.f32 %v388, %v503
    %v505 = vpop.f32.mrf.mxu0
    %506 = vmatprep.mubr.bf16.mxu0 0
    %507 = vmatmul.mubr.bf16.gmra.mxu0 %v421
    %v508 = vpop.f32.mrf.mxu0
    %v509 = vadd.f32 %v388, %v508
    %v510 = vpop.f32.mrf.mxu0
    %v511 = vpop.f32.mrf.mxu0
    %v512 = vadd.f32 %v388, %v511
    %v513 = vpop.f32.mrf.mxu0
    %514 = vmatprep.mubr.bf16.mxu0 0
    %515 = vmatmul.mubr.bf16.gmra.mxu0 %v424
    %v516 = vpop.f32.mrf.mxu0
    %v517 = vadd.f32 %v388, %v516
    %v518 = vpop.f32.mrf.mxu0
    %v519 = vpop.f32.mrf.mxu0
    %v520 = vadd.f32 %v388, %v519
    %v521 = vpop.f32.mrf.mxu0
    %522 = vdwg.mxu0
    %v523 = vxor.u32 %v461, 2147483648
    %v524 = vxor.u32 %v464, 2147483648
    %v525 = vxor.u32 %v469, 2147483648
    %v526 = vxor.u32 %v472, 2147483648
    %v527 = vxor.u32 %v477, 2147483648
    %v528 = vxor.u32 %v480, 2147483648
    %v529 = vxor.u32 %v485, 2147483648
    %v530 = vxor.u32 %v488, 2147483648
    %v531 = vxor.u32 %v493, 2147483648
    %v532 = vxor.u32 %v496, 2147483648
    %v533 = vxor.u32 %v501, 2147483648
    %v534 = vxor.u32 %v504, 2147483648
    %v535 = vxor.u32 %v509, 2147483648
    %v536 = vxor.u32 %v512, 2147483648
    %v537 = vxor.u32 %v517, 2147483648
    %v538 = vxor.u32 %v520, 2147483648
    %v539 = vmul.f32 %v523, 1.442695
    %v540 = vpow.pop %v539
    %v541 = vmul.f32 %v524, 1.442695
    %v542 = vpow.pop %v541
    %v543 = vmul.f32 %v525, 1.442695
    %v544 = vpow.pop %v543
    %v545 = vmul.f32 %v526, 1.442695
    %v546 = vpow.pop %v545
    %v547 = vmul.f32 %v527, 1.442695
    %v548 = vpow.pop %v547
    %v549 = vmul.f32 %v528, 1.442695
    %v550 = vpow.pop %v549
    %v551 = vmul.f32 %v529, 1.442695
    %v552 = vpow.pop %v551
    %v553 = vmul.f32 %v530, 1.442695
    %v554 = vpow.pop %v553
    %v555 = vmul.f32 %v531, 1.442695
    %v556 = vpow.pop %v555
    %v557 = vmul.f32 %v532, 1.442695
    %v558 = vpow.pop %v557
    %v559 = vmul.f32 %v533, 1.442695
    %v560 = vpow.pop %v559
    %v561 = vmul.f32 %v534, 1.442695
    %v562 = vpow.pop %v561
    %v563 = vmul.f32 %v535, 1.442695
    %v564 = vpow.pop %v563
    %v565 = vmul.f32 %v536, 1.442695
    %v566 = vpow.pop %v565
    %v567 = vmul.f32 %v537, 1.442695
    %v568 = vpow.pop %v567
    %v569 = vmul.f32 %v538, 1.442695
    %v570 = vpow.pop %v569
    %v571 = vadd.f32 %v540, 1.0
    %v572 = vadd.f32 %v542, 1.0
    %v573 = vadd.f32 %v544, 1.0
    %v574 = vadd.f32 %v546, 1.0
    %v575 = vadd.f32 %v548, 1.0
    %v576 = vadd.f32 %v550, 1.0
    %v577 = vadd.f32 %v552, 1.0
    %v578 = vadd.f32 %v554, 1.0
    %v579 = vadd.f32 %v556, 1.0
    %v580 = vadd.f32 %v558, 1.0
    %v581 = vadd.f32 %v560, 1.0
    %v582 = vadd.f32 %v562, 1.0
    %v583 = vadd.f32 %v564, 1.0
    %v584 = vadd.f32 %v566, 1.0
    %v585 = vadd.f32 %v568, 1.0
    %v586 = vadd.f32 %v570, 1.0
    %v587 = vrcp.pop %v571
    %v588 = vmul.f32 1.0, %v587
    %v589 = vrcp.pop %v572
    %v590 = vmul.f32 1.0, %v589
    %v591 = vrcp.pop %v573
    %v592 = vmul.f32 1.0, %v591
    %v593 = vrcp.pop %v574
    %v594 = vmul.f32 1.0, %v593
    %v595 = vrcp.pop %v575
    %v596 = vmul.f32 1.0, %v595
    %v597 = vrcp.pop %v576
    %v598 = vmul.f32 1.0, %v597
    %v599 = vrcp.pop %v577
    %v600 = vmul.f32 1.0, %v599
    %v601 = vrcp.pop %v578
    %v602 = vmul.f32 1.0, %v601
    %v603 = vrcp.pop %v579
    %v604 = vmul.f32 1.0, %v603
    %v605 = vrcp.pop %v580
    %v606 = vmul.f32 1.0, %v605
    %v607 = vrcp.pop %v581
    %v608 = vmul.f32 1.0, %v607
    %v609 = vrcp.pop %v582
    %v610 = vmul.f32 1.0, %v609
    %v611 = vrcp.pop %v583
    %v612 = vmul.f32 1.0, %v611
    %v613 = vrcp.pop %v584
    %v614 = vmul.f32 1.0, %v613
    %v615 = vrcp.pop %v585
    %v616 = vmul.f32 1.0, %v615
    %v617 = vrcp.pop %v586
    %v618 = vmul.f32 1.0, %v617
    %v619 = vmul.f32 %v461, %v588
    %v620 = vmul.f32 %v464, %v590
    %v621 = vmul.f32 %v469, %v592
    %v622 = vmul.f32 %v472, %v594
    %v623 = vmul.f32 %v477, %v596
    %v624 = vmul.f32 %v480, %v598
    %v625 = vmul.f32 %v485, %v600
    %v626 = vmul.f32 %v488, %v602
    %v627 = vmul.f32 %v493, %v604
    %v628 = vmul.f32 %v496, %v606
    %v629 = vmul.f32 %v501, %v608
    %v630 = vmul.f32 %v504, %v610
    %v631 = vmul.f32 %v509, %v612
    %v632 = vmul.f32 %v512, %v614
    %v633 = vmul.f32 %v517, %v616
    %v634 = vmul.f32 %v520, %v618
    %v635 = vld [vmem:[%s5] sm:$0xff]
    %v636 = vld [vmem:[%s5 + $0x8] sm:$0x1]
    %v637 = vlaneseq
    %v638 = vshrl.u32 %v637, 7
    %v639 = vadd.s32 %v638, 8
    %v640 = vadd.s32 %v638, 16
    %v641 = vadd.s32 %v638, 24
    %v642 = vadd.s32 %v638, 32
    %v643 = vadd.s32 %v638, 40
    %v644 = vadd.s32 %v638, 48
    %v645 = vadd.s32 %v638, 56
    %v646 = vadd.s32 %v638, 64
    %v647 = vadd.s32 %v638, 72
    %v648 = vadd.s32 %v638, 80
    %v649 = vadd.s32 %v638, 88
    %v650 = vadd.s32 %v638, 96
    %v651 = vadd.s32 %v638, 104
    %v652 = vadd.s32 %v638, 112
    %v653 = vadd.s32 %v638, 120
    %v654 = vand.u32 %v638, 7
    %v655 = vand.u32 %v639, 7
    %v656 = vand.u32 %v640, 7
    %v657 = vand.u32 %v641, 7
    %v658 = vand.u32 %v642, 7
    %v659 = vand.u32 %v643, 7
    %v660 = vand.u32 %v644, 7
    %v661 = vand.u32 %v645, 7
    %v662 = vand.u32 %v646, 7
    %v663 = vand.u32 %v647, 7
    %v664 = vand.u32 %v648, 7
    %v665 = vand.u32 %v649, 7
    %v666 = vand.u32 %v650, 7
    %v667 = vand.u32 %v651, 7
    %v668 = vand.u32 %v652, 7
    %v669 = vand.u32 %v653, 7
    %v670 = vshra.s32 %v638, 3
    %v671 = vshra.s32 %v639, 3
    %v672 = vshra.s32 %v640, 3
    %v673 = vshra.s32 %v641, 3
    %v674 = vshra.s32 %v642, 3
    %v675 = vshra.s32 %v643, 3
    %v676 = vshra.s32 %v644, 3
    %v677 = vshra.s32 %v645, 3
    %v678 = vshra.s32 %v646, 3
    %v679 = vshra.s32 %v647, 3
    %v680 = vshra.s32 %v648, 3
    %v681 = vshra.s32 %v649, 3
    %v682 = vshra.s32 %v650, 3
    %v683 = vshra.s32 %v651, 3
    %v684 = vshra.s32 %v652, 3
    %v685 = vshra.s32 %v653, 3
    %v686 = vand.u32 %v670, 7
    %v687 = vand.u32 %v671, 7
    %v688 = vand.u32 %v672, 7
    %v689 = vand.u32 %v673, 7
    %v690 = vand.u32 %v674, 7
    %v691 = vand.u32 %v675, 7
    %v692 = vand.u32 %v676, 7
    %v693 = vand.u32 %v677, 7
    %v694 = vand.u32 %v678, 7
    %v695 = vand.u32 %v679, 7
    %v696 = vand.u32 %v680, 7
    %v697 = vand.u32 %v681, 7
    %v698 = vand.u32 %v682, 7
    %v699 = vand.u32 %v683, 7
    %v700 = vand.u32 %v684, 7
    %v701 = vand.u32 %v685, 7
    %v702 = vrot.slane %v619, 7
    %v703 = vrot.slane %v620, 7
    %v704 = vrot.slane %v621, 7
    %v705 = vrot.slane %v622, 7
    %v706 = vrot.slane %v623, 7
    %v707 = vrot.slane %v624, 7
    %v708 = vrot.slane %v625, 7
    %v709 = vrot.slane %v626, 7
    %v710 = vrot.slane %v627, 7
    %v711 = vrot.slane %v628, 7
    %v712 = vrot.slane %v629, 7
    %v713 = vrot.slane %v630, 7
    %v714 = vrot.slane %v631, 7
    %v715 = vrot.slane %v632, 7
    %v716 = vrot.slane %v633, 7
    %v717 = vrot.slane %v634, 7
    %vm718 = vcmp.lt.s32.totalorder %v638, 1
    %v719 = vsel %vm718, %v716, %v717
    %v720 = vsel %vm718, %v715, %v716
    %v721 = vsel %vm718, %v714, %v715
    %v722 = vsel %vm718, %v713, %v714
    %v723 = vsel %vm718, %v712, %v713
    %v724 = vsel %vm718, %v711, %v712
    %v725 = vsel %vm718, %v710, %v711
    %v726 = vsel %vm718, %v709, %v710
    %v727 = vsel %vm718, %v708, %v709
    %v728 = vsel %vm718, %v707, %v708
    %v729 = vsel %vm718, %v706, %v707
    %v730 = vsel %vm718, %v705, %v706
    %v731 = vsel %vm718, %v704, %v705
    %v732 = vsel %vm718, %v703, %v704
    %v733 = vsel %vm718, %v702, %v703
    %v734 = vsel %vm718, %v717, %v702
    %v735 = vadd.s32 %v686, 4294967295
    %v736 = vadd.s32 %v687, 4294967295
    %v737 = vadd.s32 %v688, 4294967295
    %v738 = vadd.s32 %v689, 4294967295
    %v739 = vadd.s32 %v690, 4294967295
    %v740 = vadd.s32 %v691, 4294967295
    %v741 = vadd.s32 %v692, 4294967295
    %v742 = vadd.s32 %v693, 4294967295
    %v743 = vadd.s32 %v694, 4294967295
    %v744 = vadd.s32 %v695, 4294967295
    %v745 = vadd.s32 %v696, 4294967295
    %v746 = vadd.s32 %v697, 4294967295
    %v747 = vadd.s32 %v698, 4294967295
    %v748 = vadd.s32 %v699, 4294967295
    %v749 = vadd.s32 %v700, 4294967295
    %v750 = vadd.s32 %v701, 4294967295
    %vm751 = vcmp.ge.s32.totalorder %v735, 0
    %vm752 = vcmp.ge.s32.totalorder %v736, 0
    %vm753 = vcmp.ge.s32.totalorder %v737, 0
    %vm754 = vcmp.ge.s32.totalorder %v738, 0
    %vm755 = vcmp.ge.s32.totalorder %v739, 0
    %vm756 = vcmp.ge.s32.totalorder %v740, 0
    %vm757 = vcmp.ge.s32.totalorder %v741, 0
    %vm758 = vcmp.ge.s32.totalorder %v742, 0
    %vm759 = vcmp.ge.s32.totalorder %v743, 0
    %vm760 = vcmp.ge.s32.totalorder %v744, 0
    %vm761 = vcmp.ge.s32.totalorder %v745, 0
    %vm762 = vcmp.ge.s32.totalorder %v746, 0
    %vm763 = vcmp.ge.s32.totalorder %v747, 0
    %vm764 = vcmp.ge.s32.totalorder %v748, 0
    %vm765 = vcmp.ge.s32.totalorder %v749, 0
    %vm766 = vcmp.ge.s32.totalorder %v750, 0
    %vm767 = vcmp.lt.s32.totalorder %v735, 8
    %vm768 = vcmp.lt.s32.totalorder %v736, 8
    %vm769 = vcmp.lt.s32.totalorder %v737, 8
    %vm770 = vcmp.lt.s32.totalorder %v738, 8
    %vm771 = vcmp.lt.s32.totalorder %v739, 8
    %vm772 = vcmp.lt.s32.totalorder %v740, 8
    %vm773 = vcmp.lt.s32.totalorder %v741, 8
    %vm774 = vcmp.lt.s32.totalorder %v742, 8
    %vm775 = vcmp.lt.s32.totalorder %v743, 8
    %vm776 = vcmp.lt.s32.totalorder %v744, 8
    %vm777 = vcmp.lt.s32.totalorder %v745, 8
    %vm778 = vcmp.lt.s32.totalorder %v746, 8
    %vm779 = vcmp.lt.s32.totalorder %v747, 8
    %vm780 = vcmp.lt.s32.totalorder %v748, 8
    %vm781 = vcmp.lt.s32.totalorder %v749, 8
    %vm782 = vcmp.lt.s32.totalorder %v750, 8
    %vm783 = vmand %vm751, %vm767
    %vm784 = vmand %vm752, %vm768
    %vm785 = vmand %vm753, %vm769
    %vm786 = vmand %vm754, %vm770
    %vm787 = vmand %vm755, %vm771
    %vm788 = vmand %vm756, %vm772
    %vm789 = vmand %vm757, %vm773
    %vm790 = vmand %vm758, %vm774
    %vm791 = vmand %vm759, %vm775
    %vm792 = vmand %vm760, %vm776
    %vm793 = vmand %vm761, %vm777
    %vm794 = vmand %vm762, %vm778
    %vm795 = vmand %vm763, %vm779
    %vm796 = vmand %vm764, %vm780
    %vm797 = vmand %vm765, %vm781
    %vm798 = vmand %vm766, %vm782
    %v799 = vadd.s32 %v654, 4294967295
    %v800 = vadd.s32 %v655, 4294967295
    %v801 = vadd.s32 %v656, 4294967295
    %v802 = vadd.s32 %v657, 4294967295
    %v803 = vadd.s32 %v658, 4294967295
    %v804 = vadd.s32 %v659, 4294967295
    %v805 = vadd.s32 %v660, 4294967295
    %v806 = vadd.s32 %v661, 4294967295
    %v807 = vadd.s32 %v662, 4294967295
    %v808 = vadd.s32 %v663, 4294967295
    %v809 = vadd.s32 %v664, 4294967295
    %v810 = vadd.s32 %v665, 4294967295
    %v811 = vadd.s32 %v666, 4294967295
    %v812 = vadd.s32 %v667, 4294967295
    %v813 = vadd.s32 %v668, 4294967295
    %v814 = vadd.s32 %v669, 4294967295
    %vm815 = vcmp.ge.s32.totalorder %v799, 0
    %vm816 = vcmp.ge.s32.totalorder %v800, 0
    %vm817 = vcmp.ge.s32.totalorder %v801, 0
    %vm818 = vcmp.ge.s32.totalorder %v802, 0
    %vm819 = vcmp.ge.s32.totalorder %v803, 0
    %vm820 = vcmp.ge.s32.totalorder %v804, 0
    %vm821 = vcmp.ge.s32.totalorder %v805, 0
    %vm822 = vcmp.ge.s32.totalorder %v806, 0
    %vm823 = vcmp.ge.s32.totalorder %v807, 0
    %vm824 = vcmp.ge.s32.totalorder %v808, 0
    %vm825 = vcmp.ge.s32.totalorder %v809, 0
    %vm826 = vcmp.ge.s32.totalorder %v810, 0
    %vm827 = vcmp.ge.s32.totalorder %v811, 0
    %vm828 = vcmp.ge.s32.totalorder %v812, 0
    %vm829 = vcmp.ge.s32.totalorder %v813, 0
    %vm830 = vcmp.ge.s32.totalorder %v814, 0
    %vm831 = vmand %vm783, %vm815
    %vm832 = vmand %vm784, %vm816
    %vm833 = vmand %vm785, %vm817
    %vm834 = vmand %vm786, %vm818
    %vm835 = vmand %vm787, %vm819
    %vm836 = vmand %vm788, %vm820
    %vm837 = vmand %vm789, %vm821
    %vm838 = vmand %vm790, %vm822
    %vm839 = vmand %vm791, %vm823
    %vm840 = vmand %vm792, %vm824
    %vm841 = vmand %vm793, %vm825
    %vm842 = vmand %vm794, %vm826
    %vm843 = vmand %vm795, %vm827
    %vm844 = vmand %vm796, %vm828
    %vm845 = vmand %vm797, %vm829
    %vm846 = vmand %vm798, %vm830
    %vm847 = vcmp.lt.s32.totalorder %v799, 8
    %vm848 = vcmp.lt.s32.totalorder %v800, 8
    %vm849 = vcmp.lt.s32.totalorder %v801, 8
    %vm850 = vcmp.lt.s32.totalorder %v802, 8
    %vm851 = vcmp.lt.s32.totalorder %v803, 8
    %vm852 = vcmp.lt.s32.totalorder %v804, 8
    %vm853 = vcmp.lt.s32.totalorder %v805, 8
    %vm854 = vcmp.lt.s32.totalorder %v806, 8
    %vm855 = vcmp.lt.s32.totalorder %v807, 8
    %vm856 = vcmp.lt.s32.totalorder %v808, 8
    %vm857 = vcmp.lt.s32.totalorder %v809, 8
    %vm858 = vcmp.lt.s32.totalorder %v810, 8
    %vm859 = vcmp.lt.s32.totalorder %v811, 8
    %vm860 = vcmp.lt.s32.totalorder %v812, 8
    %vm861 = vcmp.lt.s32.totalorder %v813, 8
    %vm862 = vcmp.lt.s32.totalorder %v814, 8
    %vm863 = vmand %vm831, %vm847
    %vm864 = vmand %vm832, %vm848
    %vm865 = vmand %vm833, %vm849
    %vm866 = vmand %vm834, %vm850
    %vm867 = vmand %vm835, %vm851
    %vm868 = vmand %vm836, %vm852
    %vm869 = vmand %vm837, %vm853
    %vm870 = vmand %vm838, %vm854
    %vm871 = vmand %vm839, %vm855
    %vm872 = vmand %vm840, %vm856
    %vm873 = vmand %vm841, %vm857
    %vm874 = vmand %vm842, %vm858
    %vm875 = vmand %vm843, %vm859
    %vm876 = vmand %vm844, %vm860
    %vm877 = vmand %vm845, %vm861
    %vm878 = vmand %vm846, %vm862
    %v879 = vsel %vm863, 1, 0
    %v880 = vsel %vm864, 1, 0
    %v881 = vsel %vm865, 1, 0
    %v882 = vsel %vm866, 1, 0
    %v883 = vsel %vm867, 1, 0
    %v884 = vsel %vm868, 1, 0
    %v885 = vsel %vm869, 1, 0
    %v886 = vsel %vm870, 1, 0
    %v887 = vsel %vm871, 1, 0
    %v888 = vsel %vm872, 1, 0
    %v889 = vsel %vm873, 1, 0
    %v890 = vsel %vm874, 1, 0
    %v891 = vsel %vm875, 1, 0
    %v892 = vsel %vm876, 1, 0
    %v893 = vsel %vm877, 1, 0
    %v894 = vsel %vm878, 1, 0
    %v895 = vcvt.s32.f32 %v879
    %v896 = vcvt.s32.f32 %v880
    %v897 = vcvt.s32.f32 %v881
    %v898 = vcvt.s32.f32 %v882
    %v899 = vcvt.s32.f32 %v883
    %v900 = vcvt.s32.f32 %v884
    %v901 = vcvt.s32.f32 %v885
    %v902 = vcvt.s32.f32 %v886
    %v903 = vcvt.s32.f32 %v887
    %v904 = vcvt.s32.f32 %v888
    %v905 = vcvt.s32.f32 %v889
    %v906 = vcvt.s32.f32 %v890
    %v907 = vcvt.s32.f32 %v891
    %v908 = vcvt.s32.f32 %v892
    %v909 = vcvt.s32.f32 %v893
    %v910 = vcvt.s32.f32 %v894
    %v911 = vmul.f32 %v719, %v895
    %v912 = vmul.f32 %v734, %v896
    %v913 = vmul.f32 %v733, %v897
    %v914 = vmul.f32 %v732, %v898
    %v915 = vmul.f32 %v731, %v899
    %v916 = vmul.f32 %v730, %v900
    %v917 = vmul.f32 %v729, %v901
    %v918 = vmul.f32 %v728, %v902
    %v919 = vmul.f32 %v727, %v903
    %v920 = vmul.f32 %v726, %v904
    %v921 = vmul.f32 %v725, %v905
    %v922 = vmul.f32 %v724, %v906
    %v923 = vmul.f32 %v723, %v907
    %v924 = vmul.f32 %v722, %v908
    %v925 = vmul.f32 %v721, %v909
    %v926 = vmul.f32 %v720, %v910
    %v927 = vlaneseq
    %v928 = vshrl.u32 %v927, 7
    %v929 = vsub.s32 0, %v928
    %v930 = vrot.slane %v635, %v929
    %v931 = vmul.f32 %v911, %v930
    %v932 = vmul.f32 %v912, %v930
    %v933 = vmul.f32 %v913, %v930
    %v934 = vmul.f32 %v914, %v930
    %v935 = vmul.f32 %v915, %v930
    %v936 = vmul.f32 %v916, %v930
    %v937 = vmul.f32 %v917, %v930
    %v938 = vmul.f32 %v918, %v930
    %v939 = vmul.f32 %v919, %v930
    %v940 = vmul.f32 %v920, %v930
    %v941 = vmul.f32 %v921, %v930
    %v942 = vmul.f32 %v922, %v930
    %v943 = vmul.f32 %v923, %v930
    %v944 = vmul.f32 %v924, %v930
    %v945 = vmul.f32 %v925, %v930
    %v946 = vmul.f32 %v926, %v930
    %v947 = vadd.f32 %v931, 0.0
    %v948 = vadd.f32 %v932, 0.0
    %v949 = vadd.f32 %v933, 0.0
    %v950 = vadd.f32 %v934, 0.0
    %v951 = vadd.f32 %v935, 0.0
    %v952 = vadd.f32 %v936, 0.0
    %v953 = vadd.f32 %v937, 0.0
    %v954 = vadd.f32 %v938, 0.0
    %v955 = vadd.f32 %v939, 0.0
    %v956 = vadd.f32 %v940, 0.0
    %v957 = vadd.f32 %v941, 0.0
    %v958 = vadd.f32 %v942, 0.0
    %v959 = vadd.f32 %v943, 0.0
    %v960 = vadd.f32 %v944, 0.0
    %v961 = vadd.f32 %v945, 0.0
    %v962 = vadd.f32 %v946, 0.0
    %vm963 = vcmp.ge.s32.totalorder %v654, 0
    %vm964 = vcmp.ge.s32.totalorder %v655, 0
    %vm965 = vcmp.ge.s32.totalorder %v656, 0
    %vm966 = vcmp.ge.s32.totalorder %v657, 0
    %vm967 = vcmp.ge.s32.totalorder %v658, 0
    %vm968 = vcmp.ge.s32.totalorder %v659, 0
    %vm969 = vcmp.ge.s32.totalorder %v660, 0
    %vm970 = vcmp.ge.s32.totalorder %v661, 0
    %vm971 = vcmp.ge.s32.totalorder %v662, 0
    %vm972 = vcmp.ge.s32.totalorder %v663, 0
    %vm973 = vcmp.ge.s32.totalorder %v664, 0
    %vm974 = vcmp.ge.s32.totalorder %v665, 0
    %vm975 = vcmp.ge.s32.totalorder %v666, 0
    %vm976 = vcmp.ge.s32.totalorder %v667, 0
    %vm977 = vcmp.ge.s32.totalorder %v668, 0
    %vm978 = vcmp.ge.s32.totalorder %v669, 0
    %vm979 = vmand %vm783, %vm963
    %vm980 = vmand %vm784, %vm964
    %vm981 = vmand %vm785, %vm965
    %vm982 = vmand %vm786, %vm966
    %vm983 = vmand %vm787, %vm967
    %vm984 = vmand %vm788, %vm968
    %vm985 = vmand %vm789, %vm969
    %vm986 = vmand %vm790, %vm970
    %vm987 = vmand %vm791, %vm971
    %vm988 = vmand %vm792, %vm972
    %vm989 = vmand %vm793, %vm973
    %vm990 = vmand %vm794, %vm974
    %vm991 = vmand %vm795, %vm975
    %vm992 = vmand %vm796, %vm976
    %vm993 = vmand %vm797, %vm977
    %vm994 = vmand %vm798, %vm978
    %vm995 = vcmp.lt.s32.totalorder %v654, 8
    %vm996 = vcmp.lt.s32.totalorder %v655, 8
    %vm997 = vcmp.lt.s32.totalorder %v656, 8
    %vm998 = vcmp.lt.s32.totalorder %v657, 8
    %vm999 = vcmp.lt.s32.totalorder %v658, 8
    %vm1000 = vcmp.lt.s32.totalorder %v659, 8
    %vm1001 = vcmp.lt.s32.totalorder %v660, 8
    %vm1002 = vcmp.lt.s32.totalorder %v661, 8
    %vm1003 = vcmp.lt.s32.totalorder %v662, 8
    %vm1004 = vcmp.lt.s32.totalorder %v663, 8
    %vm1005 = vcmp.lt.s32.totalorder %v664, 8
    %vm1006 = vcmp.lt.s32.totalorder %v665, 8
    %vm1007 = vcmp.lt.s32.totalorder %v666, 8
    %vm1008 = vcmp.lt.s32.totalorder %v667, 8
    %vm1009 = vcmp.lt.s32.totalorder %v668, 8
    %vm1010 = vcmp.lt.s32.totalorder %v669, 8
    %vm1011 = vmand %vm979, %vm995
    %vm1012 = vmand %vm980, %vm996
    %vm1013 = vmand %vm981, %vm997
    %vm1014 = vmand %vm982, %vm998
    %vm1015 = vmand %vm983, %vm999
    %vm1016 = vmand %vm984, %vm1000
    %vm1017 = vmand %vm985, %vm1001
    %vm1018 = vmand %vm986, %vm1002
    %vm1019 = vmand %vm987, %vm1003
    %vm1020 = vmand %vm988, %vm1004
    %vm1021 = vmand %vm989, %vm1005
    %vm1022 = vmand %vm990, %vm1006
    %vm1023 = vmand %vm991, %vm1007
    %vm1024 = vmand %vm992, %vm1008
    %vm1025 = vmand %vm993, %vm1009
    %vm1026 = vmand %vm994, %vm1010
    %v1027 = vsel %vm1011, 1, 0
    %v1028 = vsel %vm1012, 1, 0
    %v1029 = vsel %vm1013, 1, 0
    %v1030 = vsel %vm1014, 1, 0
    %v1031 = vsel %vm1015, 1, 0
    %v1032 = vsel %vm1016, 1, 0
    %v1033 = vsel %vm1017, 1, 0
    %v1034 = vsel %vm1018, 1, 0
    %v1035 = vsel %vm1019, 1, 0
    %v1036 = vsel %vm1020, 1, 0
    %v1037 = vsel %vm1021, 1, 0
    %v1038 = vsel %vm1022, 1, 0
    %v1039 = vsel %vm1023, 1, 0
    %v1040 = vsel %vm1024, 1, 0
    %v1041 = vsel %vm1025, 1, 0
    %v1042 = vsel %vm1026, 1, 0
    %v1043 = vcvt.s32.f32 %v1027
    %v1044 = vcvt.s32.f32 %v1028
    %v1045 = vcvt.s32.f32 %v1029
    %v1046 = vcvt.s32.f32 %v1030
    %v1047 = vcvt.s32.f32 %v1031
    %v1048 = vcvt.s32.f32 %v1032
    %v1049 = vcvt.s32.f32 %v1033
    %v1050 = vcvt.s32.f32 %v1034
    %v1051 = vcvt.s32.f32 %v1035
    %v1052 = vcvt.s32.f32 %v1036
    %v1053 = vcvt.s32.f32 %v1037
    %v1054 = vcvt.s32.f32 %v1038
    %v1055 = vcvt.s32.f32 %v1039
    %v1056 = vcvt.s32.f32 %v1040
    %v1057 = vcvt.s32.f32 %v1041
    %v1058 = vcvt.s32.f32 %v1042
    %v1059 = vmul.f32 %v634, %v1043
    %v1060 = vmul.f32 %v619, %v1044
    %v1061 = vmul.f32 %v620, %v1045
    %v1062 = vmul.f32 %v621, %v1046
    %v1063 = vmul.f32 %v622, %v1047
    %v1064 = vmul.f32 %v623, %v1048
    %v1065 = vmul.f32 %v624, %v1049
    %v1066 = vmul.f32 %v625, %v1050
    %v1067 = vmul.f32 %v626, %v1051
    %v1068 = vmul.f32 %v627, %v1052
    %v1069 = vmul.f32 %v628, %v1053
    %v1070 = vmul.f32 %v629, %v1054
    %v1071 = vmul.f32 %v630, %v1055
    %v1072 = vmul.f32 %v631, %v1056
    %v1073 = vmul.f32 %v632, %v1057
    %v1074 = vmul.f32 %v633, %v1058
    %v1075 = vlaneseq
    %v1076 = vshrl.u32 %v1075, 7
    %v1077 = vsub.s32 1, %v1076
    %v1078 = vrot.slane %v635, %v1077
    %v1079 = vmul.f32 %v1059, %v1078
    %v1080 = vmul.f32 %v1060, %v1078
    %v1081 = vmul.f32 %v1061, %v1078
    %v1082 = vmul.f32 %v1062, %v1078
    %v1083 = vmul.f32 %v1063, %v1078
    %v1084 = vmul.f32 %v1064, %v1078
    %v1085 = vmul.f32 %v1065, %v1078
    %v1086 = vmul.f32 %v1066, %v1078
    %v1087 = vmul.f32 %v1067, %v1078
    %v1088 = vmul.f32 %v1068, %v1078
    %v1089 = vmul.f32 %v1069, %v1078
    %v1090 = vmul.f32 %v1070, %v1078
    %v1091 = vmul.f32 %v1071, %v1078
    %v1092 = vmul.f32 %v1072, %v1078
    %v1093 = vmul.f32 %v1073, %v1078
    %v1094 = vmul.f32 %v1074, %v1078
    %v1095 = vadd.f32 %v947, %v1079
    %v1096 = vadd.f32 %v948, %v1080
    %v1097 = vadd.f32 %v949, %v1081
    %v1098 = vadd.f32 %v950, %v1082
    %v1099 = vadd.f32 %v951, %v1083
    %v1100 = vadd.f32 %v952, %v1084
    %v1101 = vadd.f32 %v953, %v1085
    %v1102 = vadd.f32 %v954, %v1086
    %v1103 = vadd.f32 %v955, %v1087
    %v1104 = vadd.f32 %v956, %v1088
    %v1105 = vadd.f32 %v957, %v1089
    %v1106 = vadd.f32 %v958, %v1090
    %v1107 = vadd.f32 %v959, %v1091
    %v1108 = vadd.f32 %v960, %v1092
    %v1109 = vadd.f32 %v961, %v1093
    %v1110 = vadd.f32 %v962, %v1094
    %v1111 = vrot.slane %v619, 1
    %v1112 = vrot.slane %v620, 1
    %v1113 = vrot.slane %v621, 1
    %v1114 = vrot.slane %v622, 1
    %v1115 = vrot.slane %v623, 1
    %v1116 = vrot.slane %v624, 1
    %v1117 = vrot.slane %v625, 1
    %v1118 = vrot.slane %v626, 1
    %v1119 = vrot.slane %v627, 1
    %v1120 = vrot.slane %v628, 1
    %v1121 = vrot.slane %v629, 1
    %v1122 = vrot.slane %v630, 1
    %v1123 = vrot.slane %v631, 1
    %v1124 = vrot.slane %v632, 1
    %v1125 = vrot.slane %v633, 1
    %v1126 = vrot.slane %v634, 1
    %vm1127 = vcmp.lt.s32.totalorder %v638, 7
    %v1128 = vsel %vm1127, %v1125, %v1126
    %v1129 = vsel %vm1127, %v1124, %v1125
    %v1130 = vsel %vm1127, %v1123, %v1124
    %v1131 = vsel %vm1127, %v1122, %v1123
    %v1132 = vsel %vm1127, %v1121, %v1122
    %v1133 = vsel %vm1127, %v1120, %v1121
    %v1134 = vsel %vm1127, %v1119, %v1120
    %v1135 = vsel %vm1127, %v1118, %v1119
    %v1136 = vsel %vm1127, %v1117, %v1118
    %v1137 = vsel %vm1127, %v1116, %v1117
    %v1138 = vsel %vm1127, %v1115, %v1116
    %v1139 = vsel %vm1127, %v1114, %v1115
    %v1140 = vsel %vm1127, %v1113, %v1114
    %v1141 = vsel %vm1127, %v1112, %v1113
    %v1142 = vsel %vm1127, %v1111, %v1112
    %v1143 = vsel %vm1127, %v1126, %v1111
    %v1144 = vadd.s32 %v654, 1
    %v1145 = vadd.s32 %v655, 1
    %v1146 = vadd.s32 %v656, 1
    %v1147 = vadd.s32 %v657, 1
    %v1148 = vadd.s32 %v658, 1
    %v1149 = vadd.s32 %v659, 1
    %v1150 = vadd.s32 %v660, 1
    %v1151 = vadd.s32 %v661, 1
    %v1152 = vadd.s32 %v662, 1
    %v1153 = vadd.s32 %v663, 1
    %v1154 = vadd.s32 %v664, 1
    %v1155 = vadd.s32 %v665, 1
    %v1156 = vadd.s32 %v666, 1
    %v1157 = vadd.s32 %v667, 1
    %v1158 = vadd.s32 %v668, 1
    %v1159 = vadd.s32 %v669, 1
    %vm1160 = vcmp.ge.s32.totalorder %v1144, 0
    %vm1161 = vcmp.ge.s32.totalorder %v1145, 0
    %vm1162 = vcmp.ge.s32.totalorder %v1146, 0
    %vm1163 = vcmp.ge.s32.totalorder %v1147, 0
    %vm1164 = vcmp.ge.s32.totalorder %v1148, 0
    %vm1165 = vcmp.ge.s32.totalorder %v1149, 0
    %vm1166 = vcmp.ge.s32.totalorder %v1150, 0
    %vm1167 = vcmp.ge.s32.totalorder %v1151, 0
    %vm1168 = vcmp.ge.s32.totalorder %v1152, 0
    %vm1169 = vcmp.ge.s32.totalorder %v1153, 0
    %vm1170 = vcmp.ge.s32.totalorder %v1154, 0
    %vm1171 = vcmp.ge.s32.totalorder %v1155, 0
    %vm1172 = vcmp.ge.s32.totalorder %v1156, 0
    %vm1173 = vcmp.ge.s32.totalorder %v1157, 0
    %vm1174 = vcmp.ge.s32.totalorder %v1158, 0
    %vm1175 = vcmp.ge.s32.totalorder %v1159, 0
    %vm1176 = vmand %vm783, %vm1160
    %vm1177 = vmand %vm784, %vm1161
    %vm1178 = vmand %vm785, %vm1162
    %vm1179 = vmand %vm786, %vm1163
    %vm1180 = vmand %vm787, %vm1164
    %vm1181 = vmand %vm788, %vm1165
    %vm1182 = vmand %vm789, %vm1166
    %vm1183 = vmand %vm790, %vm1167
    %vm1184 = vmand %vm791, %vm1168
    %vm1185 = vmand %vm792, %vm1169
    %vm1186 = vmand %vm793, %vm1170
    %vm1187 = vmand %vm794, %vm1171
    %vm1188 = vmand %vm795, %vm1172
    %vm1189 = vmand %vm796, %vm1173
    %vm1190 = vmand %vm797, %vm1174
    %vm1191 = vmand %vm798, %vm1175
    %vm1192 = vcmp.lt.s32.totalorder %v1144, 8
    %vm1193 = vcmp.lt.s32.totalorder %v1145, 8
    %vm1194 = vcmp.lt.s32.totalorder %v1146, 8
    %vm1195 = vcmp.lt.s32.totalorder %v1147, 8
    %vm1196 = vcmp.lt.s32.totalorder %v1148, 8
    %vm1197 = vcmp.lt.s32.totalorder %v1149, 8
    %vm1198 = vcmp.lt.s32.totalorder %v1150, 8
    %vm1199 = vcmp.lt.s32.totalorder %v1151, 8
    %vm1200 = vcmp.lt.s32.totalorder %v1152, 8
    %vm1201 = vcmp.lt.s32.totalorder %v1153, 8
    %vm1202 = vcmp.lt.s32.totalorder %v1154, 8
    %vm1203 = vcmp.lt.s32.totalorder %v1155, 8
    %vm1204 = vcmp.lt.s32.totalorder %v1156, 8
    %vm1205 = vcmp.lt.s32.totalorder %v1157, 8
    %vm1206 = vcmp.lt.s32.totalorder %v1158, 8
    %vm1207 = vcmp.lt.s32.totalorder %v1159, 8
    %vm1208 = vmand %vm1176, %vm1192
    %vm1209 = vmand %vm1177, %vm1193
    %vm1210 = vmand %vm1178, %vm1194
    %vm1211 = vmand %vm1179, %vm1195
    %vm1212 = vmand %vm1180, %vm1196
    %vm1213 = vmand %vm1181, %vm1197
    %vm1214 = vmand %vm1182, %vm1198
    %vm1215 = vmand %vm1183, %vm1199
    %vm1216 = vmand %vm1184, %vm1200
    %vm1217 = vmand %vm1185, %vm1201
    %vm1218 = vmand %vm1186, %vm1202
    %vm1219 = vmand %vm1187, %vm1203
    %vm1220 = vmand %vm1188, %vm1204
    %vm1221 = vmand %vm1189, %vm1205
    %vm1222 = vmand %vm1190, %vm1206
    %vm1223 = vmand %vm1191, %vm1207
    %v1224 = vsel %vm1208, 1, 0
    %v1225 = vsel %vm1209, 1, 0
    %v1226 = vsel %vm1210, 1, 0
    %v1227 = vsel %vm1211, 1, 0
    %v1228 = vsel %vm1212, 1, 0
    %v1229 = vsel %vm1213, 1, 0
    %v1230 = vsel %vm1214, 1, 0
    %v1231 = vsel %vm1215, 1, 0
    %v1232 = vsel %vm1216, 1, 0
    %v1233 = vsel %vm1217, 1, 0
    %v1234 = vsel %vm1218, 1, 0
    %v1235 = vsel %vm1219, 1, 0
    %v1236 = vsel %vm1220, 1, 0
    %v1237 = vsel %vm1221, 1, 0
    %v1238 = vsel %vm1222, 1, 0
    %v1239 = vsel %vm1223, 1, 0
    %v1240 = vcvt.s32.f32 %v1224
    %v1241 = vcvt.s32.f32 %v1225
    %v1242 = vcvt.s32.f32 %v1226
    %v1243 = vcvt.s32.f32 %v1227
    %v1244 = vcvt.s32.f32 %v1228
    %v1245 = vcvt.s32.f32 %v1229
    %v1246 = vcvt.s32.f32 %v1230
    %v1247 = vcvt.s32.f32 %v1231
    %v1248 = vcvt.s32.f32 %v1232
    %v1249 = vcvt.s32.f32 %v1233
    %v1250 = vcvt.s32.f32 %v1234
    %v1251 = vcvt.s32.f32 %v1235
    %v1252 = vcvt.s32.f32 %v1236
    %v1253 = vcvt.s32.f32 %v1237
    %v1254 = vcvt.s32.f32 %v1238
    %v1255 = vcvt.s32.f32 %v1239
    %v1256 = vmul.f32 %v1143, %v1240
    %v1257 = vmul.f32 %v1142, %v1241
    %v1258 = vmul.f32 %v1141, %v1242
    %v1259 = vmul.f32 %v1140, %v1243
    %v1260 = vmul.f32 %v1139, %v1244
    %v1261 = vmul.f32 %v1138, %v1245
    %v1262 = vmul.f32 %v1137, %v1246
    %v1263 = vmul.f32 %v1136, %v1247
    %v1264 = vmul.f32 %v1135, %v1248
    %v1265 = vmul.f32 %v1134, %v1249
    %v1266 = vmul.f32 %v1133, %v1250
    %v1267 = vmul.f32 %v1132, %v1251
    %v1268 = vmul.f32 %v1131, %v1252
    %v1269 = vmul.f32 %v1130, %v1253
    %v1270 = vmul.f32 %v1129, %v1254
    %v1271 = vmul.f32 %v1128, %v1255
    %v1272 = vlaneseq
    %v1273 = vshrl.u32 %v1272, 7
    %v1274 = vsub.s32 2, %v1273
    %v1275 = vrot.slane %v635, %v1274
    %v1276 = vmul.f32 %v1256, %v1275
    %v1277 = vmul.f32 %v1257, %v1275
    %v1278 = vmul.f32 %v1258, %v1275
    %v1279 = vmul.f32 %v1259, %v1275
    %v1280 = vmul.f32 %v1260, %v1275
    %v1281 = vmul.f32 %v1261, %v1275
    %v1282 = vmul.f32 %v1262, %v1275
    %v1283 = vmul.f32 %v1263, %v1275
    %v1284 = vmul.f32 %v1264, %v1275
    %v1285 = vmul.f32 %v1265, %v1275
    %v1286 = vmul.f32 %v1266, %v1275
    %v1287 = vmul.f32 %v1267, %v1275
    %v1288 = vmul.f32 %v1268, %v1275
    %v1289 = vmul.f32 %v1269, %v1275
    %v1290 = vmul.f32 %v1270, %v1275
    %v1291 = vmul.f32 %v1271, %v1275
    %v1292 = vadd.f32 %v1095, %v1276
    %v1293 = vadd.f32 %v1096, %v1277
    %v1294 = vadd.f32 %v1097, %v1278
    %v1295 = vadd.f32 %v1098, %v1279
    %v1296 = vadd.f32 %v1099, %v1280
    %v1297 = vadd.f32 %v1100, %v1281
    %v1298 = vadd.f32 %v1101, %v1282
    %v1299 = vadd.f32 %v1102, %v1283
    %v1300 = vadd.f32 %v1103, %v1284
    %v1301 = vadd.f32 %v1104, %v1285
    %v1302 = vadd.f32 %v1105, %v1286
    %v1303 = vadd.f32 %v1106, %v1287
    %v1304 = vadd.f32 %v1107, %v1288
    %v1305 = vadd.f32 %v1108, %v1289
    %v1306 = vadd.f32 %v1109, %v1290
    %v1307 = vadd.f32 %v1110, %v1291
    %vm1308 = vcmp.ge.s32.totalorder %v686, 0
    %vm1309 = vcmp.ge.s32.totalorder %v687, 0
    %vm1310 = vcmp.ge.s32.totalorder %v688, 0
    %vm1311 = vcmp.ge.s32.totalorder %v689, 0
    %vm1312 = vcmp.ge.s32.totalorder %v690, 0
    %vm1313 = vcmp.ge.s32.totalorder %v691, 0
    %vm1314 = vcmp.ge.s32.totalorder %v692, 0
    %vm1315 = vcmp.ge.s32.totalorder %v693, 0
    %vm1316 = vcmp.ge.s32.totalorder %v694, 0
    %vm1317 = vcmp.ge.s32.totalorder %v695, 0
    %vm1318 = vcmp.ge.s32.totalorder %v696, 0
    %vm1319 = vcmp.ge.s32.totalorder %v697, 0
    %vm1320 = vcmp.ge.s32.totalorder %v698, 0
    %vm1321 = vcmp.ge.s32.totalorder %v699, 0
    %vm1322 = vcmp.ge.s32.totalorder %v700, 0
    %vm1323 = vcmp.ge.s32.totalorder %v701, 0
    %vm1324 = vcmp.lt.s32.totalorder %v686, 8
    %vm1325 = vcmp.lt.s32.totalorder %v687, 8
    %vm1326 = vcmp.lt.s32.totalorder %v688, 8
    %vm1327 = vcmp.lt.s32.totalorder %v689, 8
    %vm1328 = vcmp.lt.s32.totalorder %v690, 8
    %vm1329 = vcmp.lt.s32.totalorder %v691, 8
    %vm1330 = vcmp.lt.s32.totalorder %v692, 8
    %vm1331 = vcmp.lt.s32.totalorder %v693, 8
    %vm1332 = vcmp.lt.s32.totalorder %v694, 8
    %vm1333 = vcmp.lt.s32.totalorder %v695, 8
    %vm1334 = vcmp.lt.s32.totalorder %v696, 8
    %vm1335 = vcmp.lt.s32.totalorder %v697, 8
    %vm1336 = vcmp.lt.s32.totalorder %v698, 8
    %vm1337 = vcmp.lt.s32.totalorder %v699, 8
    %vm1338 = vcmp.lt.s32.totalorder %v700, 8
    %vm1339 = vcmp.lt.s32.totalorder %v701, 8
    %vm1340 = vmand %vm1308, %vm1324
    %vm1341 = vmand %vm1309, %vm1325
    %vm1342 = vmand %vm1310, %vm1326
    %vm1343 = vmand %vm1311, %vm1327
    %vm1344 = vmand %vm1312, %vm1328
    %vm1345 = vmand %vm1313, %vm1329
    %vm1346 = vmand %vm1314, %vm1330
    %vm1347 = vmand %vm1315, %vm1331
    %vm1348 = vmand %vm1316, %vm1332
    %vm1349 = vmand %vm1317, %vm1333
    %vm1350 = vmand %vm1318, %vm1334
    %vm1351 = vmand %vm1319, %vm1335
    %vm1352 = vmand %vm1320, %vm1336
    %vm1353 = vmand %vm1321, %vm1337
    %vm1354 = vmand %vm1322, %vm1338
    %vm1355 = vmand %vm1323, %vm1339
    %vm1356 = vmand %vm1340, %vm815
    %vm1357 = vmand %vm1341, %vm816
    %vm1358 = vmand %vm1342, %vm817
    %vm1359 = vmand %vm1343, %vm818
    %vm1360 = vmand %vm1344, %vm819
    %vm1361 = vmand %vm1345, %vm820
    %vm1362 = vmand %vm1346, %vm821
    %vm1363 = vmand %vm1347, %vm822
    %vm1364 = vmand %vm1348, %vm823
    %vm1365 = vmand %vm1349, %vm824
    %vm1366 = vmand %vm1350, %vm825
    %vm1367 = vmand %vm1351, %vm826
    %vm1368 = vmand %vm1352, %vm827
    %vm1369 = vmand %vm1353, %vm828
    %vm1370 = vmand %vm1354, %vm829
    %vm1371 = vmand %vm1355, %vm830
    %vm1372 = vmand %vm1356, %vm847
    %vm1373 = vmand %vm1357, %vm848
    %vm1374 = vmand %vm1358, %vm849
    %vm1375 = vmand %vm1359, %vm850
    %vm1376 = vmand %vm1360, %vm851
    %vm1377 = vmand %vm1361, %vm852
    %vm1378 = vmand %vm1362, %vm853
    %vm1379 = vmand %vm1363, %vm854
    %vm1380 = vmand %vm1364, %vm855
    %vm1381 = vmand %vm1365, %vm856
    %vm1382 = vmand %vm1366, %vm857
    %vm1383 = vmand %vm1367, %vm858
    %vm1384 = vmand %vm1368, %vm859
    %vm1385 = vmand %vm1369, %vm860
    %vm1386 = vmand %vm1370, %vm861
    %vm1387 = vmand %vm1371, %vm862
    %v1388 = vsel %vm1372, 1, 0
    %v1389 = vsel %vm1373, 1, 0
    %v1390 = vsel %vm1374, 1, 0
    %v1391 = vsel %vm1375, 1, 0
    %v1392 = vsel %vm1376, 1, 0
    %v1393 = vsel %vm1377, 1, 0
    %v1394 = vsel %vm1378, 1, 0
    %v1395 = vsel %vm1379, 1, 0
    %v1396 = vsel %vm1380, 1, 0
    %v1397 = vsel %vm1381, 1, 0
    %v1398 = vsel %vm1382, 1, 0
    %v1399 = vsel %vm1383, 1, 0
    %v1400 = vsel %vm1384, 1, 0
    %v1401 = vsel %vm1385, 1, 0
    %v1402 = vsel %vm1386, 1, 0
    %v1403 = vsel %vm1387, 1, 0
    %v1404 = vcvt.s32.f32 %v1388
    %v1405 = vcvt.s32.f32 %v1389
    %v1406 = vcvt.s32.f32 %v1390
    %v1407 = vcvt.s32.f32 %v1391
    %v1408 = vcvt.s32.f32 %v1392
    %v1409 = vcvt.s32.f32 %v1393
    %v1410 = vcvt.s32.f32 %v1394
    %v1411 = vcvt.s32.f32 %v1395
    %v1412 = vcvt.s32.f32 %v1396
    %v1413 = vcvt.s32.f32 %v1397
    %v1414 = vcvt.s32.f32 %v1398
    %v1415 = vcvt.s32.f32 %v1399
    %v1416 = vcvt.s32.f32 %v1400
    %v1417 = vcvt.s32.f32 %v1401
    %v1418 = vcvt.s32.f32 %v1402
    %v1419 = vcvt.s32.f32 %v1403
    %v1420 = vmul.f32 %v734, %v1404
    %v1421 = vmul.f32 %v733, %v1405
    %v1422 = vmul.f32 %v732, %v1406
    %v1423 = vmul.f32 %v731, %v1407
    %v1424 = vmul.f32 %v730, %v1408
    %v1425 = vmul.f32 %v729, %v1409
    %v1426 = vmul.f32 %v728, %v1410
    %v1427 = vmul.f32 %v727, %v1411
    %v1428 = vmul.f32 %v726, %v1412
    %v1429 = vmul.f32 %v725, %v1413
    %v1430 = vmul.f32 %v724, %v1414
    %v1431 = vmul.f32 %v723, %v1415
    %v1432 = vmul.f32 %v722, %v1416
    %v1433 = vmul.f32 %v721, %v1417
    %v1434 = vmul.f32 %v720, %v1418
    %v1435 = vmul.f32 %v719, %v1419
    %v1436 = vlaneseq
    %v1437 = vshrl.u32 %v1436, 7
    %v1438 = vsub.s32 3, %v1437
    %v1439 = vrot.slane %v635, %v1438
    %v1440 = vmul.f32 %v1420, %v1439
    %v1441 = vmul.f32 %v1421, %v1439
    %v1442 = vmul.f32 %v1422, %v1439
    %v1443 = vmul.f32 %v1423, %v1439
    %v1444 = vmul.f32 %v1424, %v1439
    %v1445 = vmul.f32 %v1425, %v1439
    %v1446 = vmul.f32 %v1426, %v1439
    %v1447 = vmul.f32 %v1427, %v1439
    %v1448 = vmul.f32 %v1428, %v1439
    %v1449 = vmul.f32 %v1429, %v1439
    %v1450 = vmul.f32 %v1430, %v1439
    %v1451 = vmul.f32 %v1431, %v1439
    %v1452 = vmul.f32 %v1432, %v1439
    %v1453 = vmul.f32 %v1433, %v1439
    %v1454 = vmul.f32 %v1434, %v1439
    %v1455 = vmul.f32 %v1435, %v1439
    %v1456 = vadd.f32 %v1292, %v1440
    %v1457 = vadd.f32 %v1293, %v1441
    %v1458 = vadd.f32 %v1294, %v1442
    %v1459 = vadd.f32 %v1295, %v1443
    %v1460 = vadd.f32 %v1296, %v1444
    %v1461 = vadd.f32 %v1297, %v1445
    %v1462 = vadd.f32 %v1298, %v1446
    %v1463 = vadd.f32 %v1299, %v1447
    %v1464 = vadd.f32 %v1300, %v1448
    %v1465 = vadd.f32 %v1301, %v1449
    %v1466 = vadd.f32 %v1302, %v1450
    %v1467 = vadd.f32 %v1303, %v1451
    %v1468 = vadd.f32 %v1304, %v1452
    %v1469 = vadd.f32 %v1305, %v1453
    %v1470 = vadd.f32 %v1306, %v1454
    %v1471 = vadd.f32 %v1307, %v1455
    %vm1472 = vmand %vm1340, %vm963
    %vm1473 = vmand %vm1341, %vm964
    %vm1474 = vmand %vm1342, %vm965
    %vm1475 = vmand %vm1343, %vm966
    %vm1476 = vmand %vm1344, %vm967
    %vm1477 = vmand %vm1345, %vm968
    %vm1478 = vmand %vm1346, %vm969
    %vm1479 = vmand %vm1347, %vm970
    %vm1480 = vmand %vm1348, %vm971
    %vm1481 = vmand %vm1349, %vm972
    %vm1482 = vmand %vm1350, %vm973
    %vm1483 = vmand %vm1351, %vm974
    %vm1484 = vmand %vm1352, %vm975
    %vm1485 = vmand %vm1353, %vm976
    %vm1486 = vmand %vm1354, %vm977
    %vm1487 = vmand %vm1355, %vm978
    %vm1488 = vmand %vm1472, %vm995
    %vm1489 = vmand %vm1473, %vm996
    %vm1490 = vmand %vm1474, %vm997
    %vm1491 = vmand %vm1475, %vm998
    %vm1492 = vmand %vm1476, %vm999
    %vm1493 = vmand %vm1477, %vm1000
    %vm1494 = vmand %vm1478, %vm1001
    %vm1495 = vmand %vm1479, %vm1002
    %vm1496 = vmand %vm1480, %vm1003
    %vm1497 = vmand %vm1481, %vm1004
    %vm1498 = vmand %vm1482, %vm1005
    %vm1499 = vmand %vm1483, %vm1006
    %vm1500 = vmand %vm1484, %vm1007
    %vm1501 = vmand %vm1485, %vm1008
    %vm1502 = vmand %vm1486, %vm1009
    %vm1503 = vmand %vm1487, %vm1010
    %v1504 = vsel %vm1488, 1, 0
    %v1505 = vsel %vm1489, 1, 0
    %v1506 = vsel %vm1490, 1, 0
    %v1507 = vsel %vm1491, 1, 0
    %v1508 = vsel %vm1492, 1, 0
    %v1509 = vsel %vm1493, 1, 0
    %v1510 = vsel %vm1494, 1, 0
    %v1511 = vsel %vm1495, 1, 0
    %v1512 = vsel %vm1496, 1, 0
    %v1513 = vsel %vm1497, 1, 0
    %v1514 = vsel %vm1498, 1, 0
    %v1515 = vsel %vm1499, 1, 0
    %v1516 = vsel %vm1500, 1, 0
    %v1517 = vsel %vm1501, 1, 0
    %v1518 = vsel %vm1502, 1, 0
    %v1519 = vsel %vm1503, 1, 0
    %v1520 = vcvt.s32.f32 %v1504
    %v1521 = vcvt.s32.f32 %v1505
    %v1522 = vcvt.s32.f32 %v1506
    %v1523 = vcvt.s32.f32 %v1507
    %v1524 = vcvt.s32.f32 %v1508
    %v1525 = vcvt.s32.f32 %v1509
    %v1526 = vcvt.s32.f32 %v1510
    %v1527 = vcvt.s32.f32 %v1511
    %v1528 = vcvt.s32.f32 %v1512
    %v1529 = vcvt.s32.f32 %v1513
    %v1530 = vcvt.s32.f32 %v1514
    %v1531 = vcvt.s32.f32 %v1515
    %v1532 = vcvt.s32.f32 %v1516
    %v1533 = vcvt.s32.f32 %v1517
    %v1534 = vcvt.s32.f32 %v1518
    %v1535 = vcvt.s32.f32 %v1519
    %v1536 = vmul.f32 %v619, %v1520
    %v1537 = vmul.f32 %v620, %v1521
    %v1538 = vmul.f32 %v621, %v1522
    %v1539 = vmul.f32 %v622, %v1523
    %v1540 = vmul.f32 %v623, %v1524
    %v1541 = vmul.f32 %v624, %v1525
    %v1542 = vmul.f32 %v625, %v1526
    %v1543 = vmul.f32 %v626, %v1527
    %v1544 = vmul.f32 %v627, %v1528
    %v1545 = vmul.f32 %v628, %v1529
    %v1546 = vmul.f32 %v629, %v1530
    %v1547 = vmul.f32 %v630, %v1531
    %v1548 = vmul.f32 %v631, %v1532
    %v1549 = vmul.f32 %v632, %v1533
    %v1550 = vmul.f32 %v633, %v1534
    %v1551 = vmul.f32 %v634, %v1535
    %v1552 = vlaneseq
    %v1553 = vshrl.u32 %v1552, 7
    %v1554 = vsub.s32 4, %v1553
    %v1555 = vrot.slane %v635, %v1554
    %v1556 = vmul.f32 %v1536, %v1555
    %v1557 = vmul.f32 %v1537, %v1555
    %v1558 = vmul.f32 %v1538, %v1555
    %v1559 = vmul.f32 %v1539, %v1555
    %v1560 = vmul.f32 %v1540, %v1555
    %v1561 = vmul.f32 %v1541, %v1555
    %v1562 = vmul.f32 %v1542, %v1555
    %v1563 = vmul.f32 %v1543, %v1555
    %v1564 = vmul.f32 %v1544, %v1555
    %v1565 = vmul.f32 %v1545, %v1555
    %v1566 = vmul.f32 %v1546, %v1555
    %v1567 = vmul.f32 %v1547, %v1555
    %v1568 = vmul.f32 %v1548, %v1555
    %v1569 = vmul.f32 %v1549, %v1555
    %v1570 = vmul.f32 %v1550, %v1555
    %v1571 = vmul.f32 %v1551, %v1555
    %v1572 = vadd.f32 %v1456, %v1556
    %v1573 = vadd.f32 %v1457, %v1557
    %v1574 = vadd.f32 %v1458, %v1558
    %v1575 = vadd.f32 %v1459, %v1559
    %v1576 = vadd.f32 %v1460, %v1560
    %v1577 = vadd.f32 %v1461, %v1561
    %v1578 = vadd.f32 %v1462, %v1562
    %v1579 = vadd.f32 %v1463, %v1563
    %v1580 = vadd.f32 %v1464, %v1564
    %v1581 = vadd.f32 %v1465, %v1565
    %v1582 = vadd.f32 %v1466, %v1566
    %v1583 = vadd.f32 %v1467, %v1567
    %v1584 = vadd.f32 %v1468, %v1568
    %v1585 = vadd.f32 %v1469, %v1569
    %v1586 = vadd.f32 %v1470, %v1570
    %v1587 = vadd.f32 %v1471, %v1571
    %vm1588 = vmand %vm1340, %vm1160
    %vm1589 = vmand %vm1341, %vm1161
    %vm1590 = vmand %vm1342, %vm1162
    %vm1591 = vmand %vm1343, %vm1163
    %vm1592 = vmand %vm1344, %vm1164
    %vm1593 = vmand %vm1345, %vm1165
    %vm1594 = vmand %vm1346, %vm1166
    %vm1595 = vmand %vm1347, %vm1167
    %vm1596 = vmand %vm1348, %vm1168
    %vm1597 = vmand %vm1349, %vm1169
    %vm1598 = vmand %vm1350, %vm1170
    %vm1599 = vmand %vm1351, %vm1171
    %vm1600 = vmand %vm1352, %vm1172
    %vm1601 = vmand %vm1353, %vm1173
    %vm1602 = vmand %vm1354, %vm1174
    %vm1603 = vmand %vm1355, %vm1175
    %vm1604 = vmand %vm1588, %vm1192
    %vm1605 = vmand %vm1589, %vm1193
    %vm1606 = vmand %vm1590, %vm1194
    %vm1607 = vmand %vm1591, %vm1195
    %vm1608 = vmand %vm1592, %vm1196
    %vm1609 = vmand %vm1593, %vm1197
    %vm1610 = vmand %vm1594, %vm1198
    %vm1611 = vmand %vm1595, %vm1199
    %vm1612 = vmand %vm1596, %vm1200
    %vm1613 = vmand %vm1597, %vm1201
    %vm1614 = vmand %vm1598, %vm1202
    %vm1615 = vmand %vm1599, %vm1203
    %vm1616 = vmand %vm1600, %vm1204
    %vm1617 = vmand %vm1601, %vm1205
    %vm1618 = vmand %vm1602, %vm1206
    %vm1619 = vmand %vm1603, %vm1207
    %v1620 = vsel %vm1604, 1, 0
    %v1621 = vsel %vm1605, 1, 0
    %v1622 = vsel %vm1606, 1, 0
    %v1623 = vsel %vm1607, 1, 0
    %v1624 = vsel %vm1608, 1, 0
    %v1625 = vsel %vm1609, 1, 0
    %v1626 = vsel %vm1610, 1, 0
    %v1627 = vsel %vm1611, 1, 0
    %v1628 = vsel %vm1612, 1, 0
    %v1629 = vsel %vm1613, 1, 0
    %v1630 = vsel %vm1614, 1, 0
    %v1631 = vsel %vm1615, 1, 0
    %v1632 = vsel %vm1616, 1, 0
    %v1633 = vsel %vm1617, 1, 0
    %v1634 = vsel %vm1618, 1, 0
    %v1635 = vsel %vm1619, 1, 0
    %v1636 = vcvt.s32.f32 %v1620
    %v1637 = vcvt.s32.f32 %v1621
    %v1638 = vcvt.s32.f32 %v1622
    %v1639 = vcvt.s32.f32 %v1623
    %v1640 = vcvt.s32.f32 %v1624
    %v1641 = vcvt.s32.f32 %v1625
    %v1642 = vcvt.s32.f32 %v1626
    %v1643 = vcvt.s32.f32 %v1627
    %v1644 = vcvt.s32.f32 %v1628
    %v1645 = vcvt.s32.f32 %v1629
    %v1646 = vcvt.s32.f32 %v1630
    %v1647 = vcvt.s32.f32 %v1631
    %v1648 = vcvt.s32.f32 %v1632
    %v1649 = vcvt.s32.f32 %v1633
    %v1650 = vcvt.s32.f32 %v1634
    %v1651 = vcvt.s32.f32 %v1635
    %v1652 = vmul.f32 %v1142, %v1636
    %v1653 = vmul.f32 %v1141, %v1637
    %v1654 = vmul.f32 %v1140, %v1638
    %v1655 = vmul.f32 %v1139, %v1639
    %v1656 = vmul.f32 %v1138, %v1640
    %v1657 = vmul.f32 %v1137, %v1641
    %v1658 = vmul.f32 %v1136, %v1642
    %v1659 = vmul.f32 %v1135, %v1643
    %v1660 = vmul.f32 %v1134, %v1644
    %v1661 = vmul.f32 %v1133, %v1645
    %v1662 = vmul.f32 %v1132, %v1646
    %v1663 = vmul.f32 %v1131, %v1647
    %v1664 = vmul.f32 %v1130, %v1648
    %v1665 = vmul.f32 %v1129, %v1649
    %v1666 = vmul.f32 %v1128, %v1650
    %v1667 = vmul.f32 %v1143, %v1651
    %v1668 = vlaneseq
    %v1669 = vshrl.u32 %v1668, 7
    %v1670 = vsub.s32 5, %v1669
    %v1671 = vrot.slane %v635, %v1670
    %v1672 = vmul.f32 %v1652, %v1671
    %v1673 = vmul.f32 %v1653, %v1671
    %v1674 = vmul.f32 %v1654, %v1671
    %v1675 = vmul.f32 %v1655, %v1671
    %v1676 = vmul.f32 %v1656, %v1671
    %v1677 = vmul.f32 %v1657, %v1671
    %v1678 = vmul.f32 %v1658, %v1671
    %v1679 = vmul.f32 %v1659, %v1671
    %v1680 = vmul.f32 %v1660, %v1671
    %v1681 = vmul.f32 %v1661, %v1671
    %v1682 = vmul.f32 %v1662, %v1671
    %v1683 = vmul.f32 %v1663, %v1671
    %v1684 = vmul.f32 %v1664, %v1671
    %v1685 = vmul.f32 %v1665, %v1671
    %v1686 = vmul.f32 %v1666, %v1671
    %v1687 = vmul.f32 %v1667, %v1671
    %v1688 = vadd.f32 %v1572, %v1672
    %v1689 = vadd.f32 %v1573, %v1673
    %v1690 = vadd.f32 %v1574, %v1674
    %v1691 = vadd.f32 %v1575, %v1675
    %v1692 = vadd.f32 %v1576, %v1676
    %v1693 = vadd.f32 %v1577, %v1677
    %v1694 = vadd.f32 %v1578, %v1678
    %v1695 = vadd.f32 %v1579, %v1679
    %v1696 = vadd.f32 %v1580, %v1680
    %v1697 = vadd.f32 %v1581, %v1681
    %v1698 = vadd.f32 %v1582, %v1682
    %v1699 = vadd.f32 %v1583, %v1683
    %v1700 = vadd.f32 %v1584, %v1684
    %v1701 = vadd.f32 %v1585, %v1685
    %v1702 = vadd.f32 %v1586, %v1686
    %v1703 = vadd.f32 %v1587, %v1687
    %v1704 = vadd.s32 %v686, 1
    %v1705 = vadd.s32 %v687, 1
    %v1706 = vadd.s32 %v688, 1
    %v1707 = vadd.s32 %v689, 1
    %v1708 = vadd.s32 %v690, 1
    %v1709 = vadd.s32 %v691, 1
    %v1710 = vadd.s32 %v692, 1
    %v1711 = vadd.s32 %v693, 1
    %v1712 = vadd.s32 %v694, 1
    %v1713 = vadd.s32 %v695, 1
    %v1714 = vadd.s32 %v696, 1
    %v1715 = vadd.s32 %v697, 1
    %v1716 = vadd.s32 %v698, 1
    %v1717 = vadd.s32 %v699, 1
    %v1718 = vadd.s32 %v700, 1
    %v1719 = vadd.s32 %v701, 1
    %vm1720 = vcmp.ge.s32.totalorder %v1704, 0
    %vm1721 = vcmp.ge.s32.totalorder %v1705, 0
    %vm1722 = vcmp.ge.s32.totalorder %v1706, 0
    %vm1723 = vcmp.ge.s32.totalorder %v1707, 0
    %vm1724 = vcmp.ge.s32.totalorder %v1708, 0
    %vm1725 = vcmp.ge.s32.totalorder %v1709, 0
    %vm1726 = vcmp.ge.s32.totalorder %v1710, 0
    %vm1727 = vcmp.ge.s32.totalorder %v1711, 0
    %vm1728 = vcmp.ge.s32.totalorder %v1712, 0
    %vm1729 = vcmp.ge.s32.totalorder %v1713, 0
    %vm1730 = vcmp.ge.s32.totalorder %v1714, 0
    %vm1731 = vcmp.ge.s32.totalorder %v1715, 0
    %vm1732 = vcmp.ge.s32.totalorder %v1716, 0
    %vm1733 = vcmp.ge.s32.totalorder %v1717, 0
    %vm1734 = vcmp.ge.s32.totalorder %v1718, 0
    %vm1735 = vcmp.ge.s32.totalorder %v1719, 0
    %vm1736 = vcmp.lt.s32.totalorder %v1704, 8
    %vm1737 = vcmp.lt.s32.totalorder %v1705, 8
    %vm1738 = vcmp.lt.s32.totalorder %v1706, 8
    %vm1739 = vcmp.lt.s32.totalorder %v1707, 8
    %vm1740 = vcmp.lt.s32.totalorder %v1708, 8
    %vm1741 = vcmp.lt.s32.totalorder %v1709, 8
    %vm1742 = vcmp.lt.s32.totalorder %v1710, 8
    %vm1743 = vcmp.lt.s32.totalorder %v1711, 8
    %vm1744 = vcmp.lt.s32.totalorder %v1712, 8
    %vm1745 = vcmp.lt.s32.totalorder %v1713, 8
    %vm1746 = vcmp.lt.s32.totalorder %v1714, 8
    %vm1747 = vcmp.lt.s32.totalorder %v1715, 8
    %vm1748 = vcmp.lt.s32.totalorder %v1716, 8
    %vm1749 = vcmp.lt.s32.totalorder %v1717, 8
    %vm1750 = vcmp.lt.s32.totalorder %v1718, 8
    %vm1751 = vcmp.lt.s32.totalorder %v1719, 8
    %vm1752 = vmand %vm1720, %vm1736
    %vm1753 = vmand %vm1721, %vm1737
    %vm1754 = vmand %vm1722, %vm1738
    %vm1755 = vmand %vm1723, %vm1739
    %vm1756 = vmand %vm1724, %vm1740
    %vm1757 = vmand %vm1725, %vm1741
    %vm1758 = vmand %vm1726, %vm1742
    %vm1759 = vmand %vm1727, %vm1743
    %vm1760 = vmand %vm1728, %vm1744
    %vm1761 = vmand %vm1729, %vm1745
    %vm1762 = vmand %vm1730, %vm1746
    %vm1763 = vmand %vm1731, %vm1747
    %vm1764 = vmand %vm1732, %vm1748
    %vm1765 = vmand %vm1733, %vm1749
    %vm1766 = vmand %vm1734, %vm1750
    %vm1767 = vmand %vm1735, %vm1751
    %vm1768 = vmand %vm1752, %vm815
    %vm1769 = vmand %vm1753, %vm816
    %vm1770 = vmand %vm1754, %vm817
    %vm1771 = vmand %vm1755, %vm818
    %vm1772 = vmand %vm1756, %vm819
    %vm1773 = vmand %vm1757, %vm820
    %vm1774 = vmand %vm1758, %vm821
    %vm1775 = vmand %vm1759, %vm822
    %vm1776 = vmand %vm1760, %vm823
    %vm1777 = vmand %vm1761, %vm824
    %vm1778 = vmand %vm1762, %vm825
    %vm1779 = vmand %vm1763, %vm826
    %vm1780 = vmand %vm1764, %vm827
    %vm1781 = vmand %vm1765, %vm828
    %vm1782 = vmand %vm1766, %vm829
    %vm1783 = vmand %vm1767, %vm830
    %vm1784 = vmand %vm1768, %vm847
    %vm1785 = vmand %vm1769, %vm848
    %vm1786 = vmand %vm1770, %vm849
    %vm1787 = vmand %vm1771, %vm850
    %vm1788 = vmand %vm1772, %vm851
    %vm1789 = vmand %vm1773, %vm852
    %vm1790 = vmand %vm1774, %vm853
    %vm1791 = vmand %vm1775, %vm854
    %vm1792 = vmand %vm1776, %vm855
    %vm1793 = vmand %vm1777, %vm856
    %vm1794 = vmand %vm1778, %vm857
    %vm1795 = vmand %vm1779, %vm858
    %vm1796 = vmand %vm1780, %vm859
    %vm1797 = vmand %vm1781, %vm860
    %vm1798 = vmand %vm1782, %vm861
    %vm1799 = vmand %vm1783, %vm862
    %v1800 = vsel %vm1784, 1, 0
    %v1801 = vsel %vm1785, 1, 0
    %v1802 = vsel %vm1786, 1, 0
    %v1803 = vsel %vm1787, 1, 0
    %v1804 = vsel %vm1788, 1, 0
    %v1805 = vsel %vm1789, 1, 0
    %v1806 = vsel %vm1790, 1, 0
    %v1807 = vsel %vm1791, 1, 0
    %v1808 = vsel %vm1792, 1, 0
    %v1809 = vsel %vm1793, 1, 0
    %v1810 = vsel %vm1794, 1, 0
    %v1811 = vsel %vm1795, 1, 0
    %v1812 = vsel %vm1796, 1, 0
    %v1813 = vsel %vm1797, 1, 0
    %v1814 = vsel %vm1798, 1, 0
    %v1815 = vsel %vm1799, 1, 0
    %v1816 = vcvt.s32.f32 %v1800
    %v1817 = vcvt.s32.f32 %v1801
    %v1818 = vcvt.s32.f32 %v1802
    %v1819 = vcvt.s32.f32 %v1803
    %v1820 = vcvt.s32.f32 %v1804
    %v1821 = vcvt.s32.f32 %v1805
    %v1822 = vcvt.s32.f32 %v1806
    %v1823 = vcvt.s32.f32 %v1807
    %v1824 = vcvt.s32.f32 %v1808
    %v1825 = vcvt.s32.f32 %v1809
    %v1826 = vcvt.s32.f32 %v1810
    %v1827 = vcvt.s32.f32 %v1811
    %v1828 = vcvt.s32.f32 %v1812
    %v1829 = vcvt.s32.f32 %v1813
    %v1830 = vcvt.s32.f32 %v1814
    %v1831 = vcvt.s32.f32 %v1815
    %v1832 = vmul.f32 %v733, %v1816
    %v1833 = vmul.f32 %v732, %v1817
    %v1834 = vmul.f32 %v731, %v1818
    %v1835 = vmul.f32 %v730, %v1819
    %v1836 = vmul.f32 %v729, %v1820
    %v1837 = vmul.f32 %v728, %v1821
    %v1838 = vmul.f32 %v727, %v1822
    %v1839 = vmul.f32 %v726, %v1823
    %v1840 = vmul.f32 %v725, %v1824
    %v1841 = vmul.f32 %v724, %v1825
    %v1842 = vmul.f32 %v723, %v1826
    %v1843 = vmul.f32 %v722, %v1827
    %v1844 = vmul.f32 %v721, %v1828
    %v1845 = vmul.f32 %v720, %v1829
    %v1846 = vmul.f32 %v719, %v1830
    %v1847 = vmul.f32 %v734, %v1831
    %v1848 = vlaneseq
    %v1849 = vshrl.u32 %v1848, 7
    %v1850 = vsub.s32 6, %v1849
    %v1851 = vrot.slane %v635, %v1850
    %v1852 = vmul.f32 %v1832, %v1851
    %v1853 = vmul.f32 %v1833, %v1851
    %v1854 = vmul.f32 %v1834, %v1851
    %v1855 = vmul.f32 %v1835, %v1851
    %v1856 = vmul.f32 %v1836, %v1851
    %v1857 = vmul.f32 %v1837, %v1851
    %v1858 = vmul.f32 %v1838, %v1851
    %v1859 = vmul.f32 %v1839, %v1851
    %v1860 = vmul.f32 %v1840, %v1851
    %v1861 = vmul.f32 %v1841, %v1851
    %v1862 = vmul.f32 %v1842, %v1851
    %v1863 = vmul.f32 %v1843, %v1851
    %v1864 = vmul.f32 %v1844, %v1851
    %v1865 = vmul.f32 %v1845, %v1851
    %v1866 = vmul.f32 %v1846, %v1851
    %v1867 = vmul.f32 %v1847, %v1851
    %v1868 = vadd.f32 %v1688, %v1852
    %v1869 = vadd.f32 %v1689, %v1853
    %v1870 = vadd.f32 %v1690, %v1854
    %v1871 = vadd.f32 %v1691, %v1855
    %v1872 = vadd.f32 %v1692, %v1856
    %v1873 = vadd.f32 %v1693, %v1857
    %v1874 = vadd.f32 %v1694, %v1858
    %v1875 = vadd.f32 %v1695, %v1859
    %v1876 = vadd.f32 %v1696, %v1860
    %v1877 = vadd.f32 %v1697, %v1861
    %v1878 = vadd.f32 %v1698, %v1862
    %v1879 = vadd.f32 %v1699, %v1863
    %v1880 = vadd.f32 %v1700, %v1864
    %v1881 = vadd.f32 %v1701, %v1865
    %v1882 = vadd.f32 %v1702, %v1866
    %v1883 = vadd.f32 %v1703, %v1867
    %vm1884 = vmand %vm1752, %vm963
    %vm1885 = vmand %vm1753, %vm964
    %vm1886 = vmand %vm1754, %vm965
    %vm1887 = vmand %vm1755, %vm966
    %vm1888 = vmand %vm1756, %vm967
    %vm1889 = vmand %vm1757, %vm968
    %vm1890 = vmand %vm1758, %vm969
    %vm1891 = vmand %vm1759, %vm970
    %vm1892 = vmand %vm1760, %vm971
    %vm1893 = vmand %vm1761, %vm972
    %vm1894 = vmand %vm1762, %vm973
    %vm1895 = vmand %vm1763, %vm974
    %vm1896 = vmand %vm1764, %vm975
    %vm1897 = vmand %vm1765, %vm976
    %vm1898 = vmand %vm1766, %vm977
    %vm1899 = vmand %vm1767, %vm978
    %vm1900 = vmand %vm1884, %vm995
    %vm1901 = vmand %vm1885, %vm996
    %vm1902 = vmand %vm1886, %vm997
    %vm1903 = vmand %vm1887, %vm998
    %vm1904 = vmand %vm1888, %vm999
    %vm1905 = vmand %vm1889, %vm1000
    %vm1906 = vmand %vm1890, %vm1001
    %vm1907 = vmand %vm1891, %vm1002
    %vm1908 = vmand %vm1892, %vm1003
    %vm1909 = vmand %vm1893, %vm1004
    %vm1910 = vmand %vm1894, %vm1005
    %vm1911 = vmand %vm1895, %vm1006
    %vm1912 = vmand %vm1896, %vm1007
    %vm1913 = vmand %vm1897, %vm1008
    %vm1914 = vmand %vm1898, %vm1009
    %vm1915 = vmand %vm1899, %vm1010
    %v1916 = vsel %vm1900, 1, 0
    %v1917 = vsel %vm1901, 1, 0
    %v1918 = vsel %vm1902, 1, 0
    %v1919 = vsel %vm1903, 1, 0
    %v1920 = vsel %vm1904, 1, 0
    %v1921 = vsel %vm1905, 1, 0
    %v1922 = vsel %vm1906, 1, 0
    %v1923 = vsel %vm1907, 1, 0
    %v1924 = vsel %vm1908, 1, 0
    %v1925 = vsel %vm1909, 1, 0
    %v1926 = vsel %vm1910, 1, 0
    %v1927 = vsel %vm1911, 1, 0
    %v1928 = vsel %vm1912, 1, 0
    %v1929 = vsel %vm1913, 1, 0
    %v1930 = vsel %vm1914, 1, 0
    %v1931 = vsel %vm1915, 1, 0
    %v1932 = vcvt.s32.f32 %v1916
    %v1933 = vcvt.s32.f32 %v1917
    %v1934 = vcvt.s32.f32 %v1918
    %v1935 = vcvt.s32.f32 %v1919
    %v1936 = vcvt.s32.f32 %v1920
    %v1937 = vcvt.s32.f32 %v1921
    %v1938 = vcvt.s32.f32 %v1922
    %v1939 = vcvt.s32.f32 %v1923
    %v1940 = vcvt.s32.f32 %v1924
    %v1941 = vcvt.s32.f32 %v1925
    %v1942 = vcvt.s32.f32 %v1926
    %v1943 = vcvt.s32.f32 %v1927
    %v1944 = vcvt.s32.f32 %v1928
    %v1945 = vcvt.s32.f32 %v1929
    %v1946 = vcvt.s32.f32 %v1930
    %v1947 = vcvt.s32.f32 %v1931
    %v1948 = vmul.f32 %v620, %v1932
    %v1949 = vmul.f32 %v621, %v1933
    %v1950 = vmul.f32 %v622, %v1934
    %v1951 = vmul.f32 %v623, %v1935
    %v1952 = vmul.f32 %v624, %v1936
    %v1953 = vmul.f32 %v625, %v1937
    %v1954 = vmul.f32 %v626, %v1938
    %v1955 = vmul.f32 %v627, %v1939
    %v1956 = vmul.f32 %v628, %v1940
    %v1957 = vmul.f32 %v629, %v1941
    %v1958 = vmul.f32 %v630, %v1942
    %v1959 = vmul.f32 %v631, %v1943
    %v1960 = vmul.f32 %v632, %v1944
    %v1961 = vmul.f32 %v633, %v1945
    %v1962 = vmul.f32 %v634, %v1946
    %v1963 = vmul.f32 %v619, %v1947
    %v1964 = vlaneseq
    %v1965 = vshrl.u32 %v1964, 7
    %v1966 = vsub.s32 7, %v1965
    %v1967 = vrot.slane %v635, %v1966
    %v1968 = vmul.f32 %v1948, %v1967
    %v1969 = vmul.f32 %v1949, %v1967
    %v1970 = vmul.f32 %v1950, %v1967
    %v1971 = vmul.f32 %v1951, %v1967
    %v1972 = vmul.f32 %v1952, %v1967
    %v1973 = vmul.f32 %v1953, %v1967
    %v1974 = vmul.f32 %v1954, %v1967
    %v1975 = vmul.f32 %v1955, %v1967
    %v1976 = vmul.f32 %v1956, %v1967
    %v1977 = vmul.f32 %v1957, %v1967
    %v1978 = vmul.f32 %v1958, %v1967
    %v1979 = vmul.f32 %v1959, %v1967
    %v1980 = vmul.f32 %v1960, %v1967
    %v1981 = vmul.f32 %v1961, %v1967
    %v1982 = vmul.f32 %v1962, %v1967
    %v1983 = vmul.f32 %v1963, %v1967
    %v1984 = vadd.f32 %v1868, %v1968
    %v1985 = vadd.f32 %v1869, %v1969
    %v1986 = vadd.f32 %v1870, %v1970
    %v1987 = vadd.f32 %v1871, %v1971
    %v1988 = vadd.f32 %v1872, %v1972
    %v1989 = vadd.f32 %v1873, %v1973
    %v1990 = vadd.f32 %v1874, %v1974
    %v1991 = vadd.f32 %v1875, %v1975
    %v1992 = vadd.f32 %v1876, %v1976
    %v1993 = vadd.f32 %v1877, %v1977
    %v1994 = vadd.f32 %v1878, %v1978
    %v1995 = vadd.f32 %v1879, %v1979
    %v1996 = vadd.f32 %v1880, %v1980
    %v1997 = vadd.f32 %v1881, %v1981
    %v1998 = vadd.f32 %v1882, %v1982
    %v1999 = vadd.f32 %v1883, %v1983
    %vm2000 = vmand %vm1752, %vm1160
    %vm2001 = vmand %vm1753, %vm1161
    %vm2002 = vmand %vm1754, %vm1162
    %vm2003 = vmand %vm1755, %vm1163
    %vm2004 = vmand %vm1756, %vm1164
    %vm2005 = vmand %vm1757, %vm1165
    %vm2006 = vmand %vm1758, %vm1166
    %vm2007 = vmand %vm1759, %vm1167
    %vm2008 = vmand %vm1760, %vm1168
    %vm2009 = vmand %vm1761, %vm1169
    %vm2010 = vmand %vm1762, %vm1170
    %vm2011 = vmand %vm1763, %vm1171
    %vm2012 = vmand %vm1764, %vm1172
    %vm2013 = vmand %vm1765, %vm1173
    %vm2014 = vmand %vm1766, %vm1174
    %vm2015 = vmand %vm1767, %vm1175
    %vm2016 = vmand %vm2000, %vm1192
    %vm2017 = vmand %vm2001, %vm1193
    %vm2018 = vmand %vm2002, %vm1194
    %vm2019 = vmand %vm2003, %vm1195
    %vm2020 = vmand %vm2004, %vm1196
    %vm2021 = vmand %vm2005, %vm1197
    %vm2022 = vmand %vm2006, %vm1198
    %vm2023 = vmand %vm2007, %vm1199
    %vm2024 = vmand %vm2008, %vm1200
    %vm2025 = vmand %vm2009, %vm1201
    %vm2026 = vmand %vm2010, %vm1202
    %vm2027 = vmand %vm2011, %vm1203
    %vm2028 = vmand %vm2012, %vm1204
    %vm2029 = vmand %vm2013, %vm1205
    %vm2030 = vmand %vm2014, %vm1206
    %vm2031 = vmand %vm2015, %vm1207
    %v2032 = vsel %vm2016, 1, 0
    %v2033 = vsel %vm2017, 1, 0
    %v2034 = vsel %vm2018, 1, 0
    %v2035 = vsel %vm2019, 1, 0
    %v2036 = vsel %vm2020, 1, 0
    %v2037 = vsel %vm2021, 1, 0
    %v2038 = vsel %vm2022, 1, 0
    %v2039 = vsel %vm2023, 1, 0
    %v2040 = vsel %vm2024, 1, 0
    %v2041 = vsel %vm2025, 1, 0
    %v2042 = vsel %vm2026, 1, 0
    %v2043 = vsel %vm2027, 1, 0
    %v2044 = vsel %vm2028, 1, 0
    %v2045 = vsel %vm2029, 1, 0
    %v2046 = vsel %vm2030, 1, 0
    %v2047 = vsel %vm2031, 1, 0
    %v2048 = vcvt.s32.f32 %v2032
    %v2049 = vcvt.s32.f32 %v2033
    %v2050 = vcvt.s32.f32 %v2034
    %v2051 = vcvt.s32.f32 %v2035
    %v2052 = vcvt.s32.f32 %v2036
    %v2053 = vcvt.s32.f32 %v2037
    %v2054 = vcvt.s32.f32 %v2038
    %v2055 = vcvt.s32.f32 %v2039
    %v2056 = vcvt.s32.f32 %v2040
    %v2057 = vcvt.s32.f32 %v2041
    %v2058 = vcvt.s32.f32 %v2042
    %v2059 = vcvt.s32.f32 %v2043
    %v2060 = vcvt.s32.f32 %v2044
    %v2061 = vcvt.s32.f32 %v2045
    %v2062 = vcvt.s32.f32 %v2046
    %v2063 = vcvt.s32.f32 %v2047
    %v2064 = vmul.f32 %v1141, %v2048
    %v2065 = vmul.f32 %v1140, %v2049
    %v2066 = vmul.f32 %v1139, %v2050
    %v2067 = vmul.f32 %v1138, %v2051
    %v2068 = vmul.f32 %v1137, %v2052
    %v2069 = vmul.f32 %v1136, %v2053
    %v2070 = vmul.f32 %v1135, %v2054
    %v2071 = vmul.f32 %v1134, %v2055
    %v2072 = vmul.f32 %v1133, %v2056
    %v2073 = vmul.f32 %v1132, %v2057
    %v2074 = vmul.f32 %v1131, %v2058
    %v2075 = vmul.f32 %v1130, %v2059
    %v2076 = vmul.f32 %v1129, %v2060
    %v2077 = vmul.f32 %v1128, %v2061
    %v2078 = vmul.f32 %v1143, %v2062
    %v2079 = vmul.f32 %v1142, %v2063
    %v2080 = vlaneseq
    %v2081 = vshrl.u32 %v2080, 7
    %v2082 = vsub.s32 0, %v2081
    %v2083 = vrot.slane %v636, %v2082
    %v2084 = vmul.f32 %v2064, %v2083
    %v2085 = vmul.f32 %v2065, %v2083
    %v2086 = vmul.f32 %v2066, %v2083
    %v2087 = vmul.f32 %v2067, %v2083
    %v2088 = vmul.f32 %v2068, %v2083
    %v2089 = vmul.f32 %v2069, %v2083
    %v2090 = vmul.f32 %v2070, %v2083
    %v2091 = vmul.f32 %v2071, %v2083
    %v2092 = vmul.f32 %v2072, %v2083
    %v2093 = vmul.f32 %v2073, %v2083
    %v2094 = vmul.f32 %v2074, %v2083
    %v2095 = vmul.f32 %v2075, %v2083
    %v2096 = vmul.f32 %v2076, %v2083
    %v2097 = vmul.f32 %v2077, %v2083
    %v2098 = vmul.f32 %v2078, %v2083
    %v2099 = vmul.f32 %v2079, %v2083
    %v2100 = vadd.f32 %v1984, %v2084
    %v2101 = vadd.f32 %v1985, %v2085
    %v2102 = vadd.f32 %v1986, %v2086
    %v2103 = vadd.f32 %v1987, %v2087
    %v2104 = vadd.f32 %v1988, %v2088
    %v2105 = vadd.f32 %v1989, %v2089
    %v2106 = vadd.f32 %v1990, %v2090
    %v2107 = vadd.f32 %v1991, %v2091
    %v2108 = vadd.f32 %v1992, %v2092
    %v2109 = vadd.f32 %v1993, %v2093
    %v2110 = vadd.f32 %v1994, %v2094
    %v2111 = vadd.f32 %v1995, %v2095
    %v2112 = vadd.f32 %v1996, %v2096
    %v2113 = vadd.f32 %v1997, %v2097
    %v2114 = vadd.f32 %v1998, %v2098
    %v2115 = vadd.f32 %v1999, %v2099
    %v2116 = vld [vmem:[%s6] sm:$0x1]
    %v2118 = vlaneseq
    %v2119 = vshrl.u32 %v2118, 7
    %v2120 = vsub.s32 0, %v2119
    %v2121 = vrot.slane %v2116, %v2120
    %v2123 = vadd.f32 %v2100, %v2121
    %v2124 = vadd.f32 %v2101, %v2121
    %v2125 = vadd.f32 %v2102, %v2121
    %v2126 = vadd.f32 %v2103, %v2121
    %v2127 = vadd.f32 %v2104, %v2121
    %v2128 = vadd.f32 %v2105, %v2121
    %v2129 = vadd.f32 %v2106, %v2121
    %v2130 = vadd.f32 %v2107, %v2121
    %v2131 = vadd.f32 %v2108, %v2121
    %v2132 = vadd.f32 %v2109, %v2121
    %v2133 = vadd.f32 %v2110, %v2121
    %v2134 = vadd.f32 %v2111, %v2121
    %v2135 = vadd.f32 %v2112, %v2121
    %v2136 = vadd.f32 %v2113, %v2121
    %v2137 = vadd.f32 %v2114, %v2121
    %v2138 = vadd.f32 %v2115, %v2121
    %v2139 = vxor.u32 %v2123, 2147483648
    %v2140 = vxor.u32 %v2124, 2147483648
    %v2141 = vxor.u32 %v2125, 2147483648
    %v2142 = vxor.u32 %v2126, 2147483648
    %v2143 = vxor.u32 %v2127, 2147483648
    %v2144 = vxor.u32 %v2128, 2147483648
    %v2145 = vxor.u32 %v2129, 2147483648
    %v2146 = vxor.u32 %v2130, 2147483648
    %v2147 = vxor.u32 %v2131, 2147483648
    %v2148 = vxor.u32 %v2132, 2147483648
    %v2149 = vxor.u32 %v2133, 2147483648
    %v2150 = vxor.u32 %v2134, 2147483648
    %v2151 = vxor.u32 %v2135, 2147483648
    %v2152 = vxor.u32 %v2136, 2147483648
    %v2153 = vxor.u32 %v2137, 2147483648
    %v2154 = vxor.u32 %v2138, 2147483648
    %v2155 = vmul.f32 %v2139, 1.442695
    %v2156 = vpow.pop %v2155
    %v2157 = vmul.f32 %v2140, 1.442695
    %v2158 = vpow.pop %v2157
    %v2159 = vmul.f32 %v2141, 1.442695
    %v2160 = vpow.pop %v2159
    %v2161 = vmul.f32 %v2142, 1.442695
    %v2162 = vpow.pop %v2161
    %v2163 = vmul.f32 %v2143, 1.442695
    %v2164 = vpow.pop %v2163
    %v2165 = vmul.f32 %v2144, 1.442695
    %v2166 = vpow.pop %v2165
    %v2167 = vmul.f32 %v2145, 1.442695
    %v2168 = vpow.pop %v2167
    %v2169 = vmul.f32 %v2146, 1.442695
    %v2170 = vpow.pop %v2169
    %v2171 = vmul.f32 %v2147, 1.442695
    %v2172 = vpow.pop %v2171
    %v2173 = vmul.f32 %v2148, 1.442695
    %v2174 = vpow.pop %v2173
    %v2175 = vmul.f32 %v2149, 1.442695
    %v2176 = vpow.pop %v2175
    %v2177 = vmul.f32 %v2150, 1.442695
    %v2178 = vpow.pop %v2177
    %v2179 = vmul.f32 %v2151, 1.442695
    %v2180 = vpow.pop %v2179
    %v2181 = vmul.f32 %v2152, 1.442695
    %v2182 = vpow.pop %v2181
    %v2183 = vmul.f32 %v2153, 1.442695
    %v2184 = vpow.pop %v2183
    %v2185 = vmul.f32 %v2154, 1.442695
    %v2186 = vpow.pop %v2185
    %v2187 = vadd.f32 %v2156, 1.0
    %v2188 = vadd.f32 %v2158, 1.0
    %v2189 = vadd.f32 %v2160, 1.0
    %v2190 = vadd.f32 %v2162, 1.0
    %v2191 = vadd.f32 %v2164, 1.0
    %v2192 = vadd.f32 %v2166, 1.0
    %v2193 = vadd.f32 %v2168, 1.0
    %v2194 = vadd.f32 %v2170, 1.0
    %v2195 = vadd.f32 %v2172, 1.0
    %v2196 = vadd.f32 %v2174, 1.0
    %v2197 = vadd.f32 %v2176, 1.0
    %v2198 = vadd.f32 %v2178, 1.0
    %v2199 = vadd.f32 %v2180, 1.0
    %v2200 = vadd.f32 %v2182, 1.0
    %v2201 = vadd.f32 %v2184, 1.0
    %v2202 = vadd.f32 %v2186, 1.0
    %v2203 = vrcp.pop %v2187
    %v2204 = vmul.f32 1.0, %v2203
    %v2205 = vrcp.pop %v2188
    %v2206 = vmul.f32 1.0, %v2205
    %v2207 = vrcp.pop %v2189
    %v2208 = vmul.f32 1.0, %v2207
    %v2209 = vrcp.pop %v2190
    %v2210 = vmul.f32 1.0, %v2209
    %v2211 = vrcp.pop %v2191
    %v2212 = vmul.f32 1.0, %v2211
    %v2213 = vrcp.pop %v2192
    %v2214 = vmul.f32 1.0, %v2213
    %v2215 = vrcp.pop %v2193
    %v2216 = vmul.f32 1.0, %v2215
    %v2217 = vrcp.pop %v2194
    %v2218 = vmul.f32 1.0, %v2217
    %v2219 = vrcp.pop %v2195
    %v2220 = vmul.f32 1.0, %v2219
    %v2221 = vrcp.pop %v2196
    %v2222 = vmul.f32 1.0, %v2221
    %v2223 = vrcp.pop %v2197
    %v2224 = vmul.f32 1.0, %v2223
    %v2225 = vrcp.pop %v2198
    %v2226 = vmul.f32 1.0, %v2225
    %v2227 = vrcp.pop %v2199
    %v2228 = vmul.f32 1.0, %v2227
    %v2229 = vrcp.pop %v2200
    %v2230 = vmul.f32 1.0, %v2229
    %v2231 = vrcp.pop %v2201
    %v2232 = vmul.f32 1.0, %v2231
    %v2233 = vrcp.pop %v2202
    %v2234 = vmul.f32 1.0, %v2233
    %v2235 = vmul.f32 %v2123, %v2204
    %v2236 = vmul.f32 %v2124, %v2206
    %v2237 = vmul.f32 %v2125, %v2208
    %v2238 = vmul.f32 %v2126, %v2210
    %v2239 = vmul.f32 %v2127, %v2212
    %v2240 = vmul.f32 %v2128, %v2214
    %v2241 = vmul.f32 %v2129, %v2216
    %v2242 = vmul.f32 %v2130, %v2218
    %v2243 = vmul.f32 %v2131, %v2220
    %v2244 = vmul.f32 %v2132, %v2222
    %v2245 = vmul.f32 %v2133, %v2224
    %v2246 = vmul.f32 %v2134, %v2226
    %v2247 = vmul.f32 %v2135, %v2228
    %v2248 = vmul.f32 %v2136, %v2230
    %v2249 = vmul.f32 %v2137, %v2232
    %v2250 = vmul.f32 %v2138, %v2234
    %v2251 = vld [vmem:[%s15] sm:$0x3]
    %2252 = vmatprep.subr.mxu0 0.0
    %2253 = vmatpush1.msra.mxu0 %v2250
    %2254 = vmatprep.subr.mxu0 0.0
    %2255 = vmatpush1.msra.mxu0 %v2249
    %2256 = vmatprep.subr.mxu0 0.0
    %2257 = vmatpush1.msra.mxu0 %v2248
    %2258 = vmatprep.subr.mxu0 0.0
    %2259 = vmatpush1.msra.mxu0 %v2247
    %2260 = vmatprep.subr.mxu0 0.0
    %2261 = vmatpush1.msra.mxu0 %v2246
    %2262 = vmatprep.subr.mxu0 0.0
    %2263 = vmatpush1.msra.mxu0 %v2245
    %2264 = vmatprep.subr.mxu0 0.0
    %2265 = vmatpush1.msra.mxu0 %v2244
    %2266 = vmatprep.subr.mxu0 0.0
    %2267 = vmatpush1.msra.mxu0 %v2243
    %2268 = vmatprep.subr.mxu0 0.0
    %2269 = vmatpush1.msra.mxu0 %v2242
    %2270 = vmatprep.subr.mxu0 0.0
    %2271 = vmatpush1.msra.mxu0 %v2241
    %2272 = vmatprep.subr.mxu0 0.0
    %2273 = vmatpush1.msra.mxu0 %v2240
    %2274 = vmatprep.subr.mxu0 0.0
    %2275 = vmatpush1.msra.mxu0 %v2239
    %2276 = vmatprep.subr.mxu0 0.0
    %2277 = vmatpush1.msra.mxu0 %v2238
    %2278 = vmatprep.subr.mxu0 0.0
    %2279 = vmatpush1.msra.mxu0 %v2237
    %2280 = vmatprep.subr.mxu0 0.0
    %2281 = vmatpush1.msra.mxu0 %v2236
    %2282 = vmatprep.subr.mxu0 0.0
    %2283 = vmatpush1.msra.mxu0 %v2235
    %2284 = vmatprep.subr.mxu0 0.0
    %2285 = vmatpush2.msra.mxu0 0.0
    %2286 = vmatprep.subr.mxu0 0.0
    %2287 = vmatpush2.msra.mxu0 0.0
    %2288 = vmatprep.subr.mxu0 0.0
    %2289 = vmatpush2.msra.mxu0 0.0
    %2290 = vmatprep.subr.mxu0 0.0
    %2291 = vmatpush2.msra.mxu0 0.0
    %2292 = vmatprep.subr.mxu0 0.0
    %2293 = vmatpush2.msra.mxu0 0.0
    %2294 = vmatprep.subr.mxu0 0.0
    %2295 = vmatpush2.msra.mxu0 0.0
    %2296 = vmatprep.subr.mxu0 0.0
    %2297 = vmatpush2.msra.mxu0 0.0
    %2298 = vmatprep.subr.mxu0 0.0
    %2299 = vmatpush2.msra.mxu0 0.0
    %2300 = vmatprep.subr.mxu0 0.0
    %2301 = vmatpush2.msra.mxu0 0.0
    %2302 = vmatprep.subr.mxu0 0.0
    %2303 = vmatpush2.msra.mxu0 0.0
    %2304 = vmatprep.subr.mxu0 0.0
    %2305 = vmatpush2.msra.mxu0 0.0
    %2306 = vmatprep.subr.mxu0 0.0
    %2307 = vmatpush2.msra.mxu0 0.0
    %2308 = vmatprep.subr.mxu0 0.0
    %2309 = vmatpush2.msra.mxu0 0.0
    %2310 = vmatprep.subr.mxu0 0.0
    %2311 = vmatpush2.msra.mxu0 0.0
    %2312 = vmatprep.subr.mxu0 0.0
    %2313 = vmatpush2.msra.mxu0 0.0
    %2314 = vmatprep.subr.mxu0 0.0
    %2315 = vmatpush2.msra.mxu0 0.0
    %2316 = vmatprep.mubr.f32.mxu0 0.0
    %2317 = vmatmul.mubr.f32.gmra.mxu0 %v2251
    %v2318 = vpop.f32.mrf.mxu0
    %v2319 = vadd.f32 0.0, %v2318
    %v2320 = vpop.f32.mrf.mxu0
    %2321 = vdwg.mxu0
    %v2322 = vld [vmem:[%s7] sm:$0xff]
    %v2323 = vld [vmem:[%s7 + $0x8] sm:$0xff]
    %v2324 = vld [vmem:[%s7 + $0x10] sm:$0xff]
    %v2325 = vld [vmem:[%s7 + $0x18] sm:$0xff]
    %v2326 = vld [vmem:[%s7 + $0x20] sm:$0xff]
    %v2327 = vld [vmem:[%s7 + $0x28] sm:$0xff]
    %v2328 = vld [vmem:[%s7 + $0x30] sm:$0xff]
    %v2329 = vld [vmem:[%s7 + $0x38] sm:$0xff]
    %v2330 = vld [vmem:[%s7 + $0x40] sm:$0xff]
    %v2331 = vld [vmem:[%s7 + $0x48] sm:$0xff]
    %v2332 = vld [vmem:[%s7 + $0x50] sm:$0xff]
    %v2333 = vld [vmem:[%s7 + $0x58] sm:$0xff]
    %v2334 = vld [vmem:[%s7 + $0x60] sm:$0xff]
    %v2335 = vld [vmem:[%s7 + $0x68] sm:$0xff]
    %v2336 = vld [vmem:[%s7 + $0x70] sm:$0xff]
    %v2337 = vld [vmem:[%s7 + $0x78] sm:$0xff]
    %v2338 = vld [vmem:[%s8] sm:$0x1]
    %v2340 = vlaneseq
    %v2341 = vshrl.u32 %v2340, 7
    %v2342 = vsub.s32 0, %v2341
    %v2343 = vrot.slane %v2338, %v2342
    %2345 = vmatprep.subr.mxu0 0.0
    %2346 = vmatpush1.msra.mxu0 %v2337
    %2347 = vmatprep.subr.mxu0 0.0
    %2348 = vmatpush1.msra.mxu0 %v2336
    %2349 = vmatprep.subr.mxu0 0.0
    %2350 = vmatpush1.msra.mxu0 %v2335
    %2351 = vmatprep.subr.mxu0 0.0
    %2352 = vmatpush1.msra.mxu0 %v2334
    %2353 = vmatprep.subr.mxu0 0.0
    %2354 = vmatpush1.msra.mxu0 %v2333
    %2355 = vmatprep.subr.mxu0 0.0
    %2356 = vmatpush1.msra.mxu0 %v2332
    %2357 = vmatprep.subr.mxu0 0.0
    %2358 = vmatpush1.msra.mxu0 %v2331
    %2359 = vmatprep.subr.mxu0 0.0
    %2360 = vmatpush1.msra.mxu0 %v2330
    %2361 = vmatprep.subr.mxu0 0.0
    %2362 = vmatpush1.msra.mxu0 %v2329
    %2363 = vmatprep.subr.mxu0 0.0
    %2364 = vmatpush1.msra.mxu0 %v2328
    %2365 = vmatprep.subr.mxu0 0.0
    %2366 = vmatpush1.msra.mxu0 %v2327
    %2367 = vmatprep.subr.mxu0 0.0
    %2368 = vmatpush1.msra.mxu0 %v2326
    %2369 = vmatprep.subr.mxu0 0.0
    %2370 = vmatpush1.msra.mxu0 %v2325
    %2371 = vmatprep.subr.mxu0 0.0
    %2372 = vmatpush1.msra.mxu0 %v2324
    %2373 = vmatprep.subr.mxu0 0.0
    %2374 = vmatpush1.msra.mxu0 %v2323
    %2375 = vmatprep.subr.mxu0 0.0
    %2376 = vmatpush1.msra.mxu0 %v2322
    %2377 = vmatprep.subr.mxu0 0.0
    %2378 = vmatpush2.msra.mxu0 0.0
    %2379 = vmatprep.subr.mxu0 0.0
    %2380 = vmatpush2.msra.mxu0 0.0
    %2381 = vmatprep.subr.mxu0 0.0
    %2382 = vmatpush2.msra.mxu0 0.0
    %2383 = vmatprep.subr.mxu0 0.0
    %2384 = vmatpush2.msra.mxu0 0.0
    %2385 = vmatprep.subr.mxu0 0.0
    %2386 = vmatpush2.msra.mxu0 0.0
    %2387 = vmatprep.subr.mxu0 0.0
    %2388 = vmatpush2.msra.mxu0 0.0
    %2389 = vmatprep.subr.mxu0 0.0
    %2390 = vmatpush2.msra.mxu0 0.0
    %2391 = vmatprep.subr.mxu0 0.0
    %2392 = vmatpush2.msra.mxu0 0.0
    %2393 = vmatprep.subr.mxu0 0.0
    %2394 = vmatpush2.msra.mxu0 0.0
    %2395 = vmatprep.subr.mxu0 0.0
    %2396 = vmatpush2.msra.mxu0 0.0
    %2397 = vmatprep.subr.mxu0 0.0
    %2398 = vmatpush2.msra.mxu0 0.0
    %2399 = vmatprep.subr.mxu0 0.0
    %2400 = vmatpush2.msra.mxu0 0.0
    %2401 = vmatprep.subr.mxu0 0.0
    %2402 = vmatpush2.msra.mxu0 0.0
    %2403 = vmatprep.subr.mxu0 0.0
    %2404 = vmatpush2.msra.mxu0 0.0
    %2405 = vmatprep.subr.mxu0 0.0
    %2406 = vmatpush2.msra.mxu0 0.0
    %2407 = vmatprep.subr.mxu0 0.0
    %2408 = vmatpush2.msra.mxu0 0.0
    %2409 = vmatprep.mubr.f32.mxu0 0.0
    %2410 = vmatmul.mubr.f32.gmra.mxu0 %v2319
    %v2411 = vpop.f32.mrf.mxu0
    %v2412 = vadd.f32 %v2343, %v2411
    %v2413 = vpop.f32.mrf.mxu0
    %2414 = vdwg.mxu0
    %v2415 = vxor.u32 %v2412, 2147483648
    %v2416 = vmul.f32 %v2415, 1.442695
    %v2417 = vpow.pop %v2416
    %v2418 = vadd.f32 %v2417, 1.0
    %v2419 = vrcp.pop %v2418
    %v2420 = vmul.f32 1.0, %v2419
    %v2421 = vmul.f32 %v2412, %v2420
    %v2422 = vld [vmem:[%s9] sm:$0xff]
    %v2423 = vld [vmem:[%s10] sm:$0x1]
    %v2425 = vlaneseq
    %v2426 = vshrl.u32 %v2425, 7
    %v2427 = vsub.s32 0, %v2426
    %v2428 = vrot.slane %v2423, %v2427
    %vm2430 = vcmask 64512
    %v2432 = vsel %vm2430, %v2421, 0
    %2434 = vmatprep.subr.mxu0 0.0
    %2435 = vmatpush1.msra.mxu0 0.0
    %2436 = vmatprep.subr.mxu0 0.0
    %2437 = vmatpush1.msra.mxu0 0.0
    %2438 = vmatprep.subr.mxu0 0.0
    %2439 = vmatpush1.msra.mxu0 0.0
    %2440 = vmatprep.subr.mxu0 0.0
    %2441 = vmatpush1.msra.mxu0 0.0
    %2442 = vmatprep.subr.mxu0 0.0
    %2443 = vmatpush1.msra.mxu0 0.0
    %2444 = vmatprep.subr.mxu0 0.0
    %2445 = vmatpush1.msra.mxu0 0.0
    %2446 = vmatprep.subr.mxu0 0.0
    %2447 = vmatpush1.msra.mxu0 0.0
    %2448 = vmatprep.subr.mxu0 0.0
    %2449 = vmatpush1.msra.mxu0 0.0
    %2450 = vmatprep.subr.mxu0 0.0
    %2451 = vmatpush1.msra.mxu0 0.0
    %2452 = vmatprep.subr.mxu0 0.0
    %2453 = vmatpush1.msra.mxu0 0.0
    %2454 = vmatprep.subr.mxu0 0.0
    %2455 = vmatpush1.msra.mxu0 0.0
    %2456 = vmatprep.subr.mxu0 0.0
    %2457 = vmatpush1.msra.mxu0 0.0
    %2458 = vmatprep.subr.mxu0 0.0
    %2459 = vmatpush1.msra.mxu0 0.0
    %2460 = vmatprep.subr.mxu0 0.0
    %2461 = vmatpush1.msra.mxu0 0.0
    %2462 = vmatprep.subr.mxu0 0.0
    %2463 = vmatpush1.msra.mxu0 0.0
    %2464 = vmatprep.subr.mxu0 0.0
    %2465 = vmatpush1.msra.mxu0 %v2422
    %2466 = vmatprep.subr.mxu0 0.0
    %2467 = vmatpush2.msra.mxu0 0.0
    %2468 = vmatprep.subr.mxu0 0.0
    %2469 = vmatpush2.msra.mxu0 0.0
    %2470 = vmatprep.subr.mxu0 0.0
    %2471 = vmatpush2.msra.mxu0 0.0
    %2472 = vmatprep.subr.mxu0 0.0
    %2473 = vmatpush2.msra.mxu0 0.0
    %2474 = vmatprep.subr.mxu0 0.0
    %2475 = vmatpush2.msra.mxu0 0.0
    %2476 = vmatprep.subr.mxu0 0.0
    %2477 = vmatpush2.msra.mxu0 0.0
    %2478 = vmatprep.subr.mxu0 0.0
    %2479 = vmatpush2.msra.mxu0 0.0
    %2480 = vmatprep.subr.mxu0 0.0
    %2481 = vmatpush2.msra.mxu0 0.0
    %2482 = vmatprep.subr.mxu0 0.0
    %2483 = vmatpush2.msra.mxu0 0.0
    %2484 = vmatprep.subr.mxu0 0.0
    %2485 = vmatpush2.msra.mxu0 0.0
    %2486 = vmatprep.subr.mxu0 0.0
    %2487 = vmatpush2.msra.mxu0 0.0
    %2488 = vmatprep.subr.mxu0 0.0
    %2489 = vmatpush2.msra.mxu0 0.0
    %2490 = vmatprep.subr.mxu0 0.0
    %2491 = vmatpush2.msra.mxu0 0.0
    %2492 = vmatprep.subr.mxu0 0.0
    %2493 = vmatpush2.msra.mxu0 0.0
    %2494 = vmatprep.subr.mxu0 0.0
    %2495 = vmatpush2.msra.mxu0 0.0
    %2496 = vmatprep.subr.mxu0 0.0
    %2497 = vmatpush2.msra.mxu0 0.0
    %2498 = vmatprep.mubr.f32.mxu0 0.0
    %2499 = vmatmul.mubr.f32.gmra.mxu0 %v2432
    %v2500 = vpop.f32.mrf.mxu0
    %v2501 = vadd.f32 %v2428, %v2500
    %v2502 = vpop.f32.mrf.mxu0
    %2503 = vdwg.mxu0
    %v2504 = vxor.u32 %v2501, 2147483648
    %v2505 = vmul.f32 %v2504, 1.442695
    %v2506 = vpow.pop %v2505
    %v2507 = vadd.f32 %v2506, 1.0
    %v2508 = vrcp.pop %v2507
    %v2509 = vmul.f32 1.0, %v2508
    %v2510 = vld [vmem:[%s16] sm:$0xff]
    %v2511 = vld [vmem:[%s16 + $0x8] sm:$0xff]
    %v2512 = vld [vmem:[%s16 + $0x10] sm:$0xff]
    %v2513 = vld [vmem:[%s16 + $0x18] sm:$0xff]
    %v2514 = vld [vmem:[%s16 + $0x20] sm:$0xff]
    %v2515 = vld [vmem:[%s16 + $0x28] sm:$0xff]
    %v2516 = vld [vmem:[%s16 + $0x30] sm:$0xff]
    %v2517 = vld [vmem:[%s16 + $0x38] sm:$0xff]
    %v2518 = vld [vmem:[%s16 + $0x40] sm:$0xff]
    %v2519 = vld [vmem:[%s16 + $0x48] sm:$0xff]
    %v2520 = vld [vmem:[%s16 + $0x50] sm:$0xff]
    %v2521 = vld [vmem:[%s16 + $0x58] sm:$0xff]
    %v2522 = vld [vmem:[%s16 + $0x60] sm:$0xff]
    %v2523 = vld [vmem:[%s16 + $0x68] sm:$0xff]
    %v2524 = vld [vmem:[%s16 + $0x70] sm:$0xff]
    %v2525 = vld [vmem:[%s16 + $0x78] sm:$0xff]
    %vm2526 = vcmask 15360
    %v2528 = vsel %vm2526, %v2510, 0
    %v2531 = vsel %vm2526, %v2511, 0
    %v2534 = vsel %vm2526, %v2512, 0
    %v2537 = vsel %vm2526, %v2513, 0
    %v2540 = vsel %vm2526, %v2514, 0
    %v2543 = vsel %vm2526, %v2515, 0
    %v2546 = vsel %vm2526, %v2516, 0
    %v2549 = vsel %vm2526, %v2517, 0
    %v2552 = vsel %vm2526, %v2518, 0
    %v2555 = vsel %vm2526, %v2519, 0
    %v2558 = vsel %vm2526, %v2520, 0
    %v2561 = vsel %vm2526, %v2521, 0
    %v2564 = vsel %vm2526, %v2522, 0
    %v2567 = vsel %vm2526, %v2523, 0
    %v2570 = vsel %vm2526, %v2524, 0
    %v2573 = vsel %vm2526, %v2525, 0
    %vm2575 = vcmask 1041408
    %v2577 = vsel %vm2575, %v2509, 0
    %2579 = vmatprep.subr.mxu0 0.0
    %2580 = vmatpush1.msra.mxu0 0.0
    %2581 = vmatprep.subr.mxu0 0.0
    %2582 = vmatpush1.msra.mxu0 0.0
    %2583 = vmatprep.subr.mxu0 0.0
    %2584 = vmatpush1.msra.mxu0 0.0
    %2585 = vmatprep.subr.mxu0 0.0
    %2586 = vmatpush1.msra.mxu0 0.0
    %2587 = vmatprep.subr.mxu0 0.0
    %2588 = vmatpush1.msra.mxu0 0.0
    %2589 = vmatprep.subr.mxu0 0.0
    %2590 = vmatpush1.msra.mxu0 0.0
    %2591 = vmatprep.subr.mxu0 0.0
    %2592 = vmatpush1.msra.mxu0 0.0
    %2593 = vmatprep.subr.mxu0 0.0
    %2594 = vmatpush1.msra.mxu0 0.0
    %2595 = vmatprep.subr.mxu0 0.0
    %2596 = vmatpush1.msra.mxu0 0.0
    %2597 = vmatprep.subr.mxu0 0.0
    %2598 = vmatpush1.msra.mxu0 0.0
    %2599 = vmatprep.subr.mxu0 0.0
    %2600 = vmatpush1.msra.mxu0 0.0
    %2601 = vmatprep.subr.mxu0 0.0
    %2602 = vmatpush1.msra.mxu0 0.0
    %2603 = vmatprep.subr.mxu0 0.0
    %2604 = vmatpush1.msra.mxu0 0.0
    %2605 = vmatprep.subr.mxu0 0.0
    %2606 = vmatpush1.msra.mxu0 0.0
    %2607 = vmatprep.subr.mxu0 0.0
    %2608 = vmatpush1.msra.mxu0 0.0
    %2609 = vmatprep.subr.mxu0 0.0
    %2610 = vmatpush1.msra.mxu0 %v2577
    %2611 = vmatprep.subr.mxu0 0.0
    %2612 = vmatpush2.msra.mxu0 0.0
    %2613 = vmatprep.subr.mxu0 0.0
    %2614 = vmatpush2.msra.mxu0 0.0
    %2615 = vmatprep.subr.mxu0 0.0
    %2616 = vmatpush2.msra.mxu0 0.0
    %2617 = vmatprep.subr.mxu0 0.0
    %2618 = vmatpush2.msra.mxu0 0.0
    %2619 = vmatprep.subr.mxu0 0.0
    %2620 = vmatpush2.msra.mxu0 0.0
    %2621 = vmatprep.subr.mxu0 0.0
    %2622 = vmatpush2.msra.mxu0 0.0
    %2623 = vmatprep.subr.mxu0 0.0
    %2624 = vmatpush2.msra.mxu0 0.0
    %2625 = vmatprep.subr.mxu0 0.0
    %2626 = vmatpush2.msra.mxu0 0.0
    %2627 = vmatprep.subr.mxu0 0.0
    %2628 = vmatpush2.msra.mxu0 0.0
    %2629 = vmatprep.subr.mxu0 0.0
    %2630 = vmatpush2.msra.mxu0 0.0
    %2631 = vmatprep.subr.mxu0 0.0
    %2632 = vmatpush2.msra.mxu0 0.0
    %2633 = vmatprep.subr.mxu0 0.0
    %2634 = vmatpush2.msra.mxu0 0.0
    %2635 = vmatprep.subr.mxu0 0.0
    %2636 = vmatpush2.msra.mxu0 0.0
    %2637 = vmatprep.subr.mxu0 0.0
    %2638 = vmatpush2.msra.mxu0 0.0
    %2639 = vmatprep.subr.mxu0 0.0
    %2640 = vmatpush2.msra.mxu0 0.0
    %2641 = vmatprep.subr.mxu0 0.0
    %2642 = vmatpush2.msra.mxu0 0.0
    %2643 = vmatprep.mubr.f32.mxu0 0.0
    %2644 = vmatmul.mubr.f32.gmra.mxu0 %v2528
    %v2645 = vpop.f32.mrf.mxu0
    %v2646 = vadd.f32 0.0, %v2645
    %v2647 = vpop.f32.mrf.mxu0
    %2648 = vmatprep.mubr.f32.mxu0 0.0
    %2649 = vmatmul.mubr.f32.gmra.mxu0 %v2531
    %v2650 = vpop.f32.mrf.mxu0
    %v2651 = vadd.f32 0.0, %v2650
    %v2652 = vpop.f32.mrf.mxu0
    %2653 = vmatprep.mubr.f32.mxu0 0.0
    %2654 = vmatmul.mubr.f32.gmra.mxu0 %v2534
    %v2655 = vpop.f32.mrf.mxu0
    %v2656 = vadd.f32 0.0, %v2655
    %v2657 = vpop.f32.mrf.mxu0
    %2658 = vmatprep.mubr.f32.mxu0 0.0
    %2659 = vmatmul.mubr.f32.gmra.mxu0 %v2537
    %v2660 = vpop.f32.mrf.mxu0
    %v2661 = vadd.f32 0.0, %v2660
    %v2662 = vpop.f32.mrf.mxu0
    %2663 = vmatprep.mubr.f32.mxu0 0.0
    %2664 = vmatmul.mubr.f32.gmra.mxu0 %v2540
    %v2665 = vpop.f32.mrf.mxu0
    %v2666 = vadd.f32 0.0, %v2665
    %v2667 = vpop.f32.mrf.mxu0
    %2668 = vmatprep.mubr.f32.mxu0 0.0
    %2669 = vmatmul.mubr.f32.gmra.mxu0 %v2543
    %v2670 = vpop.f32.mrf.mxu0
    %v2671 = vadd.f32 0.0, %v2670
    %v2672 = vpop.f32.mrf.mxu0
    %2673 = vmatprep.mubr.f32.mxu0 0.0
    %2674 = vmatmul.mubr.f32.gmra.mxu0 %v2546
    %v2675 = vpop.f32.mrf.mxu0
    %v2676 = vadd.f32 0.0, %v2675
    %v2677 = vpop.f32.mrf.mxu0
    %2678 = vmatprep.mubr.f32.mxu0 0.0
    %2679 = vmatmul.mubr.f32.gmra.mxu0 %v2549
    %v2680 = vpop.f32.mrf.mxu0
    %v2681 = vadd.f32 0.0, %v2680
    %v2682 = vpop.f32.mrf.mxu0
    %2683 = vmatprep.mubr.f32.mxu0 0.0
    %2684 = vmatmul.mubr.f32.gmra.mxu0 %v2552
    %v2685 = vpop.f32.mrf.mxu0
    %v2686 = vadd.f32 0.0, %v2685
    %v2687 = vpop.f32.mrf.mxu0
    %2688 = vmatprep.mubr.f32.mxu0 0.0
    %2689 = vmatmul.mubr.f32.gmra.mxu0 %v2555
    %v2690 = vpop.f32.mrf.mxu0
    %v2691 = vadd.f32 0.0, %v2690
    %v2692 = vpop.f32.mrf.mxu0
    %2693 = vmatprep.mubr.f32.mxu0 0.0
    %2694 = vmatmul.mubr.f32.gmra.mxu0 %v2558
    %v2695 = vpop.f32.mrf.mxu0
    %v2696 = vadd.f32 0.0, %v2695
    %v2697 = vpop.f32.mrf.mxu0
    %2698 = vmatprep.mubr.f32.mxu0 0.0
    %2699 = vmatmul.mubr.f32.gmra.mxu0 %v2561
    %v2700 = vpop.f32.mrf.mxu0
    %v2701 = vadd.f32 0.0, %v2700
    %v2702 = vpop.f32.mrf.mxu0
    %2703 = vmatprep.mubr.f32.mxu0 0.0
    %2704 = vmatmul.mubr.f32.gmra.mxu0 %v2564
    %v2705 = vpop.f32.mrf.mxu0
    %v2706 = vadd.f32 0.0, %v2705
    %v2707 = vpop.f32.mrf.mxu0
    %2708 = vmatprep.mubr.f32.mxu0 0.0
    %2709 = vmatmul.mubr.f32.gmra.mxu0 %v2567
    %v2710 = vpop.f32.mrf.mxu0
    %v2711 = vadd.f32 0.0, %v2710
    %v2712 = vpop.f32.mrf.mxu0
    %2713 = vmatprep.mubr.f32.mxu0 0.0
    %2714 = vmatmul.mubr.f32.gmra.mxu0 %v2570
    %v2715 = vpop.f32.mrf.mxu0
    %v2716 = vadd.f32 0.0, %v2715
    %v2717 = vpop.f32.mrf.mxu0
    %2718 = vmatprep.mubr.f32.mxu0 0.0
    %2719 = vmatmul.mubr.f32.gmra.mxu0 %v2573
    %v2720 = vpop.f32.mrf.mxu0
    %v2721 = vadd.f32 0.0, %v2720
    %v2722 = vpop.f32.mrf.mxu0
    %2723 = vdwg.mxu0
    %v2724 = vmul.f32 %v2235, %v2646
    %v2725 = vmul.f32 %v2236, %v2651
    %v2726 = vmul.f32 %v2237, %v2656
    %v2727 = vmul.f32 %v2238, %v2661
    %v2728 = vmul.f32 %v2239, %v2666
    %v2729 = vmul.f32 %v2240, %v2671
    %v2730 = vmul.f32 %v2241, %v2676
    %v2731 = vmul.f32 %v2242, %v2681
    %v2732 = vmul.f32 %v2243, %v2686
    %v2733 = vmul.f32 %v2244, %v2691
    %v2734 = vmul.f32 %v2245, %v2696
    %v2735 = vmul.f32 %v2246, %v2701
    %v2736 = vmul.f32 %v2247, %v2706
    %v2737 = vmul.f32 %v2248, %v2711
    %v2738 = vmul.f32 %v2249, %v2716
    %v2739 = vmul.f32 %v2250, %v2721
    %v2740 = vpack.c.bf16 %v2725, %v2724
    %v2741 = vpack.c.bf16 %v2727, %v2726
    %v2742 = vpack.c.bf16 %v2729, %v2728
    %v2743 = vpack.c.bf16 %v2731, %v2730
    %v2744 = vpack.c.bf16 %v2733, %v2732
    %v2745 = vpack.c.bf16 %v2735, %v2734
    %v2746 = vpack.c.bf16 %v2737, %v2736
    %v2747 = vpack.c.bf16 %v2739, %v2738
    %v2748 = vld [vmem:[%s11] sm:$0xf]
    %v2749 = vld [vmem:[%s11 + $0x4] sm:$0xf]
    %v2750 = vld [vmem:[%s11 + $0x8] sm:$0xf]
    %v2751 = vld [vmem:[%s11 + $0xc] sm:$0xf]
    %v2752 = vld [vmem:[%s11 + $0x10] sm:$0xf]
    %v2753 = vld [vmem:[%s11 + $0x14] sm:$0xf]
    %v2754 = vld [vmem:[%s11 + $0x18] sm:$0xf]
    %v2755 = vld [vmem:[%s11 + $0x1c] sm:$0xf]
    %v2756 = vld [vmem:[%s11 + $0x20] sm:$0xf]
    %v2757 = vld [vmem:[%s11 + $0x24] sm:$0xf]
    %v2758 = vld [vmem:[%s11 + $0x28] sm:$0xf]
    %v2759 = vld [vmem:[%s11 + $0x2c] sm:$0xf]
    %v2760 = vld [vmem:[%s11 + $0x30] sm:$0xf]
    %v2761 = vld [vmem:[%s11 + $0x34] sm:$0xf]
    %v2762 = vld [vmem:[%s11 + $0x38] sm:$0xf]
    %v2763 = vld [vmem:[%s11 + $0x3c] sm:$0xf]
    %v2764 = vld [vmem:[%s12] sm:$0x1]
    %v2766 = vlaneseq
    %v2767 = vshrl.u32 %v2766, 7
    %v2768 = vsub.s32 0, %v2767
    %v2769 = vrot.slane %v2764, %v2768
    %v2787 = vunpack.c.l.b16 %v2748
    %v2788 = vunpack.c.l.b16 %v2749
    %v2789 = vunpack.c.l.b16 %v2750
    %v2790 = vunpack.c.l.b16 %v2751
    %v2791 = vunpack.c.l.b16 %v2752
    %v2792 = vunpack.c.l.b16 %v2753
    %v2793 = vunpack.c.l.b16 %v2754
    %v2794 = vunpack.c.l.b16 %v2755
    %v2795 = vunpack.c.l.b16 %v2756
    %v2796 = vunpack.c.l.b16 %v2757
    %v2797 = vunpack.c.l.b16 %v2758
    %v2798 = vunpack.c.l.b16 %v2759
    %v2799 = vunpack.c.l.b16 %v2760
    %v2800 = vunpack.c.l.b16 %v2761
    %v2801 = vunpack.c.l.b16 %v2762
    %v2802 = vunpack.c.l.b16 %v2763
    %v2803 = vpack.c.b16 %v2788, %v2787
    %v2804 = vpack.c.b16 %v2790, %v2789
    %v2805 = vpack.c.b16 %v2792, %v2791
    %v2806 = vpack.c.b16 %v2794, %v2793
    %v2807 = vpack.c.b16 %v2796, %v2795
    %v2808 = vpack.c.b16 %v2798, %v2797
    %v2809 = vpack.c.b16 %v2800, %v2799
    %v2810 = vpack.c.b16 %v2802, %v2801
    %2819 = vmatprep.subr.bf16.mxu0 0
    %2820 = vmatpush1.bf16.msra.mxu0 %v2810
    %2821 = vmatprep.subr.bf16.mxu0 0
    %2822 = vmatpush1.bf16.msra.mxu0 %v2809
    %2823 = vmatprep.subr.bf16.mxu0 0
    %2824 = vmatpush1.bf16.msra.mxu0 %v2808
    %2825 = vmatprep.subr.bf16.mxu0 0
    %2826 = vmatpush1.bf16.msra.mxu0 %v2807
    %2827 = vmatprep.subr.bf16.mxu0 0
    %2828 = vmatpush1.bf16.msra.mxu0 %v2806
    %2829 = vmatprep.subr.bf16.mxu0 0
    %2830 = vmatpush1.bf16.msra.mxu0 %v2805
    %2831 = vmatprep.subr.bf16.mxu0 0
    %2832 = vmatpush1.bf16.msra.mxu0 %v2804
    %2833 = vmatprep.subr.bf16.mxu0 0
    %2834 = vmatpush1.bf16.msra.mxu0 %v2803
    %2835 = vmatprep.subr.bf16.mxu0 0
    %2836 = vmatpush2.bf16.msra.mxu0 0
    %2837 = vmatprep.subr.bf16.mxu0 0
    %2838 = vmatpush2.bf16.msra.mxu0 0
    %2839 = vmatprep.subr.bf16.mxu0 0
    %2840 = vmatpush2.bf16.msra.mxu0 0
    %2841 = vmatprep.subr.bf16.mxu0 0
    %2842 = vmatpush2.bf16.msra.mxu0 0
    %2843 = vmatprep.subr.bf16.mxu0 0
    %2844 = vmatpush2.bf16.msra.mxu0 0
    %2845 = vmatprep.subr.bf16.mxu0 0
    %2846 = vmatpush2.bf16.msra.mxu0 0
    %2847 = vmatprep.subr.bf16.mxu0 0
    %2848 = vmatpush2.bf16.msra.mxu0 0
    %2849 = vmatprep.subr.bf16.mxu0 0
    %2850 = vmatpush2.bf16.msra.mxu0 0
    %2851 = vmatprep.mubr.bf16.mxu0 0
    %2852 = vmatmul.mubr.bf16.gmra.mxu0 %v2740
    %v2853 = vpop.f32.mrf.mxu0
    %v2854 = vadd.f32 %v2769, %v2853
    %v2855 = vpop.f32.mrf.mxu0
    %v2856 = vpop.f32.mrf.mxu0
    %v2857 = vadd.f32 %v2769, %v2856
    %v2858 = vpop.f32.mrf.mxu0
    %2859 = vmatprep.mubr.bf16.mxu0 0
    %2860 = vmatmul.mubr.bf16.gmra.mxu0 %v2741
    %v2861 = vpop.f32.mrf.mxu0
    %v2862 = vadd.f32 %v2769, %v2861
    %v2863 = vpop.f32.mrf.mxu0
    %v2864 = vpop.f32.mrf.mxu0
    %v2865 = vadd.f32 %v2769, %v2864
    %v2866 = vpop.f32.mrf.mxu0
    %2867 = vmatprep.mubr.bf16.mxu0 0
    %2868 = vmatmul.mubr.bf16.gmra.mxu0 %v2742
    %v2869 = vpop.f32.mrf.mxu0
    %v2870 = vadd.f32 %v2769, %v2869
    %v2871 = vpop.f32.mrf.mxu0
    %v2872 = vpop.f32.mrf.mxu0
    %v2873 = vadd.f32 %v2769, %v2872
    %v2874 = vpop.f32.mrf.mxu0
    %2875 = vmatprep.mubr.bf16.mxu0 0
    %2876 = vmatmul.mubr.bf16.gmra.mxu0 %v2743
    %v2877 = vpop.f32.mrf.mxu0
    %v2878 = vadd.f32 %v2769, %v2877
    %v2879 = vpop.f32.mrf.mxu0
    %v2880 = vpop.f32.mrf.mxu0
    %v2881 = vadd.f32 %v2769, %v2880
    %v2882 = vpop.f32.mrf.mxu0
    %2883 = vmatprep.mubr.bf16.mxu0 0
    %2884 = vmatmul.mubr.bf16.gmra.mxu0 %v2744
    %v2885 = vpop.f32.mrf.mxu0
    %v2886 = vadd.f32 %v2769, %v2885
    %v2887 = vpop.f32.mrf.mxu0
    %v2888 = vpop.f32.mrf.mxu0
    %v2889 = vadd.f32 %v2769, %v2888
    %v2890 = vpop.f32.mrf.mxu0
    %2891 = vmatprep.mubr.bf16.mxu0 0
    %2892 = vmatmul.mubr.bf16.gmra.mxu0 %v2745
    %v2893 = vpop.f32.mrf.mxu0
    %v2894 = vadd.f32 %v2769, %v2893
    %v2895 = vpop.f32.mrf.mxu0
    %v2896 = vpop.f32.mrf.mxu0
    %v2897 = vadd.f32 %v2769, %v2896
    %v2898 = vpop.f32.mrf.mxu0
    %2899 = vmatprep.mubr.bf16.mxu0 0
    %2900 = vmatmul.mubr.bf16.gmra.mxu0 %v2746
    %v2901 = vpop.f32.mrf.mxu0
    %v2902 = vadd.f32 %v2769, %v2901
    %v2903 = vpop.f32.mrf.mxu0
    %v2904 = vpop.f32.mrf.mxu0
    %v2905 = vadd.f32 %v2769, %v2904
    %v2906 = vpop.f32.mrf.mxu0
    %2907 = vmatprep.mubr.bf16.mxu0 0
    %2908 = vmatmul.mubr.bf16.gmra.mxu0 %v2747
    %v2909 = vpop.f32.mrf.mxu0
    %v2910 = vadd.f32 %v2769, %v2909
    %v2911 = vpop.f32.mrf.mxu0
    %v2912 = vpop.f32.mrf.mxu0
    %v2913 = vadd.f32 %v2769, %v2912
    %v2914 = vpop.f32.mrf.mxu0
    %2915 = vdwg.mxu0
    %v2916 = vadd.f32 %v2854, %v355
    %v2917 = vadd.f32 %v2857, %v356
    %v2918 = vadd.f32 %v2862, %v357
    %v2919 = vadd.f32 %v2865, %v358
    %v2920 = vadd.f32 %v2870, %v359
    %v2921 = vadd.f32 %v2873, %v360
    %v2922 = vadd.f32 %v2878, %v361
    %v2923 = vadd.f32 %v2881, %v362
    %v2924 = vadd.f32 %v2886, %v363
    %v2925 = vadd.f32 %v2889, %v364
    %v2926 = vadd.f32 %v2894, %v365
    %v2927 = vadd.f32 %v2897, %v366
    %v2928 = vadd.f32 %v2902, %v367
    %v2929 = vadd.f32 %v2905, %v368
    %v2930 = vadd.f32 %v2910, %v369
    %v2931 = vadd.f32 %v2913, %v370
    %v2932 = vpack.c.bf16 %v2917, %v2916
    %v2933 = vpack.c.bf16 %v2919, %v2918
    %v2934 = vpack.c.bf16 %v2921, %v2920
    %v2935 = vpack.c.bf16 %v2923, %v2922
    %v2936 = vpack.c.bf16 %v2925, %v2924
    %v2937 = vpack.c.bf16 %v2927, %v2926
    %v2938 = vpack.c.bf16 %v2929, %v2928
    %v2939 = vpack.c.bf16 %v2931, %v2930
    %v2940 = vld [vmem:[%s13] sm:$0xf]
    %v2941 = vld [vmem:[%s13 + $0x4] sm:$0xf]
    %v2942 = vld [vmem:[%s13 + $0x8] sm:$0xf]
    %v2943 = vld [vmem:[%s13 + $0xc] sm:$0xf]
    %v2944 = vld [vmem:[%s14] sm:$0x1]
    %v2946 = vlaneseq
    %v2947 = vshrl.u32 %v2946, 7
    %v2948 = vsub.s32 0, %v2947
    %v2949 = vrot.slane %v2944, %v2948
    %v2955 = vunpack.c.l.b16 %v2940
    %v2956 = vunpack.c.l.b16 %v2941
    %v2957 = vunpack.c.l.b16 %v2942
    %v2958 = vunpack.c.l.b16 %v2943
    %v2959 = vpack.c.b16 %v2956, %v2955
    %v2960 = vpack.c.b16 %v2958, %v2957
    %v2964 = vsel %vm137, %v2932, 0
    %v2967 = vsel %vm137, %v2933, 0
    %v2970 = vsel %vm137, %v2934, 0
    %v2973 = vsel %vm137, %v2935, 0
    %v2976 = vsel %vm137, %v2936, 0
    %v2979 = vsel %vm137, %v2937, 0
    %v2982 = vsel %vm137, %v2938, 0
    %v2985 = vsel %vm137, %v2939, 0
    %2987 = vmatprep.subr.bf16.mxu0 0
    %2988 = vmatpush1.bf16.msra.mxu0 0
    %2989 = vmatprep.subr.bf16.mxu0 0
    %2990 = vmatpush1.bf16.msra.mxu0 0
    %2991 = vmatprep.subr.bf16.mxu0 0
    %2992 = vmatpush1.bf16.msra.mxu0 0
    %2993 = vmatprep.subr.bf16.mxu0 0
    %2994 = vmatpush1.bf16.msra.mxu0 0
    %2995 = vmatprep.subr.bf16.mxu0 0
    %2996 = vmatpush1.bf16.msra.mxu0 0
    %2997 = vmatprep.subr.bf16.mxu0 0
    %2998 = vmatpush1.bf16.msra.mxu0 0
    %2999 = vmatprep.subr.bf16.mxu0 0
    %3000 = vmatpush1.bf16.msra.mxu0 %v2960
    %3001 = vmatprep.subr.bf16.mxu0 0
    %3002 = vmatpush1.bf16.msra.mxu0 %v2959
    %3003 = vmatprep.subr.bf16.mxu0 0
    %3004 = vmatpush2.bf16.msra.mxu0 0
    %3005 = vmatprep.subr.bf16.mxu0 0
    %3006 = vmatpush2.bf16.msra.mxu0 0
    %3007 = vmatprep.subr.bf16.mxu0 0
    %3008 = vmatpush2.bf16.msra.mxu0 0
    %3009 = vmatprep.subr.bf16.mxu0 0
    %3010 = vmatpush2.bf16.msra.mxu0 0
    %3011 = vmatprep.subr.bf16.mxu0 0
    %3012 = vmatpush2.bf16.msra.mxu0 0
    %3013 = vmatprep.subr.bf16.mxu0 0
    %3014 = vmatpush2.bf16.msra.mxu0 0
    %3015 = vmatprep.subr.bf16.mxu0 0
    %3016 = vmatpush2.bf16.msra.mxu0 0
    %3017 = vmatprep.subr.bf16.mxu0 0
    %3018 = vmatpush2.bf16.msra.mxu0 0
    %3019 = vmatprep.mubr.bf16.mxu0 0
    %3020 = vmatmul.mubr.bf16.gmra.mxu0 %v2964
    %v3021 = vpop.f32.mrf.mxu0
    %v3022 = vadd.f32 %v2949, %v3021
    %v3023 = vpop.f32.mrf.mxu0
    %v3024 = vpop.f32.mrf.mxu0
    %v3025 = vadd.f32 %v2949, %v3024
    %v3026 = vpop.f32.mrf.mxu0
    %3027 = vmatprep.mubr.bf16.mxu0 0
    %3028 = vmatmul.mubr.bf16.gmra.mxu0 %v2967
    %v3029 = vpop.f32.mrf.mxu0
    %v3030 = vadd.f32 %v2949, %v3029
    %v3031 = vpop.f32.mrf.mxu0
    %v3032 = vpop.f32.mrf.mxu0
    %v3033 = vadd.f32 %v2949, %v3032
    %v3034 = vpop.f32.mrf.mxu0
    %3035 = vmatprep.mubr.bf16.mxu0 0
    %3036 = vmatmul.mubr.bf16.gmra.mxu0 %v2970
    %v3037 = vpop.f32.mrf.mxu0
    %v3038 = vadd.f32 %v2949, %v3037
    %v3039 = vpop.f32.mrf.mxu0
    %v3040 = vpop.f32.mrf.mxu0
    %v3041 = vadd.f32 %v2949, %v3040
    %v3042 = vpop.f32.mrf.mxu0
    %3043 = vmatprep.mubr.bf16.mxu0 0
    %3044 = vmatmul.mubr.bf16.gmra.mxu0 %v2973
    %v3045 = vpop.f32.mrf.mxu0
    %v3046 = vadd.f32 %v2949, %v3045
    %v3047 = vpop.f32.mrf.mxu0
    %v3048 = vpop.f32.mrf.mxu0
    %v3049 = vadd.f32 %v2949, %v3048
    %v3050 = vpop.f32.mrf.mxu0
    %3051 = vmatprep.mubr.bf16.mxu0 0
    %3052 = vmatmul.mubr.bf16.gmra.mxu0 %v2976
    %v3053 = vpop.f32.mrf.mxu0
    %v3054 = vadd.f32 %v2949, %v3053
    %v3055 = vpop.f32.mrf.mxu0
    %v3056 = vpop.f32.mrf.mxu0
    %v3057 = vadd.f32 %v2949, %v3056
    %v3058 = vpop.f32.mrf.mxu0
    %3059 = vmatprep.mubr.bf16.mxu0 0
    %3060 = vmatmul.mubr.bf16.gmra.mxu0 %v2979
    %v3061 = vpop.f32.mrf.mxu0
    %v3062 = vadd.f32 %v2949, %v3061
    %v3063 = vpop.f32.mrf.mxu0
    %v3064 = vpop.f32.mrf.mxu0
    %v3065 = vadd.f32 %v2949, %v3064
    %v3066 = vpop.f32.mrf.mxu0
    %3067 = vmatprep.mubr.bf16.mxu0 0
    %3068 = vmatmul.mubr.bf16.gmra.mxu0 %v2982
    %v3069 = vpop.f32.mrf.mxu0
    %v3070 = vadd.f32 %v2949, %v3069
    %v3071 = vpop.f32.mrf.mxu0
    %v3072 = vpop.f32.mrf.mxu0
    %v3073 = vadd.f32 %v2949, %v3072
    %v3074 = vpop.f32.mrf.mxu0
    %3075 = vmatprep.mubr.bf16.mxu0 0
    %3076 = vmatmul.mubr.bf16.gmra.mxu0 %v2985
    %v3077 = vpop.f32.mrf.mxu0
    %v3078 = vadd.f32 %v2949, %v3077
    %v3079 = vpop.f32.mrf.mxu0
    %v3080 = vpop.f32.mrf.mxu0
    %v3081 = vadd.f32 %v2949, %v3080
    %v3082 = vpop.f32.mrf.mxu0
    %3083 = vdwg.mxu0
    %v3084 = vxor.u32 %v3022, 2147483648
    %v3085 = vxor.u32 %v3025, 2147483648
    %v3086 = vxor.u32 %v3030, 2147483648
    %v3087 = vxor.u32 %v3033, 2147483648
    %v3088 = vxor.u32 %v3038, 2147483648
    %v3089 = vxor.u32 %v3041, 2147483648
    %v3090 = vxor.u32 %v3046, 2147483648
    %v3091 = vxor.u32 %v3049, 2147483648
    %v3092 = vxor.u32 %v3054, 2147483648
    %v3093 = vxor.u32 %v3057, 2147483648
    %v3094 = vxor.u32 %v3062, 2147483648
    %v3095 = vxor.u32 %v3065, 2147483648
    %v3096 = vxor.u32 %v3070, 2147483648
    %v3097 = vxor.u32 %v3073, 2147483648
    %v3098 = vxor.u32 %v3078, 2147483648
    %v3099 = vxor.u32 %v3081, 2147483648
    %v3100 = vmul.f32 %v3084, 1.442695
    %v3101 = vpow.pop %v3100
    %v3102 = vmul.f32 %v3085, 1.442695
    %v3103 = vpow.pop %v3102
    %v3104 = vmul.f32 %v3086, 1.442695
    %v3105 = vpow.pop %v3104
    %v3106 = vmul.f32 %v3087, 1.442695
    %v3107 = vpow.pop %v3106
    %v3108 = vmul.f32 %v3088, 1.442695
    %v3109 = vpow.pop %v3108
    %v3110 = vmul.f32 %v3089, 1.442695
    %v3111 = vpow.pop %v3110
    %v3112 = vmul.f32 %v3090, 1.442695
    %v3113 = vpow.pop %v3112
    %v3114 = vmul.f32 %v3091, 1.442695
    %v3115 = vpow.pop %v3114
    %v3116 = vmul.f32 %v3092, 1.442695
    %v3117 = vpow.pop %v3116
    %v3118 = vmul.f32 %v3093, 1.442695
    %v3119 = vpow.pop %v3118
    %v3120 = vmul.f32 %v3094, 1.442695
    %v3121 = vpow.pop %v3120
    %v3122 = vmul.f32 %v3095, 1.442695
    %v3123 = vpow.pop %v3122
    %v3124 = vmul.f32 %v3096, 1.442695
    %v3125 = vpow.pop %v3124
    %v3126 = vmul.f32 %v3097, 1.442695
    %v3127 = vpow.pop %v3126
    %v3128 = vmul.f32 %v3098, 1.442695
    %v3129 = vpow.pop %v3128
    %v3130 = vmul.f32 %v3099, 1.442695
    %v3131 = vpow.pop %v3130
    %v3132 = vadd.f32 %v3101, 1.0
    %v3133 = vadd.f32 %v3103, 1.0
    %v3134 = vadd.f32 %v3105, 1.0
    %v3135 = vadd.f32 %v3107, 1.0
    %v3136 = vadd.f32 %v3109, 1.0
    %v3137 = vadd.f32 %v3111, 1.0
    %v3138 = vadd.f32 %v3113, 1.0
    %v3139 = vadd.f32 %v3115, 1.0
    %v3140 = vadd.f32 %v3117, 1.0
    %v3141 = vadd.f32 %v3119, 1.0
    %v3142 = vadd.f32 %v3121, 1.0
    %v3143 = vadd.f32 %v3123, 1.0
    %v3144 = vadd.f32 %v3125, 1.0
    %v3145 = vadd.f32 %v3127, 1.0
    %v3146 = vadd.f32 %v3129, 1.0
    %v3147 = vadd.f32 %v3131, 1.0
    %v3148 = vrcp.pop %v3132
    %v3149 = vmul.f32 1.0, %v3148
    %v3150 = vrcp.pop %v3133
    %v3151 = vmul.f32 1.0, %v3150
    %v3152 = vrcp.pop %v3134
    %v3153 = vmul.f32 1.0, %v3152
    %v3154 = vrcp.pop %v3135
    %v3155 = vmul.f32 1.0, %v3154
    %v3156 = vrcp.pop %v3136
    %v3157 = vmul.f32 1.0, %v3156
    %v3158 = vrcp.pop %v3137
    %v3159 = vmul.f32 1.0, %v3158
    %v3160 = vrcp.pop %v3138
    %v3161 = vmul.f32 1.0, %v3160
    %v3162 = vrcp.pop %v3139
    %v3163 = vmul.f32 1.0, %v3162
    %v3164 = vrcp.pop %v3140
    %v3165 = vmul.f32 1.0, %v3164
    %v3166 = vrcp.pop %v3141
    %v3167 = vmul.f32 1.0, %v3166
    %v3168 = vrcp.pop %v3142
    %v3169 = vmul.f32 1.0, %v3168
    %v3170 = vrcp.pop %v3143
    %v3171 = vmul.f32 1.0, %v3170
    %v3172 = vrcp.pop %v3144
    %v3173 = vmul.f32 1.0, %v3172
    %v3174 = vrcp.pop %v3145
    %v3175 = vmul.f32 1.0, %v3174
    %v3176 = vrcp.pop %v3146
    %v3177 = vmul.f32 1.0, %v3176
    %v3178 = vrcp.pop %v3147
    %v3179 = vmul.f32 1.0, %v3178
    %v3180 = vmul.f32 %v3022, %v3149
    %v3181 = vmul.f32 %v3025, %v3151
    %v3182 = vmul.f32 %v3030, %v3153
    %v3183 = vmul.f32 %v3033, %v3155
    %v3184 = vmul.f32 %v3038, %v3157
    %v3185 = vmul.f32 %v3041, %v3159
    %v3186 = vmul.f32 %v3046, %v3161
    %v3187 = vmul.f32 %v3049, %v3163
    %v3188 = vmul.f32 %v3054, %v3165
    %v3189 = vmul.f32 %v3057, %v3167
    %v3190 = vmul.f32 %v3062, %v3169
    %v3191 = vmul.f32 %v3065, %v3171
    %v3192 = vmul.f32 %v3070, %v3173
    %v3193 = vmul.f32 %v3073, %v3175
    %v3194 = vmul.f32 %v3078, %v3177
    %v3195 = vmul.f32 %v3081, %v3179
    %3196 = vmatprep.subr.mxu0 0.0
    %3197 = vmatpush1.msra.mxu0 %v3195
    %3198 = vmatprep.subr.mxu0 0.0
    %3199 = vmatpush1.msra.mxu0 %v3194
    %3200 = vmatprep.subr.mxu0 0.0
    %3201 = vmatpush1.msra.mxu0 %v3193
    %3202 = vmatprep.subr.mxu0 0.0
    %3203 = vmatpush1.msra.mxu0 %v3192
    %3204 = vmatprep.subr.mxu0 0.0
    %3205 = vmatpush1.msra.mxu0 %v3191
    %3206 = vmatprep.subr.mxu0 0.0
    %3207 = vmatpush1.msra.mxu0 %v3190
    %3208 = vmatprep.subr.mxu0 0.0
    %3209 = vmatpush1.msra.mxu0 %v3189
    %3210 = vmatprep.subr.mxu0 0.0
    %3211 = vmatpush1.msra.mxu0 %v3188
    %3212 = vmatprep.subr.mxu0 0.0
    %3213 = vmatpush1.msra.mxu0 %v3187
    %3214 = vmatprep.subr.mxu0 0.0
    %3215 = vmatpush1.msra.mxu0 %v3186
    %3216 = vmatprep.subr.mxu0 0.0
    %3217 = vmatpush1.msra.mxu0 %v3185
    %3218 = vmatprep.subr.mxu0 0.0
    %3219 = vmatpush1.msra.mxu0 %v3184
    %3220 = vmatprep.subr.mxu0 0.0
    %3221 = vmatpush1.msra.mxu0 %v3183
    %3222 = vmatprep.subr.mxu0 0.0
    %3223 = vmatpush1.msra.mxu0 %v3182
    %3224 = vmatprep.subr.mxu0 0.0
    %3225 = vmatpush1.msra.mxu0 %v3181
    %3226 = vmatprep.subr.mxu0 0.0
    %3227 = vmatpush1.msra.mxu0 %v3180
    %3228 = vmatprep.subr.mxu0 0.0
    %3229 = vmatpush2.msra.mxu0 0.0
    %3230 = vmatprep.subr.mxu0 0.0
    %3231 = vmatpush2.msra.mxu0 0.0
    %3232 = vmatprep.subr.mxu0 0.0
    %3233 = vmatpush2.msra.mxu0 0.0
    %3234 = vmatprep.subr.mxu0 0.0
    %3235 = vmatpush2.msra.mxu0 0.0
    %3236 = vmatprep.subr.mxu0 0.0
    %3237 = vmatpush2.msra.mxu0 0.0
    %3238 = vmatprep.subr.mxu0 0.0
    %3239 = vmatpush2.msra.mxu0 0.0
    %3240 = vmatprep.subr.mxu0 0.0
    %3241 = vmatpush2.msra.mxu0 0.0
    %3242 = vmatprep.subr.mxu0 0.0
    %3243 = vmatpush2.msra.mxu0 0.0
    %3244 = vmatprep.subr.mxu0 0.0
    %3245 = vmatpush2.msra.mxu0 0.0
    %3246 = vmatprep.subr.mxu0 0.0
    %3247 = vmatpush2.msra.mxu0 0.0
    %3248 = vmatprep.subr.mxu0 0.0
    %3249 = vmatpush2.msra.mxu0 0.0
    %3250 = vmatprep.subr.mxu0 0.0
    %3251 = vmatpush2.msra.mxu0 0.0
    %3252 = vmatprep.subr.mxu0 0.0
    %3253 = vmatpush2.msra.mxu0 0.0
    %3254 = vmatprep.subr.mxu0 0.0
    %3255 = vmatpush2.msra.mxu0 0.0
    %3256 = vmatprep.subr.mxu0 0.0
    %3257 = vmatpush2.msra.mxu0 0.0
    %3258 = vmatprep.subr.mxu0 0.0
    %3259 = vmatpush2.msra.mxu0 0.0
    %3260 = vmatprep.mubr.f32.mxu0 0.0
    %3261 = vmatmul.mubr.f32.gmra.mxu0 %v2251
    %v3262 = vpop.f32.mrf.mxu0
    %v3263 = vadd.f32 0.0, %v3262
    %v3264 = vpop.f32.mrf.mxu0
    %3265 = vdwg.mxu0
    %3266 = vst [vmem:[#allocation2] sm:$0x3] %v3263
    // Predicated region
    $region70: #{_lambda_.1} parent=1 // pred_check
      _
    $region71: #{_lambda_.1} parent=1 // pred_check_branch
      %3268 = sbr.rel (0) target = $region73
    $region72: #{_lambda_.1} parent=1 // pred_region
      %s3270 = ssub.s32 32, 32
      %3271 = vsyncadd [#allocation3], %s3270
      %s3273 = sshll.u32 [#allocation2], 4
      %s3274 = int_to_ptr.vmem [resolvable:$true] %s3273
      %3276 = dma.vmem_to_hbm [thread:$0]  %s3274, 32, %s17, [#allocation3]
    $region73: #{_lambda_.1} parent=1 // pred_fallthru
      _
    // Predicated region
    $region74: #{_lambda_.1} parent=1 // pred_check
      _
    $region75: #{_lambda_.1} parent=1 // pred_check_branch
      %3278 = sbr.rel (0) target = $region77
    $region76: #{_lambda_.1} parent=1 // pred_region
      %3279 = dma.done [#allocation3], 32
    $region77: #{_lambda_.1} parent=1 // pred_fallthru
      _
    %3280 = vsyncpa [#allocation3], 1

</llo_original>
